<compile_context>
chip_gen: v7x
topology: tpu7x:2x2x1
jax: 0.10.0
libtpu: 0.0.40
codegen_flags: <defaults>
</compile_context>

<pallas_src>
import functools
import math

import jax
import jax.numpy as jnp
from jax.experimental import pallas as pl
from jax.experimental.pallas import tpu as pltpu

_EPS = 1e-5
_NEG = -1e30


@functools.lru_cache(maxsize=None)
def _vmem_limit_bytes():
    # v5e/v6e: 128 MiB physical VMEM; v7x: 64 MiB.  Leave headroom.
    try:
        cap = int(pltpu.get_tpu_info().vmem_capacity_bytes)
    except Exception:
        cap = 64 * 1024 * 1024
    return min((cap * 3) // 4, 64 * 1024 * 1024)


def _compiler_params():
    return pltpu.CompilerParams(
        dimension_semantics=("arbitrary",),      # layer axis carries state
        vmem_limit_bytes=_vmem_limit_bytes())


# --------------------------- in-kernel helpers ------------------------------

def _mm(a, b, transpose_b=False):
    """MXU matmul: bf16 operands, f32 accumulation."""
    dims = (((1,), (1,)), ((), ())) if transpose_b else (((1,), (0,)), ((), ()))
    return jax.lax.dot_general(
        a.astype(jnp.bfloat16), b.astype(jnp.bfloat16),
        dimension_numbers=dims,
        preferred_element_type=jnp.float32)


def _layer_norm(h, g, b, eps):
    mu = jnp.mean(h, axis=-1, keepdims=True)
    var = jnp.mean(jnp.square(h - mu), axis=-1, keepdims=True)
    return (h - mu) * jax.lax.rsqrt(var + eps) * g + b


def _attention(q, k, v, w_o, b_o, nheads, nk_valid=None):
    """Multi-head attention + output projection.

    Per-head scores/softmax with static lane slices; the head outputs are
    concatenated along lanes (bf16) and the O-projection is ONE K=E matmul
    (fills the 256-deep MXU on v6e/v7x instead of nheads K=dh matmuls).
    """
    sq, e = q.shape
    sk = k.shape[0]
    dh = e // nheads
    scale = 1.0 / math.sqrt(dh)

    bias = None
    if nk_valid is not None and nk_valid < sk:
        col = jax.lax.broadcasted_iota(jnp.int32, (sq, sk), 1)
        bias = jnp.where(col < nk_valid, 0.0, _NEG).astype(jnp.float32)

    outs = []
    for h in range(nheads):                       # static unroll (small nheads)
        lo = h * dh
        s = _mm(q[:, lo:lo + dh], k[:, lo:lo + dh], transpose_b=True) * scale
        if bias is not None:
            s = s + bias
        m = jnp.max(s, axis=-1, keepdims=True)
        p = jnp.exp(s - m)
        p = p * pl.reciprocal(jnp.sum(p, axis=-1, keepdims=True), approx=True)
        outs.append(_mm(p, v[:, lo:lo + dh]).astype(jnp.bfloat16))   # (sq, dh)
    o = outs[0] if len(outs) == 1 else jnp.concatenate(outs, axis=-1)
    return _mm(o, w_o) + b_o                      # single (sq,E)@(E,E) O-proj


# ----------------------------- fused-stack kernels ---------------------------

def _encoder_stack_kernel(
        pos_ref, xf_ref,
        wqkv_ref, bqkv_ref, wo_ref, bo_ref,
        ln1_g_ref, ln1_b_ref,
        ff1_w_ref, ff1_b_ref, ff2_w_ref, ff2_b_ref,
        ln2_g_ref, ln2_b_ref,
        fin_g_ref, fin_b_ref,
        mem_ref,                     # output (S, E) bf16 — written at l==last
        act_ref,                     # scratch (S, E) f32 — VMEM-resident carry
        *, nheads, eps):
    l = pl.program_id(0)
    nl = pl.num_programs(0)

    @pl.when(l == 0)
    def _():                         # src embed fused into first layer step
        act_ref[...] = pos_ref[...] + 0.1 * xf_ref[...]

    x = act_ref[...]
    e = x.shape[-1]

    # fused QKV projection: one (S,E)@(E,3E) matmul
    qkv = _mm(x, wqkv_ref[0]) + bqkv_ref[0]
    q, k, v = qkv[:, :e], qkv[:, e:2 * e], qkv[:, 2 * e:]
    attn = _attention(q, k, v, wo_ref[0], bo_ref[0], nheads)
    h1 = _layer_norm(x + attn, ln1_g_ref[0], ln1_b_ref[0], eps)

    f = jnp.maximum(_mm(h1, ff1_w_ref[0]) + ff1_b_ref[0], 0.0)
    f = _mm(f, ff2_w_ref[0]) + ff2_b_ref[0]
    h2 = _layer_norm(h1 + f, ln2_g_ref[0], ln2_b_ref[0], eps)
    act_ref[...] = h2

    @pl.when(l == nl - 1)
    def _():                         # final encoder LayerNorm + bf16 cast
        mem_ref[...] = _layer_norm(
            h2, fin_g_ref[...], fin_b_ref[...], eps).astype(mem_ref.dtype)


def _decoder_stack_kernel(
        q0_ref, mem_ref,
        sa_wqkv_ref, sa_bqkv_ref, sa_wo_ref, sa_bo_ref,
        ln1_g_ref, ln1_b_ref,
        ca_wq_ref, ca_bq_ref, ca_wkv_ref, ca_bkv_ref, ca_wo_ref, ca_bo_ref,
        ln2_g_ref, ln2_b_ref,
        ff1_w_ref, ff1_b_ref, ff2_w_ref, ff2_b_ref,
        ln3_g_ref, ln3_b_ref,
        fin_g_ref, fin_b_ref, head_w_ref, head_b_ref,
        out_ref,                     # output (Sq_pad, P) f32 — written at last
        act_ref,                     # scratch (Sq_pad, E) f32 — carry
        *, nheads, eps, nq_valid, ncls):
    l = pl.program_id(0)
    nl = pl.num_programs(0)

    @pl.when(l == 0)
    def _():
        act_ref[...] = q0_ref[...]

    t = act_ref[...]
    e = t.shape[-1]
    mem = mem_ref[...]               # bf16, resident across all layers

    # --- self-attention (fused QKV, padded keys masked) ---
    qkv = _mm(t, sa_wqkv_ref[0]) + sa_bqkv_ref[0]
    q, k, v = qkv[:, :e], qkv[:, e:2 * e], qkv[:, 2 * e:]
    attn = _attention(q, k, v, sa_wo_ref[0], sa_bo_ref[0], nheads,
                      nk_valid=nq_valid)
    h1 = _layer_norm(t + attn, ln1_g_ref[0], ln1_b_ref[0], eps)

    # --- cross-attention (fused KV on memory) ---
    qc = _mm(h1, ca_wq_ref[0]) + ca_bq_ref[0]
    kv = _mm(mem, ca_wkv_ref[0]) + ca_bkv_ref[0]
    kc, vc = kv[:, :e], kv[:, e:]
    attn = _attention(qc, kc, vc, ca_wo_ref[0], ca_bo_ref[0], nheads)
    h2 = _layer_norm(h1 + attn, ln2_g_ref[0], ln2_b_ref[0], eps)

    # --- FFN ---
    f = jnp.maximum(_mm(h2, ff1_w_ref[0]) + ff1_b_ref[0], 0.0)
    f = _mm(f, ff2_w_ref[0]) + ff2_b_ref[0]
    h3 = _layer_norm(h2 + f, ln3_g_ref[0], ln3_b_ref[0], eps)
    act_ref[...] = h3

    @pl.when(l == nl - 1)
    def _():                         # final LN + fused cls/bbox heads
        dec = _layer_norm(h3, fin_g_ref[...], fin_b_ref[...], eps)
        y = _mm(dec, head_w_ref[...]) + head_b_ref[...]
        col = jax.lax.broadcasted_iota(jnp.int32, y.shape, 1)
        is_bbox = (col >= ncls) & (col < ncls + 4)
        out_ref[...] = jnp.where(is_bbox, jax.nn.sigmoid(y), y)


# ------------------------------- wrappers ------------------------------------

def _stacked_spec(shape):
    """(L, ...) weight stacked along the layer axis: stream block l."""
    ndim = len(shape)

    def idx(l):
        return (l,) + (0,) * (ndim - 1)

    return pl.BlockSpec((1,) + tuple(shape[1:]), idx)


def _const_spec(shape):
    """Same (full) block for every grid step (VMEM-resident)."""
    ndim = len(shape)

    def idx(l):
        return (0,) * ndim

    return pl.BlockSpec(tuple(shape), idx)


_ENC_KEYS = ("w_qkv", "b_qkv", "w_o", "b_o", "ln1_g", "ln1_b",
             "ff1_w", "ff1_b", "ff2_w", "ff2_b", "ln2_g", "ln2_b")

_DEC_KEYS = ("sa_w_qkv", "sa_b_qkv", "sa_w_o", "sa_b_o", "ln1_g", "ln1_b",
             "ca_w_q", "ca_b_q", "ca_w_kv", "ca_b_kv", "ca_w_o", "ca_b_o",
             "ln2_g", "ln2_b",
             "ff1_w", "ff1_b", "ff2_w", "ff2_b", "ln3_g", "ln3_b")


def encoder_stack(pos, xf, enc, norm_g, norm_b, nheads):
    s, e = pos.shape
    nl = enc["w_qkv"].shape[0]
    layer_args = [enc[k] for k in _ENC_KEYS]
    in_specs = ([_const_spec(pos.shape), _const_spec(xf.shape)]
                + [_stacked_spec(a.shape) for a in layer_args]
                + [_const_spec(norm_g.shape), _const_spec(norm_b.shape)])
    return pl.pallas_call(
        functools.partial(_encoder_stack_kernel, nheads=nheads, eps=_EPS),
        out_shape=jax.ShapeDtypeStruct((s, e), jnp.bfloat16),
        grid_spec=pltpu.PrefetchScalarGridSpec(
            num_scalar_prefetch=0,
            grid=(nl,),
            in_specs=in_specs,
            out_specs=_const_spec((s, e)),
            scratch_shapes=[pltpu.VMEM((s, e), jnp.float32)]),
        compiler_params=_compiler_params(),
    )(pos, xf, *layer_args, norm_g, norm_b)


def decoder_stack(q0, memory, dec, norm_g, norm_b, head_w, head_b,
                  nheads, nq_valid, ncls):
    sq, e = q0.shape
    p = head_w.shape[1]
    nl = dec["sa_w_qkv"].shape[0]
    layer_args = [dec[k] for k in _DEC_KEYS]
    in_specs = ([_const_spec(q0.shape), _const_spec(memory.shape)]
                + [_stacked_spec(a.shape) for a in layer_args]
                + [_const_spec(norm_g.shape), _const_spec(norm_b.shape),
                   _const_spec(head_w.shape), _const_spec(head_b.shape)])
    return pl.pallas_call(
        functools.partial(_decoder_stack_kernel, nheads=nheads, eps=_EPS,
                          nq_valid=nq_valid, ncls=ncls),
        out_shape=jax.ShapeDtypeStruct((sq, p), jnp.float32),
        grid_spec=pltpu.PrefetchScalarGridSpec(
            num_scalar_prefetch=0,
            grid=(nl,),
            in_specs=in_specs,
            out_specs=_const_spec((sq, p)),
            scratch_shapes=[pltpu.VMEM((sq, e), jnp.float32)]),
        compiler_params=_compiler_params(),
    )(q0, memory, *layer_args, norm_g, norm_b, head_w, head_b)


# ------------------------------ full forward ---------------------------------

def interpreter_forward(x, params, nheads):
    if isinstance(x, (list, tuple)):
        # TODO(synk): replace serial recursion with a batched grid axis.
        outs = [interpreter_forward(e[None], params, nheads) for e in x]
        cs, bs = zip(*outs)
        return jnp.concatenate(cs, axis=0), jnp.concatenate(bs, axis=0)

    b, e, h, w = x.shape
    assert b == 1, "nn.Transformer path requires batch=1 (tgt batch is 1)"

    half = e // 2
    col = params["col_embed"][:w]                                   # (W, E/2)
    row = params["row_embed"][:h]                                   # (H, E/2)
    pos = jnp.concatenate(
        [jnp.broadcast_to(col[None, :, :], (h, w, half)),
         jnp.broadcast_to(row[:, None, :], (h, w, half))],
        axis=-1).reshape(h * w, e).astype(jnp.float32)              # (HW, E)
    xf = x[0].reshape(e, h * w).T.astype(jnp.float32)               # (HW, E)

    # --- encoder stack: one fused pallas_call (grid over layers) ---
    memory = encoder_stack(pos, xf, params["enc"],
                           params["enc_norm_g"], params["enc_norm_b"], nheads)

    # --- decoder stack (queries padded 100 -> 128 for lane/sublane density) ---
    nq = params["query_pos"].shape[0]
    nq_pad = 128 * math.ceil(nq / 128)
    qpad = jnp.concatenate(
        [params["query_pos"].astype(jnp.float32),
         jnp.zeros((nq_pad - nq, e), jnp.float32)], axis=0)

    ncls = params["num_class_logits"]
    y = decoder_stack(qpad, memory, params["dec"],
                      params["dec_norm_g"], params["dec_norm_b"],
                      params["head_w"], params["head_b"],
                      nheads, nq_valid=nq, ncls=ncls)

    cls_logits = y[:nq, :ncls]
    bboxes = y[:nq, ncls:ncls + 4]
    return cls_logits[None], bboxes[None]                           # add batch


# ---------------------------- deterministic init -----------------------------

def init_params(key, num_classes, hidden_dim, num_enc, num_dec, dim_ff):
    keys = iter(jax.random.split(key, 1024))

    def nk():
        return next(keys)

    def dense(din, dout, scale=0.05):
        w = (jax.random.normal(nk(), (din, dout), jnp.float32) * scale)
        return w.astype(jnp.bfloat16), jnp.zeros((1, dout), jnp.float32)

    def ln():
        return (jnp.ones((1, hidden_dim), jnp.float32),
                jnp.zeros((1, hidden_dim), jnp.float32))

    def enc_layer():
        wqkv, bqkv = dense(hidden_dim, 3 * hidden_dim)
        wo, bo = dense(hidden_dim, hidden_dim)
        g1, b1 = ln()
        g2, b2 = ln()
        f1w, f1b = dense(hidden_dim, dim_ff)
        f2w, f2b = dense(dim_ff, hidden_dim)
        return dict(w_qkv=wqkv, b_qkv=bqkv, w_o=wo, b_o=bo,
                    ln1_g=g1, ln1_b=b1,
                    ff1_w=f1w, ff1_b=f1b, ff2_w=f2w, ff2_b=f2b,
                    ln2_g=g2, ln2_b=b2)

    def dec_layer():
        sa_wqkv, sa_bqkv = dense(hidden_dim, 3 * hidden_dim)
        sa_wo, sa_bo = dense(hidden_dim, hidden_dim)
        ca_wq, ca_bq = dense(hidden_dim, hidden_dim)
        ca_wkv, ca_bkv = dense(hidden_dim, 2 * hidden_dim)
        ca_wo, ca_bo = dense(hidden_dim, hidden_dim)
        g1, b1 = ln()
        g2, b2 = ln()
        g3, b3 = ln()
        f1w, f1b = dense(hidden_dim, dim_ff)
        f2w, f2b = dense(dim_ff, hidden_dim)
        return dict(sa_w_qkv=sa_wqkv, sa_b_qkv=sa_bqkv, sa_w_o=sa_wo,
                    sa_b_o=sa_bo, ln1_g=g1, ln1_b=b1,
                    ca_w_q=ca_wq, ca_b_q=ca_bq, ca_w_kv=ca_wkv, ca_b_kv=ca_bkv,
                    ca_w_o=ca_wo, ca_b_o=ca_bo, ln2_g=g2, ln2_b=b2,
                    ff1_w=f1w, ff1_b=f1b, ff2_w=f2w, ff2_b=f2b,
                    ln3_g=g3, ln3_b=b3)

    def stack(layers):
        return {k: jnp.stack([lyr[k] for lyr in layers], axis=0)
                for k in layers[0]}

    enc = stack([enc_layer() for _ in range(num_enc)])
    dec = stack([dec_layer() for _ in range(num_dec)])
    enc_ng, enc_nb = ln()
    dec_ng, dec_nb = ln()

    # fused, lane-dense detection head: [cls | bbox | zero-pad] -> width % 128 == 0
    ncls = num_classes + 1
    cls_w, _ = dense(hidden_dim, ncls)
    bbox_w, _ = dense(hidden_dim, 4)
    head_width = 128 * math.ceil((ncls + 4) / 128)
    pad = head_width - (ncls + 4)
    head_w = jnp.concatenate(
        [cls_w, bbox_w, jnp.zeros((hidden_dim, pad), jnp.bfloat16)], axis=1)
    head_b = jnp.zeros((1, head_width), jnp.float32)

    query_pos = jax.random.uniform(nk(), (100, hidden_dim), jnp.float32)
    row_embed = jax.random.uniform(nk(), (50, hidden_dim // 2), jnp.float32)
    col_embed = jax.random.uniform(nk(), (50, hidden_dim // 2), jnp.float32)

    return dict(enc=enc, dec=dec,
                enc_norm_g=enc_ng, enc_norm_b=enc_nb,
                dec_norm_g=dec_ng, dec_norm_b=dec_nb,
                head_w=head_w, head_b=head_b, num_class_logits=ncls,
                query_pos=query_pos, row_embed=row_embed, col_embed=col_embed)


# ----------------------------------- main ------------------------------------

if __name__ == "__main__":
    # Small but lane-dense configuration (module defaults 256/8/6/6/2048;
    # layers / FFN scaled down for a quick synthetic test; nheads chosen so
    # dh = 128 keeps every in-kernel lane slice tile-aligned; H*W = 128 so
    # the encoder sequence is lane/sublane dense too).
    num_classes = 5
    hidden_dim = 256
    nheads = 2
    num_encoder_layers = 2
    num_decoder_layers = 2
    dim_feedforward = 512
    H, W = 8, 16

    key = jax.random.PRNGKey(0)
    kp, kx = jax.random.split(key)
    params = init_params(kp, num_classes, hidden_dim,
                         num_encoder_layers, num_decoder_layers,
                         dim_feedforward)

    # x is the backbone feature map the module's forward consumes: NCHW.
    x = jax.random.normal(kx, (1, hidden_dim, H, W), jnp.float32)

    cls_logits, bboxes = interpreter_forward(x, params, nheads)
    jax.block_until_ready((cls_logits, bboxes))

    assert cls_logits.shape == (1, 100, num_classes + 1), cls_logits.shape
    assert bboxes.shape == (1, 100, 4), bboxes.shape
    assert bool(jnp.all(jnp.isfinite(cls_logits)))
    assert bool(jnp.all((bboxes >= 0.0) & (bboxes <= 1.0)))

    print("KERNEL_OK")
</pallas_src>

<mosaic_0001>
module attributes {stable_mosaic.version = 11 : i64} {
  func.func @_encoder_stack_kernel(%arg0: i32, %arg1: memref<128x256xf32, #tpu.memory_space<vmem>>, %arg2: memref<128x256xf32, #tpu.memory_space<vmem>>, %arg3: memref<1x256x768xbf16, #tpu.memory_space<vmem>>, %arg4: memref<1x1x768xf32, #tpu.memory_space<vmem>>, %arg5: memref<1x256x256xbf16, #tpu.memory_space<vmem>>, %arg6: memref<1x1x256xf32, #tpu.memory_space<vmem>>, %arg7: memref<1x1x256xf32, #tpu.memory_space<vmem>>, %arg8: memref<1x1x256xf32, #tpu.memory_space<vmem>>, %arg9: memref<1x256x512xbf16, #tpu.memory_space<vmem>>, %arg10: memref<1x1x512xf32, #tpu.memory_space<vmem>>, %arg11: memref<1x512x256xbf16, #tpu.memory_space<vmem>>, %arg12: memref<1x1x256xf32, #tpu.memory_space<vmem>>, %arg13: memref<1x1x256xf32, #tpu.memory_space<vmem>>, %arg14: memref<1x1x256xf32, #tpu.memory_space<vmem>>, %arg15: memref<1x256xf32, #tpu.memory_space<vmem>>, %arg16: memref<1x256xf32, #tpu.memory_space<vmem>>, %arg17: memref<128x256xbf16, #tpu.memory_space<vmem>>, %arg18: memref<128x256xf32, #tpu.memory_space<vmem>>) attributes {dimension_semantics = [#tpu.dimension_semantics<arbitrary>], iteration_bounds = array<i64: 2>, scalar_prefetch = 0 : i64, scratch_operands = 1 : i64, tpu.core_type = #tpu.core_type<tc>, window_params = [{pipeline_mode = #tpu.pipeline_mode<synchronous>, transform_indices = @transform_0, window_bounds = array<i64: 128, 256>}, {pipeline_mode = #tpu.pipeline_mode<synchronous>, transform_indices = @transform_1, window_bounds = array<i64: 128, 256>}, {transform_indices = @transform_2, window_bounds = array<i64: 1, 256, 768>}, {transform_indices = @transform_3, window_bounds = array<i64: 1, 1, 768>}, {transform_indices = @transform_4, window_bounds = array<i64: 1, 256, 256>}, {transform_indices = @transform_5, window_bounds = array<i64: 1, 1, 256>}, {transform_indices = @transform_6, window_bounds = array<i64: 1, 1, 256>}, {transform_indices = @transform_7, window_bounds = array<i64: 1, 1, 256>}, {transform_indices = @transform_8, window_bounds = array<i64: 1, 256, 512>}, {transform_indices = @transform_9, window_bounds = array<i64: 1, 1, 512>}, {transform_indices = @transform_10, window_bounds = array<i64: 1, 512, 256>}, {transform_indices = @transform_11, window_bounds = array<i64: 1, 1, 256>}, {transform_indices = @transform_12, window_bounds = array<i64: 1, 1, 256>}, {transform_indices = @transform_13, window_bounds = array<i64: 1, 1, 256>}, {pipeline_mode = #tpu.pipeline_mode<synchronous>, transform_indices = @transform_14, window_bounds = array<i64: 1, 256>}, {pipeline_mode = #tpu.pipeline_mode<synchronous>, transform_indices = @transform_15, window_bounds = array<i64: 1, 256>}, {pipeline_mode = #tpu.pipeline_mode<synchronous>, transform_indices = @transform_16, window_bounds = array<i64: 128, 256>}]} {
    %c0_i32 = arith.constant 0 : i32
    %0 = arith.cmpi eq, %arg0, %c0_i32 : i32
    %1 = arith.extui %0 : i1 to i32
    %c0_i32_0 = arith.constant 0 : i32
    %2 = arith.cmpi ne, %1, %c0_i32_0 : i32
    scf.if %2 {
      %c0_65 = arith.constant 0 : index
      %c0_66 = arith.constant 0 : index
      %143 = vector.load %arg1[%c0_65, %c0_66] : memref<128x256xf32, #tpu.memory_space<vmem>>, vector<128x256xf32>
      %c0_67 = arith.constant 0 : index
      %c0_68 = arith.constant 0 : index
      %144 = vector.load %arg2[%c0_67, %c0_68] : memref<128x256xf32, #tpu.memory_space<vmem>>, vector<128x256xf32>
      %cst_69 = arith.constant 1.000000e-01 : f32
      %145 = vector.broadcast %cst_69 : f32 to vector<128x256xf32>
      %146 = arith.mulf %145, %144 : vector<128x256xf32>
      %147 = arith.addf %143, %146 : vector<128x256xf32>
      %c0_70 = arith.constant 0 : index
      %c0_71 = arith.constant 0 : index
      %148 = vector.load %arg18[%c0_70, %c0_71] : memref<128x256xf32, #tpu.memory_space<vmem>>, vector<128x256xf32>
      tpu.vector_store %arg18[%c0_70, %c0_71], %147 {strides = array<i32>} : memref<128x256xf32, #tpu.memory_space<vmem>>, vector<128x256xf32>,
    } else {
    }
    %c0 = arith.constant 0 : index
    %c0_1 = arith.constant 0 : index
    %3 = vector.load %arg18[%c0, %c0_1] : memref<128x256xf32, #tpu.memory_space<vmem>>, vector<128x256xf32>
    %c0_2 = arith.constant 0 : index
    %c0_3 = arith.constant 0 : index
    %c0_4 = arith.constant 0 : index
    %4 = vector.load %arg3[%c0_2, %c0_3, %c0_4] : memref<1x256x768xbf16, #tpu.memory_space<vmem>>, vector<1x256x768xbf16>
    %5 = vector.shape_cast %4 : vector<1x256x768xbf16> to vector<256x768xbf16>
    %6 = arith.truncf %3 : vector<128x256xf32> to vector<128x256xbf16>
    %cst = arith.constant dense<0.000000e+00> : vector<128x768xf32>
    %7 = tpu.matmul %6, %5, %cst {dimension_numbers = #tpu.dot_dimension_numbers<[1], [0], [0], [1], [0, 0, 1, 1], [], []>} : vector<128x256xbf16>, vector<256x768xbf16>, vector<128x768xf32> -> vector<128x768xf32>
    %c0_5 = arith.constant 0 : index
    %c0_6 = arith.constant 0 : index
    %c0_7 = arith.constant 0 : index
    %8 = vector.load %arg4[%c0_5, %c0_6, %c0_7] : memref<1x1x768xf32, #tpu.memory_space<vmem>>, vector<1x1x768xf32>
    %9 = vector.shape_cast %8 : vector<1x1x768xf32> to vector<1x768xf32>
    %10 = vector.broadcast %9 : vector<1x768xf32> to vector<128x768xf32>
    %11 = arith.addf %7, %10 : vector<128x768xf32>
    %12 = vector.extract_strided_slice %11 {offsets = [0, 0], sizes = [128, 256], strides = [1, 1]} : vector<128x768xf32> to vector<128x256xf32>
    %13 = vector.extract_strided_slice %11 {offsets = [0, 256], sizes = [128, 256], strides = [1, 1]} : vector<128x768xf32> to vector<128x256xf32>
    %14 = vector.extract_strided_slice %11 {offsets = [0, 512], sizes = [128, 256], strides = [1, 1]} : vector<128x768xf32> to vector<128x256xf32>
    %c0_8 = arith.constant 0 : index
    %c0_9 = arith.constant 0 : index
    %c0_10 = arith.constant 0 : index
    %15 = vector.load %arg5[%c0_8, %c0_9, %c0_10] : memref<1x256x256xbf16, #tpu.memory_space<vmem>>, vector<1x256x256xbf16>
    %16 = vector.shape_cast %15 : vector<1x256x256xbf16> to vector<256x256xbf16>
    %c0_11 = arith.constant 0 : index
    %c0_12 = arith.constant 0 : index
    %c0_13 = arith.constant 0 : index
    %17 = vector.load %arg6[%c0_11, %c0_12, %c0_13] : memref<1x1x256xf32, #tpu.memory_space<vmem>>, vector<1x1x256xf32>
    %18 = vector.shape_cast %17 : vector<1x1x256xf32> to vector<1x256xf32>
    %19 = vector.extract_strided_slice %12 {offsets = [0, 0], sizes = [128, 128], strides = [1, 1]} : vector<128x256xf32> to vector<128x128xf32>
    %20 = vector.extract_strided_slice %13 {offsets = [0, 0], sizes = [128, 128], strides = [1, 1]} : vector<128x256xf32> to vector<128x128xf32>
    %21 = arith.truncf %19 : vector<128x128xf32> to vector<128x128xbf16>
    %22 = arith.truncf %20 : vector<128x128xf32> to vector<128x128xbf16>
    %cst_14 = arith.constant dense<0.000000e+00> : vector<128x128xf32>
    %23 = tpu.matmul %21, %22, %cst_14 {dimension_numbers = #tpu.dot_dimension_numbers<[1], [1], [0], [0], [0, 0, 1, 0], [], []>} : vector<128x128xbf16>, vector<128x128xbf16>, vector<128x128xf32> -> vector<128x128xf32>
    %cst_15 = arith.constant 0.0883883461 : f32
    %24 = vector.broadcast %cst_15 : f32 to vector<128x128xf32>
    %25 = arith.mulf %23, %24 : vector<128x128xf32>
    %cst_16 = arith.constant dense<0xFF800000> : vector<128xf32>
    %26 = vector.multi_reduction <maximumf>, %25, %cst_16 [1] : vector<128x128xf32> to vector<128xf32>
    %27 = vector.shape_cast %26 : vector<128xf32> to vector<128x1xf32>
    %28 = vector.broadcast %27 : vector<128x1xf32> to vector<128x128xf32>
    %29 = arith.subf %25, %28 : vector<128x128xf32>
    %30 = math.exp %29 : vector<128x128xf32>
    %cst_17 = arith.constant dense<0.000000e+00> : vector<128xf32>
    %31 = vector.multi_reduction <add>, %30, %cst_17 [1] : vector<128x128xf32> to vector<128xf32>
    %32 = vector.shape_cast %31 : vector<128xf32> to vector<128x1xf32>
    %33 = tpu.reciprocal %32 {approx = true} : vector<128x1xf32> -> vector<128x1xf32>
    %34 = vector.broadcast %33 : vector<128x1xf32> to vector<128x128xf32>
    %35 = arith.mulf %30, %34 : vector<128x128xf32>
    %36 = vector.extract_strided_slice %14 {offsets = [0, 0], sizes = [128, 128], strides = [1, 1]} : vector<128x256xf32> to vector<128x128xf32>
    %37 = arith.truncf %35 : vector<128x128xf32> to vector<128x128xbf16>
    %38 = arith.truncf %36 : vector<128x128xf32> to vector<128x128xbf16>
    %cst_18 = arith.constant dense<0.000000e+00> : vector<128x128xf32>
    %39 = tpu.matmul %37, %38, %cst_18 {dimension_numbers = #tpu.dot_dimension_numbers<[1], [0], [0], [1], [0, 0, 1, 1], [], []>} : vector<128x128xbf16>, vector<128x128xbf16>, vector<128x128xf32> -> vector<128x128xf32>
    %40 = arith.truncf %39 : vector<128x128xf32> to vector<128x128xbf16>
    %41 = vector.extract_strided_slice %12 {offsets = [0, 128], sizes = [128, 128], strides = [1, 1]} : vector<128x256xf32> to vector<128x128xf32>
    %42 = vector.extract_strided_slice %13 {offsets = [0, 128], sizes = [128, 128], strides = [1, 1]} : vector<128x256xf32> to vector<128x128xf32>
    %43 = arith.truncf %41 : vector<128x128xf32> to vector<128x128xbf16>
    %44 = arith.truncf %42 : vector<128x128xf32> to vector<128x128xbf16>
    %cst_19 = arith.constant dense<0.000000e+00> : vector<128x128xf32>
    %45 = tpu.matmul %43, %44, %cst_19 {dimension_numbers = #tpu.dot_dimension_numbers<[1], [1], [0], [0], [0, 0, 1, 0], [], []>} : vector<128x128xbf16>, vector<128x128xbf16>, vector<128x128xf32> -> vector<128x128xf32>
    %cst_20 = arith.constant 0.0883883461 : f32
    %46 = vector.broadcast %cst_20 : f32 to vector<128x128xf32>
    %47 = arith.mulf %45, %46 : vector<128x128xf32>
    %cst_21 = arith.constant dense<0xFF800000> : vector<128xf32>
    %48 = vector.multi_reduction <maximumf>, %47, %cst_21 [1] : vector<128x128xf32> to vector<128xf32>
    %49 = vector.shape_cast %48 : vector<128xf32> to vector<128x1xf32>
    %50 = vector.broadcast %49 : vector<128x1xf32> to vector<128x128xf32>
    %51 = arith.subf %47, %50 : vector<128x128xf32>
    %52 = math.exp %51 : vector<128x128xf32>
    %cst_22 = arith.constant dense<0.000000e+00> : vector<128xf32>
    %53 = vector.multi_reduction <add>, %52, %cst_22 [1] : vector<128x128xf32> to vector<128xf32>
    %54 = vector.shape_cast %53 : vector<128xf32> to vector<128x1xf32>
    %55 = tpu.reciprocal %54 {approx = true} : vector<128x1xf32> -> vector<128x1xf32>
    %56 = vector.broadcast %55 : vector<128x1xf32> to vector<128x128xf32>
    %57 = arith.mulf %52, %56 : vector<128x128xf32>
    %58 = vector.extract_strided_slice %14 {offsets = [0, 128], sizes = [128, 128], strides = [1, 1]} : vector<128x256xf32> to vector<128x128xf32>
    %59 = arith.truncf %57 : vector<128x128xf32> to vector<128x128xbf16>
    %60 = arith.truncf %58 : vector<128x128xf32> to vector<128x128xbf16>
    %cst_23 = arith.constant dense<0.000000e+00> : vector<128x128xf32>
    %61 = tpu.matmul %59, %60, %cst_23 {dimension_numbers = #tpu.dot_dimension_numbers<[1], [0], [0], [1], [0, 0, 1, 1], [], []>} : vector<128x128xbf16>, vector<128x128xbf16>, vector<128x128xf32> -> vector<128x128xf32>
    %62 = arith.truncf %61 : vector<128x128xf32> to vector<128x128xbf16>
    %63 = tpu.concatenate %40, %62 in 1 : vector<128x128xbf16>, vector<128x128xbf16> -> vector<128x256xbf16>
    %cst_24 = arith.constant dense<0.000000e+00> : vector<128x256xf32>
    %64 = tpu.matmul %63, %16, %cst_24 {dimension_numbers = #tpu.dot_dimension_numbers<[1], [0], [0], [1], [0, 0, 1, 1], [], []>} : vector<128x256xbf16>, vector<256x256xbf16>, vector<128x256xf32> -> vector<128x256xf32>
    %65 = vector.broadcast %18 : vector<1x256xf32> to vector<128x256xf32>
    %66 = arith.addf %64, %65 : vector<128x256xf32>
    %67 = arith.addf %3, %66 : vector<128x256xf32>
    %c0_25 = arith.constant 0 : index
    %c0_26 = arith.constant 0 : index
    %c0_27 = arith.constant 0 : index
    %68 = vector.load %arg7[%c0_25, %c0_26, %c0_27] : memref<1x1x256xf32, #tpu.memory_space<vmem>>, vector<1x1x256xf32>
    %69 = vector.shape_cast %68 : vector<1x1x256xf32> to vector<1x256xf32>
    %c0_28 = arith.constant 0 : index
    %c0_29 = arith.constant 0 : index
    %c0_30 = arith.constant 0 : index
    %70 = vector.load %arg8[%c0_28, %c0_29, %c0_30] : memref<1x1x256xf32, #tpu.memory_space<vmem>>, vector<1x1x256xf32>
    %71 = vector.shape_cast %70 : vector<1x1x256xf32> to vector<1x256xf32>
    %cst_31 = arith.constant dense<0.000000e+00> : vector<128xf32>
    %72 = vector.multi_reduction <add>, %67, %cst_31 [1] : vector<128x256xf32> to vector<128xf32>
    %73 = vector.shape_cast %72 : vector<128xf32> to vector<128x1xf32>
    %cst_32 = arith.constant 2.560000e+02 : f32
    %74 = vector.broadcast %cst_32 : f32 to vector<128x1xf32>
    %75 = arith.divf %73, %74 : vector<128x1xf32>
    %76 = vector.broadcast %75 : vector<128x1xf32> to vector<128x256xf32>
    %77 = arith.subf %67, %76 : vector<128x256xf32>
    %78 = arith.mulf %77, %77 : vector<128x256xf32>
    %cst_33 = arith.constant dense<0.000000e+00> : vector<128xf32>
    %79 = vector.multi_reduction <add>, %78, %cst_33 [1] : vector<128x256xf32> to vector<128xf32>
    %80 = vector.shape_cast %79 : vector<128xf32> to vector<128x1xf32>
    %cst_34 = arith.constant 2.560000e+02 : f32
    %81 = vector.broadcast %cst_34 : f32 to vector<128x1xf32>
    %82 = arith.divf %80, %81 : vector<128x1xf32>
    %83 = vector.broadcast %75 : vector<128x1xf32> to vector<128x256xf32>
    %84 = arith.subf %67, %83 : vector<128x256xf32>
    %cst_35 = arith.constant 9.99999974E-6 : f32
    %85 = vector.broadcast %cst_35 : f32 to vector<128x1xf32>
    %86 = arith.addf %82, %85 : vector<128x1xf32>
    %87 = math.rsqrt %86 : vector<128x1xf32>
    %88 = vector.broadcast %87 : vector<128x1xf32> to vector<128x256xf32>
    %89 = arith.mulf %84, %88 : vector<128x256xf32>
    %90 = vector.broadcast %69 : vector<1x256xf32> to vector<128x256xf32>
    %91 = arith.mulf %89, %90 : vector<128x256xf32>
    %92 = vector.broadcast %71 : vector<1x256xf32> to vector<128x256xf32>
    %93 = arith.addf %91, %92 : vector<128x256xf32>
    %c0_36 = arith.constant 0 : index
    %c0_37 = arith.constant 0 : index
    %c0_38 = arith.constant 0 : index
    %94 = vector.load %arg9[%c0_36, %c0_37, %c0_38] : memref<1x256x512xbf16, #tpu.memory_space<vmem>>, vector<1x256x512xbf16>
    %95 = vector.shape_cast %94 : vector<1x256x512xbf16> to vector<256x512xbf16>
    %96 = arith.truncf %93 : vector<128x256xf32> to vector<128x256xbf16>
    %cst_39 = arith.constant dense<0.000000e+00> : vector<128x512xf32>
    %97 = tpu.matmul %96, %95, %cst_39 {dimension_numbers = #tpu.dot_dimension_numbers<[1], [0], [0], [1], [0, 0, 1, 1], [], []>} : vector<128x256xbf16>, vector<256x512xbf16>, vector<128x512xf32> -> vector<128x512xf32>
    %c0_40 = arith.constant 0 : index
    %c0_41 = arith.constant 0 : index
    %c0_42 = arith.constant 0 : index
    %98 = vector.load %arg10[%c0_40, %c0_41, %c0_42] : memref<1x1x512xf32, #tpu.memory_space<vmem>>, vector<1x1x512xf32>
    %99 = vector.shape_cast %98 : vector<1x1x512xf32> to vector<1x512xf32>
    %100 = vector.broadcast %99 : vector<1x512xf32> to vector<128x512xf32>
    %101 = arith.addf %97, %100 : vector<128x512xf32>
    %cst_43 = arith.constant 0.000000e+00 : f32
    %102 = vector.broadcast %cst_43 : f32 to vector<128x512xf32>
    %103 = arith.maximumf %101, %102 : vector<128x512xf32>
    %c0_44 = arith.constant 0 : index
    %c0_45 = arith.constant 0 : index
    %c0_46 = arith.constant 0 : index
    %104 = vector.load %arg11[%c0_44, %c0_45, %c0_46] : memref<1x512x256xbf16, #tpu.memory_space<vmem>>, vector<1x512x256xbf16>
    %105 = vector.shape_cast %104 : vector<1x512x256xbf16> to vector<512x256xbf16>
    %106 = arith.truncf %103 : vector<128x512xf32> to vector<128x512xbf16>
    %cst_47 = arith.constant dense<0.000000e+00> : vector<128x256xf32>
    %107 = tpu.matmul %106, %105, %cst_47 {dimension_numbers = #tpu.dot_dimension_numbers<[1], [0], [0], [1], [0, 0, 1, 1], [], []>} : vector<128x512xbf16>, vector<512x256xbf16>, vector<128x256xf32> -> vector<128x256xf32>
    %c0_48 = arith.constant 0 : index
    %c0_49 = arith.constant 0 : index
    %c0_50 = arith.constant 0 : index
    %108 = vector.load %arg12[%c0_48, %c0_49, %c0_50] : memref<1x1x256xf32, #tpu.memory_space<vmem>>, vector<1x1x256xf32>
    %109 = vector.shape_cast %108 : vector<1x1x256xf32> to vector<1x256xf32>
    %110 = vector.broadcast %109 : vector<1x256xf32> to vector<128x256xf32>
    %111 = arith.addf %107, %110 : vector<128x256xf32>
    %112 = arith.addf %93, %111 : vector<128x256xf32>
    %c0_51 = arith.constant 0 : index
    %c0_52 = arith.constant 0 : index
    %c0_53 = arith.constant 0 : index
    %113 = vector.load %arg13[%c0_51, %c0_52, %c0_53] : memref<1x1x256xf32, #tpu.memory_space<vmem>>, vector<1x1x256xf32>
    %114 = vector.shape_cast %113 : vector<1x1x256xf32> to vector<1x256xf32>
    %c0_54 = arith.constant 0 : index
    %c0_55 = arith.constant 0 : index
    %c0_56 = arith.constant 0 : index
    %115 = vector.load %arg14[%c0_54, %c0_55, %c0_56] : memref<1x1x256xf32, #tpu.memory_space<vmem>>, vector<1x1x256xf32>
    %116 = vector.shape_cast %115 : vector<1x1x256xf32> to vector<1x256xf32>
    %cst_57 = arith.constant dense<0.000000e+00> : vector<128xf32>
    %117 = vector.multi_reduction <add>, %112, %cst_57 [1] : vector<128x256xf32> to vector<128xf32>
    %118 = vector.shape_cast %117 : vector<128xf32> to vector<128x1xf32>
    %cst_58 = arith.constant 2.560000e+02 : f32
    %119 = vector.broadcast %cst_58 : f32 to vector<128x1xf32>
    %120 = arith.divf %118, %119 : vector<128x1xf32>
    %121 = vector.broadcast %120 : vector<128x1xf32> to vector<128x256xf32>
    %122 = arith.subf %112, %121 : vector<128x256xf32>
    %123 = arith.mulf %122, %122 : vector<128x256xf32>
    %cst_59 = arith.constant dense<0.000000e+00> : vector<128xf32>
    %124 = vector.multi_reduction <add>, %123, %cst_59 [1] : vector<128x256xf32> to vector<128xf32>
    %125 = vector.shape_cast %124 : vector<128xf32> to vector<128x1xf32>
    %cst_60 = arith.constant 2.560000e+02 : f32
    %126 = vector.broadcast %cst_60 : f32 to vector<128x1xf32>
    %127 = arith.divf %125, %126 : vector<128x1xf32>
    %128 = vector.broadcast %120 : vector<128x1xf32> to vector<128x256xf32>
    %129 = arith.subf %112, %128 : vector<128x256xf32>
    %cst_61 = arith.constant 9.99999974E-6 : f32
    %130 = vector.broadcast %cst_61 : f32 to vector<128x1xf32>
    %131 = arith.addf %127, %130 : vector<128x1xf32>
    %132 = math.rsqrt %131 : vector<128x1xf32>
    %133 = vector.broadcast %132 : vector<128x1xf32> to vector<128x256xf32>
    %134 = arith.mulf %129, %133 : vector<128x256xf32>
    %135 = vector.broadcast %114 : vector<1x256xf32> to vector<128x256xf32>
    %136 = arith.mulf %134, %135 : vector<128x256xf32>
    %137 = vector.broadcast %116 : vector<1x256xf32> to vector<128x256xf32>
    %138 = arith.addf %136, %137 : vector<128x256xf32>
    %c0_62 = arith.constant 0 : index
    %c0_63 = arith.constant 0 : index
    %139 = vector.load %arg18[%c0_62, %c0_63] : memref<128x256xf32, #tpu.memory_space<vmem>>, vector<128x256xf32>
    tpu.vector_store %arg18[%c0_62, %c0_63], %138 {strides = array<i32>} : memref<128x256xf32, #tpu.memory_space<vmem>>, vector<128x256xf32>,
    %c1_i32 = arith.constant 1 : i32
    %140 = arith.cmpi eq, %arg0, %c1_i32 : i32
    %141 = arith.extui %140 : i1 to i32
    %c0_i32_64 = arith.constant 0 : i32
    %142 = arith.cmpi ne, %141, %c0_i32_64 : i32
    scf.if %142 {
      %c0_65 = arith.constant 0 : index
      %c0_66 = arith.constant 0 : index
      %143 = vector.load %arg15[%c0_65, %c0_66] : memref<1x256xf32, #tpu.memory_space<vmem>>, vector<1x256xf32>
      %c0_67 = arith.constant 0 : index
      %c0_68 = arith.constant 0 : index
      %144 = vector.load %arg16[%c0_67, %c0_68] : memref<1x256xf32, #tpu.memory_space<vmem>>, vector<1x256xf32>
      %cst_69 = arith.constant dense<0.000000e+00> : vector<128xf32>
      %145 = vector.multi_reduction <add>, %138, %cst_69 [1] : vector<128x256xf32> to vector<128xf32>
      %146 = vector.shape_cast %145 : vector<128xf32> to vector<128x1xf32>
      %cst_70 = arith.constant 2.560000e+02 : f32
      %147 = vector.broadcast %cst_70 : f32 to vector<128x1xf32>
      %148 = arith.divf %146, %147 : vector<128x1xf32>
      %149 = vector.broadcast %148 : vector<128x1xf32> to vector<128x256xf32>
      %150 = arith.subf %138, %149 : vector<128x256xf32>
      %151 = arith.mulf %150, %150 : vector<128x256xf32>
      %cst_71 = arith.constant dense<0.000000e+00> : vector<128xf32>
      %152 = vector.multi_reduction <add>, %151, %cst_71 [1] : vector<128x256xf32> to vector<128xf32>
      %153 = vector.shape_cast %152 : vector<128xf32> to vector<128x1xf32>
      %cst_72 = arith.constant 2.560000e+02 : f32
      %154 = vector.broadcast %cst_72 : f32 to vector<128x1xf32>
      %155 = arith.divf %153, %154 : vector<128x1xf32>
      %156 = vector.broadcast %148 : vector<128x1xf32> to vector<128x256xf32>
      %157 = arith.subf %138, %156 : vector<128x256xf32>
      %cst_73 = arith.constant 9.99999974E-6 : f32
      %158 = vector.broadcast %cst_73 : f32 to vector<128x1xf32>
      %159 = arith.addf %155, %158 : vector<128x1xf32>
      %160 = math.rsqrt %159 : vector<128x1xf32>
      %161 = vector.broadcast %160 : vector<128x1xf32> to vector<128x256xf32>
      %162 = arith.mulf %157, %161 : vector<128x256xf32>
      %163 = vector.broadcast %143 : vector<1x256xf32> to vector<128x256xf32>
      %164 = arith.mulf %162, %163 : vector<128x256xf32>
      %165 = vector.broadcast %144 : vector<1x256xf32> to vector<128x256xf32>
      %166 = arith.addf %164, %165 : vector<128x256xf32>
      %167 = arith.truncf %166 : vector<128x256xf32> to vector<128x256xbf16>
      %c0_74 = arith.constant 0 : index
      %c0_75 = arith.constant 0 : index
      %168 = vector.load %arg17[%c0_74, %c0_75] : memref<128x256xbf16, #tpu.memory_space<vmem>>, vector<128x256xbf16>
      tpu.vector_store %arg17[%c0_74, %c0_75], %167 {strides = array<i32>} : memref<128x256xbf16, #tpu.memory_space<vmem>>, vector<128x256xbf16>,
    } else {
    }
    return
  }
  func.func @transform_0(%arg0: i32) -> (i32, i32) {
    %c0_i32 = arith.constant 0 : i32
    %c0_i32_0 = arith.constant 0 : i32
    %c0_i32_1 = arith.constant 0 : i32
    return %c0_i32, %c0_i32_0 : i32, i32
  }
  func.func @transform_1(%arg0: i32) -> (i32, i32) {
    %c0_i32 = arith.constant 0 : i32
    %c0_i32_0 = arith.constant 0 : i32
    %c0_i32_1 = arith.constant 0 : i32
    return %c0_i32, %c0_i32_0 : i32, i32
  }
  func.func @transform_2(%arg0: i32) -> (i32, i32, i32) {
    %c0_i32 = arith.constant 0 : i32
    %c0_i32_0 = arith.constant 0 : i32
    %c0_i32_1 = arith.constant 0 : i32
    return %arg0, %c0_i32, %c0_i32_0 : i32, i32, i32
  }
  func.func @transform_3(%arg0: i32) -> (i32, i32, i32) {
    %c0_i32 = arith.constant 0 : i32
    %c0_i32_0 = arith.constant 0 : i32
    %c0_i32_1 = arith.constant 0 : i32
    return %arg0, %c0_i32, %c0_i32_0 : i32, i32, i32
  }
  func.func @transform_4(%arg0: i32) -> (i32, i32, i32) {
    %c0_i32 = arith.constant 0 : i32
    %c0_i32_0 = arith.constant 0 : i32
    %c0_i32_1 = arith.constant 0 : i32
    return %arg0, %c0_i32, %c0_i32_0 : i32, i32, i32
  }
  func.func @transform_5(%arg0: i32) -> (i32, i32, i32) {
    %c0_i32 = arith.constant 0 : i32
    %c0_i32_0 = arith.constant 0 : i32
    %c0_i32_1 = arith.constant 0 : i32
    return %arg0, %c0_i32, %c0_i32_0 : i32, i32, i32
  }
  func.func @transform_6(%arg0: i32) -> (i32, i32, i32) {
    %c0_i32 = arith.constant 0 : i32
    %c0_i32_0 = arith.constant 0 : i32
    %c0_i32_1 = arith.constant 0 : i32
    return %arg0, %c0_i32, %c0_i32_0 : i32, i32, i32
  }
  func.func @transform_7(%arg0: i32) -> (i32, i32, i32) {
    %c0_i32 = arith.constant 0 : i32
    %c0_i32_0 = arith.constant 0 : i32
    %c0_i32_1 = arith.constant 0 : i32
    return %arg0, %c0_i32, %c0_i32_0 : i32, i32, i32
  }
  func.func @transform_8(%arg0: i32) -> (i32, i32, i32) {
    %c0_i32 = arith.constant 0 : i32
    %c0_i32_0 = arith.constant 0 : i32
    %c0_i32_1 = arith.constant 0 : i32
    return %arg0, %c0_i32, %c0_i32_0 : i32, i32, i32
  }
  func.func @transform_9(%arg0: i32) -> (i32, i32, i32) {
    %c0_i32 = arith.constant 0 : i32
    %c0_i32_0 = arith.constant 0 : i32
    %c0_i32_1 = arith.constant 0 : i32
    return %arg0, %c0_i32, %c0_i32_0 : i32, i32, i32
  }
  func.func @transform_10(%arg0: i32) -> (i32, i32, i32) {
    %c0_i32 = arith.constant 0 : i32
    %c0_i32_0 = arith.constant 0 : i32
    %c0_i32_1 = arith.constant 0 : i32
    return %arg0, %c0_i32, %c0_i32_0 : i32, i32, i32
  }
  func.func @transform_11(%arg0: i32) -> (i32, i32, i32) {
    %c0_i32 = arith.constant 0 : i32
    %c0_i32_0 = arith.constant 0 : i32
    %c0_i32_1 = arith.constant 0 : i32
    return %arg0, %c0_i32, %c0_i32_0 : i32, i32, i32
  }
  func.func @transform_12(%arg0: i32) -> (i32, i32, i32) {
    %c0_i32 = arith.constant 0 : i32
    %c0_i32_0 = arith.constant 0 : i32
    %c0_i32_1 = arith.constant 0 : i32
    return %arg0, %c0_i32, %c0_i32_0 : i32, i32, i32
  }
  func.func @transform_13(%arg0: i32) -> (i32, i32, i32) {
    %c0_i32 = arith.constant 0 : i32
    %c0_i32_0 = arith.constant 0 : i32
    %c0_i32_1 = arith.constant 0 : i32
    return %arg0, %c0_i32, %c0_i32_0 : i32, i32, i32
  }
  func.func @transform_14(%arg0: i32) -> (i32, i32) {
    %c0_i32 = arith.constant 0 : i32
    %c0_i32_0 = arith.constant 0 : i32
    %c0_i32_1 = arith.constant 0 : i32
    return %c0_i32, %c0_i32_0 : i32, i32
  }
  func.func @transform_15(%arg0: i32) -> (i32, i32) {
    %c0_i32 = arith.constant 0 : i32
    %c0_i32_0 = arith.constant 0 : i32
    %c0_i32_1 = arith.constant 0 : i32
    return %c0_i32, %c0_i32_0 : i32, i32
  }
  func.func @transform_16(%arg0: i32) -> (i32, i32) {
    %c0_i32 = arith.constant 0 : i32
    %c0_i32_0 = arith.constant 0 : i32
    %c0_i32_1 = arith.constant 0 : i32
    return %c0_i32, %c0_i32_0 : i32, i32
  }
}

</mosaic_0001>

<llo_original>
// kernel: tpu_custom_call.1
$region0: #{tpu_custom_call.1}
  #allocation0 [shape = 'u32[]', space=smem, size = 0x4, offset = 0x4, fixed_abs, tag = 'smem constant byte address 0x4 - core index']
  #allocation1 [shape = 'u32[144,128]{1,0:T(1,128)}', space=vmem, size = 0x12000, scoped, tag = 'internal scratch']
  #allocation2 [shape = 'f32[128,256]{1,0:T(8,128)}', space=vmem, size = 0x20000, scoped, tag = 'scratch operand']
  %s0 = inlined_call_operand.hbm [shape: f32[128,256], index: 0, kind: input, shape index: {}]
  %s1 = inlined_call_operand.hbm [shape: f32[128,256], index: 1, kind: input, shape index: {}]
  %s2 = inlined_call_operand.hbm [shape: bf16[2,256,768], index: 2, kind: input, shape index: {}]
  %s3 = inlined_call_operand.hbm [shape: f32[2,1,768], index: 3, kind: input, shape index: {}]
  %s4 = inlined_call_operand.hbm [shape: bf16[2,256,256], index: 4, kind: input, shape index: {}]
  %s5 = inlined_call_operand.vmem [shape: f32[2,1,256], index: 5, kind: input, shape index: {}]
  %s6 = inlined_call_operand.vmem [shape: f32[2,1,256], index: 6, kind: input, shape index: {}]
  %s7 = inlined_call_operand.vmem [shape: f32[2,1,256], index: 7, kind: input, shape index: {}]
  %s8 = inlined_call_operand.hbm [shape: bf16[2,256,512], index: 8, kind: input, shape index: {}]
  %s9 = inlined_call_operand.vmem [shape: f32[2,1,512], index: 9, kind: input, shape index: {}]
  %s10 = inlined_call_operand.hbm [shape: bf16[2,512,256], index: 10, kind: input, shape index: {}]
  %s11 = inlined_call_operand.vmem [shape: f32[2,1,256], index: 11, kind: input, shape index: {}]
  %s12 = inlined_call_operand.vmem [shape: f32[2,1,256], index: 12, kind: input, shape index: {}]
  %s13 = inlined_call_operand.vmem [shape: f32[2,1,256], index: 13, kind: input, shape index: {}]
  %s14 = inlined_call_operand.vmem [shape: f32[1,256], index: 14, kind: input, shape index: {}]
  %s15 = inlined_call_operand.vmem [shape: f32[1,256], index: 15, kind: input, shape index: {}]
  %s16 = inlined_call_operand.hbm [shape: bf16[128,256], index: 16, kind: output, shape index: {}]
  %s17 = sld [smem:[#allocation0]]
  $region133: #{tpu_custom_call.1} parent=0
    _
  %s19 = ssub.s32 1, %s17
  %s20 = scalar_select 0, %s19, %s17
  $region1: #{tpu_custom_call.1} parent=0
    #allocation3 [shape = 'u8[131072]{0}', space=vmem, size = 0x20000, scoped, tag = 'input window, operand 0, single buffered']
    #allocation4 [shape = 's32[2]{0}', space=sflag, size = 0x8, scoped, tag = 'scoped memory for tpu_custom_call.1']
    #allocation5 [shape = 's32[2]{0}', space=sflag, size = 0x8, scoped, tag = 'scoped memory for tpu_custom_call.1']
    #allocation6 [shape = 'u8[131072]{0}', space=vmem, size = 0x20000, scoped, tag = 'input window, operand 1, single buffered']
    #allocation7 [shape = 's32[1]{0}', space=sflag, size = 0x4, scoped, tag = 'scoped memory for tpu_custom_call.1']
    #allocation8 [shape = 'u8[786432]{0}', space=vmem, size = 0xc0000, scoped, tag = 'input window, operand 2']
    #allocation9 [shape = 'u8[6144]{0}', space=vmem, size = 0x1800, scoped, tag = 'input window, operand 3']
    #allocation10 [shape = 'u8[262144]{0}', space=vmem, size = 0x40000, scoped, tag = 'input window, operand 4']
    #allocation11 [shape = 'u8[524288]{0}', space=vmem, size = 0x80000, scoped, tag = 'input window, operand 8']
    #allocation12 [shape = 'u8[524288]{0}', space=vmem, size = 0x80000, scoped, tag = 'input window, operand 10']
    #allocation13 [shape = 'u8[65536]{0}', space=vmem, size = 0x10000, scoped, tag = 'output window, operand 0, single buffered']
    %21 = vsyncpa [#allocation4], 0
    %22 = vsyncpa [#allocation7], 0
    %23 = vsyncpa [#allocation5], 0
    loop: start=0, step=1, limit=4
    $region2: #{tpu_custom_call.1} parent=1 // loop_pre_header
      _
    $region3: #{tpu_custom_call.1} parent=1 // loop_header
      %s25 = sphi 0, %s29
      %p26 = scmp.ge.s32.totalorder %s25, 4
      %s33 = sphi 0, %s33
      %s35 = sphi 0, %s33
      %s36 = sphi 0, %s35
      %s50 = sphi 0, %s36
      %s54 = sphi 0, %s54
      %s56 = sphi 0, %s54
      %s57 = sphi 0, %s56
      %s71 = sphi 0, %s57
      %s77 = sphi 0, %s79
      %s80 = sphi 0, %s77
      %s81 = sphi 0, %s80
      %s97 = sphi 0, %s81
      %s103 = sphi 0, %s105
      %s106 = sphi 0, %s103
      %s107 = sphi 0, %s106
      %s123 = sphi 0, %s107
      %s129 = sphi 0, %s131
      %s132 = sphi 0, %s129
      %s133 = sphi 0, %s132
      %s149 = sphi 0, %s133
      %s155 = sphi 0, %s157
      %s158 = sphi 0, %s155
      %s159 = sphi 0, %s158
      %s175 = sphi 0, %s159
      %s181 = sphi 0, %s183
      %s184 = sphi 0, %s181
      %s185 = sphi 0, %s184
      %s201 = sphi 0, %s185
      %s207 = sphi 0, %s209
      %s210 = sphi 0, %s207
      %s211 = sphi 0, %s210
      %s227 = sphi 0, %s211
      %s233 = sphi 0, %s235
      %s236 = sphi 0, %s233
      %s237 = sphi 0, %s236
      %s253 = sphi 0, %s237
      %s259 = sphi 0, %s261
      %s262 = sphi 0, %s259
      %s263 = sphi 0, %s262
      %s279 = sphi 0, %s263
      %s285 = sphi 0, %s287
      %s288 = sphi 0, %s285
      %s289 = sphi 0, %s288
      %s305 = sphi 0, %s289
      %s311 = sphi 0, %s313
      %s314 = sphi 0, %s311
      %s315 = sphi 0, %s314
      %s331 = sphi 0, %s315
      %s337 = sphi 0, %s339
      %s340 = sphi 0, %s337
      %s341 = sphi 0, %s340
      %s357 = sphi 0, %s341
      %s363 = sphi 0, %s365
      %s366 = sphi 0, %s363
      %s367 = sphi 0, %s366
      %s383 = sphi 0, %s367
      %s387 = sphi 0, %s387
      %s389 = sphi 0, %s387
      %s390 = sphi 0, %s389
      %s404 = sphi 0, %s390
      %s408 = sphi 0, %s408
      %s410 = sphi 0, %s408
      %s411 = sphi 0, %s410
      %s425 = sphi 0, %s411
      %s429 = sphi 0, %s429
      %s431 = sphi 0, %s429
      %s432 = sphi 0, %s431
      %s446 = sphi 0, %s432
    $region4: #{tpu_custom_call.1} parent=1 // loop_header_branch
      %28 = sbr.rel (%p26) target = $region8
    $region5: #{tpu_custom_call.1} parent=1 // loop_body
      %s30 = ssub.s32 %s25, 1
      %s31 = ssub.s32 %s25, 2
      %s32 = sadd.s32 %s25, 1
      %s34 = sadd.s32 %s33, 1
      %p37 = scmp.eq.s32.totalorder %s25, 1
      %p38 = scmp.ne.s32.totalorder %s33, %s35
      %p39 = scmp.eq.s32.totalorder %s25, 0
      %p40 = por %p38, %p39
      %p41 = scmp.ne.s32.totalorder %s33, %s35
      %p42 = scmp.eq.s32.totalorder %s30, 1
      %p43 = por %p41, %p42
      %p44 = scmp.ne.s32.totalorder %s35, %s36
      %p45 = scmp.eq.s32.totalorder %s30, 0
      %p46 = por %p44, %p45
      %p47 = scmp.ne.s32.totalorder %s35, %s36
      %p48 = scmp.eq.s32.totalorder %s31, 1
      %p49 = por %p47, %p48
      %p51 = scmp.ne.s32.totalorder %s36, %s50
      %p52 = scmp.eq.s32.totalorder %s31, 0
      %p53 = por %p51, %p52
      %s55 = sadd.s32 %s54, 1
      %p58 = scmp.eq.s32.totalorder %s25, 1
      %p59 = scmp.ne.s32.totalorder %s54, %s56
      %p60 = scmp.eq.s32.totalorder %s25, 0
      %p61 = por %p59, %p60
      %p62 = scmp.ne.s32.totalorder %s54, %s56
      %p63 = scmp.eq.s32.totalorder %s30, 1
      %p64 = por %p62, %p63
      %p65 = scmp.ne.s32.totalorder %s56, %s57
      %p66 = scmp.eq.s32.totalorder %s30, 0
      %p67 = por %p65, %p66
      %p68 = scmp.ne.s32.totalorder %s56, %s57
      %p69 = scmp.eq.s32.totalorder %s31, 1
      %p70 = por %p68, %p69
      %p72 = scmp.ne.s32.totalorder %s57, %s71
      %p73 = scmp.eq.s32.totalorder %s31, 0
      %p74 = por %p72, %p73
      %s75 = ssub.s32 %s25, %s32
      %p76 = scmp.eq.s32.totalorder %s75, 0
      %s78 = sadd.s32 %s77, 1
      %s79 = scalar_select %p76, %s77, %s78
      %p82 = pneg %p76
      %p83 = scmp.eq.s32.totalorder %s25, 1
      %p84 = por %p82, %p83
      %p85 = scmp.ne.s32.totalorder %s77, %s80
      %p86 = scmp.eq.s32.totalorder %s25, 0
      %p87 = por %p85, %p86
      %p88 = scmp.ne.s32.totalorder %s77, %s80
      %p89 = scmp.eq.s32.totalorder %s30, 1
      %p90 = por %p88, %p89
      %p91 = scmp.ne.s32.totalorder %s80, %s81
      %p92 = scmp.eq.s32.totalorder %s30, 0
      %p93 = por %p91, %p92
      %p94 = scmp.ne.s32.totalorder %s80, %s81
      %p95 = scmp.eq.s32.totalorder %s31, 1
      %p96 = por %p94, %p95
      %p98 = scmp.ne.s32.totalorder %s81, %s97
      %p99 = scmp.eq.s32.totalorder %s31, 0
      %p100 = por %p98, %p99
      %s101 = ssub.s32 %s25, %s32
      %p102 = scmp.eq.s32.totalorder %s101, 0
      %s104 = sadd.s32 %s103, 1
      %s105 = scalar_select %p102, %s103, %s104
      %p108 = pneg %p102
      %p109 = scmp.eq.s32.totalorder %s25, 1
      %p110 = por %p108, %p109
      %p111 = scmp.ne.s32.totalorder %s103, %s106
      %p112 = scmp.eq.s32.totalorder %s25, 0
      %p113 = por %p111, %p112
      %p114 = scmp.ne.s32.totalorder %s103, %s106
      %p115 = scmp.eq.s32.totalorder %s30, 1
      %p116 = por %p114, %p115
      %p117 = scmp.ne.s32.totalorder %s106, %s107
      %p118 = scmp.eq.s32.totalorder %s30, 0
      %p119 = por %p117, %p118
      %p120 = scmp.ne.s32.totalorder %s106, %s107
      %p121 = scmp.eq.s32.totalorder %s31, 1
      %p122 = por %p120, %p121
      %p124 = scmp.ne.s32.totalorder %s107, %s123
      %p125 = scmp.eq.s32.totalorder %s31, 0
      %p126 = por %p124, %p125
      %s127 = ssub.s32 %s25, %s32
      %p128 = scmp.eq.s32.totalorder %s127, 0
      %s130 = sadd.s32 %s129, 1
      %s131 = scalar_select %p128, %s129, %s130
      %p134 = pneg %p128
      %p135 = scmp.eq.s32.totalorder %s25, 1
      %p136 = por %p134, %p135
      %p137 = scmp.ne.s32.totalorder %s129, %s132
      %p138 = scmp.eq.s32.totalorder %s25, 0
      %p139 = por %p137, %p138
      %p140 = scmp.ne.s32.totalorder %s129, %s132
      %p141 = scmp.eq.s32.totalorder %s30, 1
      %p142 = por %p140, %p141
      %p143 = scmp.ne.s32.totalorder %s132, %s133
      %p144 = scmp.eq.s32.totalorder %s30, 0
      %p145 = por %p143, %p144
      %p146 = scmp.ne.s32.totalorder %s132, %s133
      %p147 = scmp.eq.s32.totalorder %s31, 1
      %p148 = por %p146, %p147
      %p150 = scmp.ne.s32.totalorder %s133, %s149
      %p151 = scmp.eq.s32.totalorder %s31, 0
      %p152 = por %p150, %p151
      %s153 = ssub.s32 %s25, %s32
      %p154 = scmp.eq.s32.totalorder %s153, 0
      %s156 = sadd.s32 %s155, 1
      %s157 = scalar_select %p154, %s155, %s156
      %p160 = pneg %p154
      %p161 = scmp.eq.s32.totalorder %s25, 1
      %p162 = por %p160, %p161
      %p163 = scmp.ne.s32.totalorder %s155, %s158
      %p164 = scmp.eq.s32.totalorder %s25, 0
      %p165 = por %p163, %p164
      %p166 = scmp.ne.s32.totalorder %s155, %s158
      %p167 = scmp.eq.s32.totalorder %s30, 1
      %p168 = por %p166, %p167
      %p169 = scmp.ne.s32.totalorder %s158, %s159
      %p170 = scmp.eq.s32.totalorder %s30, 0
      %p171 = por %p169, %p170
      %p172 = scmp.ne.s32.totalorder %s158, %s159
      %p173 = scmp.eq.s32.totalorder %s31, 1
      %p174 = por %p172, %p173
      %p176 = scmp.ne.s32.totalorder %s159, %s175
      %p177 = scmp.eq.s32.totalorder %s31, 0
      %p178 = por %p176, %p177
      %s179 = ssub.s32 %s25, %s32
      %p180 = scmp.eq.s32.totalorder %s179, 0
      %s182 = sadd.s32 %s181, 1
      %s183 = scalar_select %p180, %s181, %s182
      %p186 = pneg %p180
      %p187 = scmp.eq.s32.totalorder %s25, 1
      %p188 = por %p186, %p187
      %p189 = scmp.ne.s32.totalorder %s181, %s184
      %p190 = scmp.eq.s32.totalorder %s25, 0
      %p191 = por %p189, %p190
      %p192 = scmp.ne.s32.totalorder %s181, %s184
      %p193 = scmp.eq.s32.totalorder %s30, 1
      %p194 = por %p192, %p193
      %p195 = scmp.ne.s32.totalorder %s184, %s185
      %p196 = scmp.eq.s32.totalorder %s30, 0
      %p197 = por %p195, %p196
      %p198 = scmp.ne.s32.totalorder %s184, %s185
      %p199 = scmp.eq.s32.totalorder %s31, 1
      %p200 = por %p198, %p199
      %p202 = scmp.ne.s32.totalorder %s185, %s201
      %p203 = scmp.eq.s32.totalorder %s31, 0
      %p204 = por %p202, %p203
      %s205 = ssub.s32 %s25, %s32
      %p206 = scmp.eq.s32.totalorder %s205, 0
      %s208 = sadd.s32 %s207, 1
      %s209 = scalar_select %p206, %s207, %s208
      %p212 = pneg %p206
      %p213 = scmp.eq.s32.totalorder %s25, 1
      %p214 = por %p212, %p213
      %p215 = scmp.ne.s32.totalorder %s207, %s210
      %p216 = scmp.eq.s32.totalorder %s25, 0
      %p217 = por %p215, %p216
      %p218 = scmp.ne.s32.totalorder %s207, %s210
      %p219 = scmp.eq.s32.totalorder %s30, 1
      %p220 = por %p218, %p219
      %p221 = scmp.ne.s32.totalorder %s210, %s211
      %p222 = scmp.eq.s32.totalorder %s30, 0
      %p223 = por %p221, %p222
      %p224 = scmp.ne.s32.totalorder %s210, %s211
      %p225 = scmp.eq.s32.totalorder %s31, 1
      %p226 = por %p224, %p225
      %p228 = scmp.ne.s32.totalorder %s211, %s227
      %p229 = scmp.eq.s32.totalorder %s31, 0
      %p230 = por %p228, %p229
      %s231 = ssub.s32 %s25, %s32
      %p232 = scmp.eq.s32.totalorder %s231, 0
      %s234 = sadd.s32 %s233, 1
      %s235 = scalar_select %p232, %s233, %s234
      %p238 = pneg %p232
      %p239 = scmp.eq.s32.totalorder %s25, 1
      %p240 = por %p238, %p239
      %p241 = scmp.ne.s32.totalorder %s233, %s236
      %p242 = scmp.eq.s32.totalorder %s25, 0
      %p243 = por %p241, %p242
      %p244 = scmp.ne.s32.totalorder %s233, %s236
      %p245 = scmp.eq.s32.totalorder %s30, 1
      %p246 = por %p244, %p245
      %p247 = scmp.ne.s32.totalorder %s236, %s237
      %p248 = scmp.eq.s32.totalorder %s30, 0
      %p249 = por %p247, %p248
      %p250 = scmp.ne.s32.totalorder %s236, %s237
      %p251 = scmp.eq.s32.totalorder %s31, 1
      %p252 = por %p250, %p251
      %p254 = scmp.ne.s32.totalorder %s237, %s253
      %p255 = scmp.eq.s32.totalorder %s31, 0
      %p256 = por %p254, %p255
      %s257 = ssub.s32 %s25, %s32
      %p258 = scmp.eq.s32.totalorder %s257, 0
      %s260 = sadd.s32 %s259, 1
      %s261 = scalar_select %p258, %s259, %s260
      %p264 = pneg %p258
      %p265 = scmp.eq.s32.totalorder %s25, 1
      %p266 = por %p264, %p265
      %p267 = scmp.ne.s32.totalorder %s259, %s262
      %p268 = scmp.eq.s32.totalorder %s25, 0
      %p269 = por %p267, %p268
      %p270 = scmp.ne.s32.totalorder %s259, %s262
      %p271 = scmp.eq.s32.totalorder %s30, 1
      %p272 = por %p270, %p271
      %p273 = scmp.ne.s32.totalorder %s262, %s263
      %p274 = scmp.eq.s32.totalorder %s30, 0
      %p275 = por %p273, %p274
      %p276 = scmp.ne.s32.totalorder %s262, %s263
      %p277 = scmp.eq.s32.totalorder %s31, 1
      %p278 = por %p276, %p277
      %p280 = scmp.ne.s32.totalorder %s263, %s279
      %p281 = scmp.eq.s32.totalorder %s31, 0
      %p282 = por %p280, %p281
      %s283 = ssub.s32 %s25, %s32
      %p284 = scmp.eq.s32.totalorder %s283, 0
      %s286 = sadd.s32 %s285, 1
      %s287 = scalar_select %p284, %s285, %s286
      %p290 = pneg %p284
      %p291 = scmp.eq.s32.totalorder %s25, 1
      %p292 = por %p290, %p291
      %p293 = scmp.ne.s32.totalorder %s285, %s288
      %p294 = scmp.eq.s32.totalorder %s25, 0
      %p295 = por %p293, %p294
      %p296 = scmp.ne.s32.totalorder %s285, %s288
      %p297 = scmp.eq.s32.totalorder %s30, 1
      %p298 = por %p296, %p297
      %p299 = scmp.ne.s32.totalorder %s288, %s289
      %p300 = scmp.eq.s32.totalorder %s30, 0
      %p301 = por %p299, %p300
      %p302 = scmp.ne.s32.totalorder %s288, %s289
      %p303 = scmp.eq.s32.totalorder %s31, 1
      %p304 = por %p302, %p303
      %p306 = scmp.ne.s32.totalorder %s289, %s305
      %p307 = scmp.eq.s32.totalorder %s31, 0
      %p308 = por %p306, %p307
      %s309 = ssub.s32 %s25, %s32
      %p310 = scmp.eq.s32.totalorder %s309, 0
      %s312 = sadd.s32 %s311, 1
      %s313 = scalar_select %p310, %s311, %s312
      %p316 = pneg %p310
      %p317 = scmp.eq.s32.totalorder %s25, 1
      %p318 = por %p316, %p317
      %p319 = scmp.ne.s32.totalorder %s311, %s314
      %p320 = scmp.eq.s32.totalorder %s25, 0
      %p321 = por %p319, %p320
      %p322 = scmp.ne.s32.totalorder %s311, %s314
      %p323 = scmp.eq.s32.totalorder %s30, 1
      %p324 = por %p322, %p323
      %p325 = scmp.ne.s32.totalorder %s314, %s315
      %p326 = scmp.eq.s32.totalorder %s30, 0
      %p327 = por %p325, %p326
      %p328 = scmp.ne.s32.totalorder %s314, %s315
      %p329 = scmp.eq.s32.totalorder %s31, 1
      %p330 = por %p328, %p329
      %p332 = scmp.ne.s32.totalorder %s315, %s331
      %p333 = scmp.eq.s32.totalorder %s31, 0
      %p334 = por %p332, %p333
      %s335 = ssub.s32 %s25, %s32
      %p336 = scmp.eq.s32.totalorder %s335, 0
      %s338 = sadd.s32 %s337, 1
      %s339 = scalar_select %p336, %s337, %s338
      %p342 = pneg %p336
      %p343 = scmp.eq.s32.totalorder %s25, 1
      %p344 = por %p342, %p343
      %p345 = scmp.ne.s32.totalorder %s337, %s340
      %p346 = scmp.eq.s32.totalorder %s25, 0
      %p347 = por %p345, %p346
      %p348 = scmp.ne.s32.totalorder %s337, %s340
      %p349 = scmp.eq.s32.totalorder %s30, 1
      %p350 = por %p348, %p349
      %p351 = scmp.ne.s32.totalorder %s340, %s341
      %p352 = scmp.eq.s32.totalorder %s30, 0
      %p353 = por %p351, %p352
      %p354 = scmp.ne.s32.totalorder %s340, %s341
      %p355 = scmp.eq.s32.totalorder %s31, 1
      %p356 = por %p354, %p355
      %p358 = scmp.ne.s32.totalorder %s341, %s357
      %p359 = scmp.eq.s32.totalorder %s31, 0
      %p360 = por %p358, %p359
      %s361 = ssub.s32 %s25, %s32
      %p362 = scmp.eq.s32.totalorder %s361, 0
      %s364 = sadd.s32 %s363, 1
      %s365 = scalar_select %p362, %s363, %s364
      %p368 = pneg %p362
      %p369 = scmp.eq.s32.totalorder %s25, 1
      %p370 = por %p368, %p369
      %p371 = scmp.ne.s32.totalorder %s363, %s366
      %p372 = scmp.eq.s32.totalorder %s25, 0
      %p373 = por %p371, %p372
      %p374 = scmp.ne.s32.totalorder %s363, %s366
      %p375 = scmp.eq.s32.totalorder %s30, 1
      %p376 = por %p374, %p375
      %p377 = scmp.ne.s32.totalorder %s366, %s367
      %p378 = scmp.eq.s32.totalorder %s30, 0
      %p379 = por %p377, %p378
      %p380 = scmp.ne.s32.totalorder %s366, %s367
      %p381 = scmp.eq.s32.totalorder %s31, 1
      %p382 = por %p380, %p381
      %p384 = scmp.ne.s32.totalorder %s367, %s383
      %p385 = scmp.eq.s32.totalorder %s31, 0
      %p386 = por %p384, %p385
      %s388 = sadd.s32 %s387, 1
      %p391 = scmp.eq.s32.totalorder %s25, 1
      %p392 = scmp.ne.s32.totalorder %s387, %s389
      %p393 = scmp.eq.s32.totalorder %s25, 0
      %p394 = por %p392, %p393
      %p395 = scmp.ne.s32.totalorder %s387, %s389
      %p396 = scmp.eq.s32.totalorder %s30, 1
      %p397 = por %p395, %p396
      %p398 = scmp.ne.s32.totalorder %s389, %s390
      %p399 = scmp.eq.s32.totalorder %s30, 0
      %p400 = por %p398, %p399
      %p401 = scmp.ne.s32.totalorder %s389, %s390
      %p402 = scmp.eq.s32.totalorder %s31, 1
      %p403 = por %p401, %p402
      %p405 = scmp.ne.s32.totalorder %s390, %s404
      %p406 = scmp.eq.s32.totalorder %s31, 0
      %p407 = por %p405, %p406
      %s409 = sadd.s32 %s408, 1
      %p412 = scmp.eq.s32.totalorder %s25, 1
      %p413 = scmp.ne.s32.totalorder %s408, %s410
      %p414 = scmp.eq.s32.totalorder %s25, 0
      %p415 = por %p413, %p414
      %p416 = scmp.ne.s32.totalorder %s408, %s410
      %p417 = scmp.eq.s32.totalorder %s30, 1
      %p418 = por %p416, %p417
      %p419 = scmp.ne.s32.totalorder %s410, %s411
      %p420 = scmp.eq.s32.totalorder %s30, 0
      %p421 = por %p419, %p420
      %p422 = scmp.ne.s32.totalorder %s410, %s411
      %p423 = scmp.eq.s32.totalorder %s31, 1
      %p424 = por %p422, %p423
      %p426 = scmp.ne.s32.totalorder %s411, %s425
      %p427 = scmp.eq.s32.totalorder %s31, 0
      %p428 = por %p426, %p427
      %s430 = sadd.s32 %s429, 1
      %p433 = scmp.eq.s32.totalorder %s25, 1
      %p434 = scmp.ne.s32.totalorder %s429, %s431
      %p435 = scmp.eq.s32.totalorder %s25, 0
      %p436 = por %p434, %p435
      %p437 = scmp.ne.s32.totalorder %s429, %s431
      %p438 = scmp.eq.s32.totalorder %s30, 1
      %p439 = por %p437, %p438
      %p440 = scmp.ne.s32.totalorder %s431, %s432
      %p441 = scmp.eq.s32.totalorder %s30, 0
      %p442 = por %p440, %p441
      %p443 = scmp.ne.s32.totalorder %s431, %s432
      %p444 = scmp.eq.s32.totalorder %s31, 1
      %p445 = por %p443, %p444
      %p447 = scmp.ne.s32.totalorder %s432, %s446
      %p448 = scmp.eq.s32.totalorder %s31, 0
      %p449 = por %p447, %p448
      %p450 = scmp.le.s32.totalorder 1, %s25
      %p451 = scmp.lt.s32.totalorder %s25, 3
      %p452 = pnand %p450, %p451
      %p453 = pneg %p452
      // Predicated region
      $region9: #{tpu_custom_call.1} parent=5 // pred_check
        _
      $region10: #{tpu_custom_call.1} parent=5 // pred_check_branch
        %455 = sbr.rel (%p452) target = $region12
      $region11: #{tpu_custom_call.1} parent=5 // pred_region
        %s456 = ssub.s32 %s25, 1
        // Predicated region
        $region13: #{tpu_custom_call.1} parent=11 // pred_check
          %p457 = pneg %p46
        $region14: #{tpu_custom_call.1} parent=11 // pred_check_branch
          %459 = sbr.rel (%p457) target = $region16
        $region15: #{tpu_custom_call.1} parent=11 // pred_region
          %s461 = ssub.s32 4096, 4096
          %462 = vsyncadd [#allocation4], %s461
          %s463 = sshll.u32 [#allocation3], 4
          %s464 = int_to_ptr.vmem [resolvable:$true] %s463
          %469 = dma.hbm_to_vmem [thread:$0]  %s0, 4096, %s464, [#allocation4], 256, 256, 16
        $region16: #{tpu_custom_call.1} parent=11 // pred_fallthru
          _
        // Predicated region
        $region17: #{tpu_custom_call.1} parent=11 // pred_check
          %p470 = pneg %p67
        $region18: #{tpu_custom_call.1} parent=11 // pred_check_branch
          %472 = sbr.rel (%p470) target = $region20
        $region19: #{tpu_custom_call.1} parent=11 // pred_region
          %s474 = ssub.s32 4096, 4096
          %475 = vsyncadd [#allocation7], %s474
          %s476 = sshll.u32 [#allocation6], 4
          %s477 = int_to_ptr.vmem [resolvable:$true] %s476
          %482 = dma.hbm_to_vmem [thread:$0]  %s1, 4096, %s477, [#allocation7], 256, 256, 16
        $region20: #{tpu_custom_call.1} parent=11 // pred_fallthru
          _
        // Predicated region
        $region21: #{tpu_custom_call.1} parent=11 // pred_check
          %p483 = pneg %p400
        $region22: #{tpu_custom_call.1} parent=11 // pred_check_branch
          %485 = sbr.rel (%p483) target = $region24
        $region23: #{tpu_custom_call.1} parent=11 // pred_region
          _
        $region24: #{tpu_custom_call.1} parent=11 // pred_fallthru
          _
        // Predicated region
        $region25: #{tpu_custom_call.1} parent=11 // pred_check
          %p486 = pneg %p421
        $region26: #{tpu_custom_call.1} parent=11 // pred_check_branch
          %488 = sbr.rel (%p486) target = $region28
        $region27: #{tpu_custom_call.1} parent=11 // pred_region
          _
        $region28: #{tpu_custom_call.1} parent=11 // pred_fallthru
          _
      $region12: #{tpu_custom_call.1} parent=5 // pred_fallthru
        _
      %p489 = scmp.lt.s32.totalorder %s25, 2
      // Predicated region
      $region29: #{tpu_custom_call.1} parent=5 // pred_check
        %p490 = pneg %p489
      $region30: #{tpu_custom_call.1} parent=5 // pred_check_branch
        %492 = sbr.rel (%p490) target = $region32
      $region31: #{tpu_custom_call.1} parent=5 // pred_region
        // Predicated region
        $region33: #{tpu_custom_call.1} parent=31 // pred_check
          %p493 = pneg %p87
        $region34: #{tpu_custom_call.1} parent=31 // pred_check_branch
          %495 = sbr.rel (%p493) target = $region36
        $region35: #{tpu_custom_call.1} parent=31 // pred_region
          %s496 = sand.u32 %s25, 1
          %s497 = scalar_lea.sflag [#allocation4], %s496
          %s498 = sand.u32 %s77, 1
          %s499 = smul.addr %s498, 768
          %s500 = scalar_lea.vmem [#allocation8], %s499
          %s502 = ssub.s32 12288, 12288
          %503 = vsyncadd %s497, %s502
          %s504 = smul.addr %s25, 192
          %s505 = smul.addr %s504, 64
          %s506 = scalar_lea.hbm %s2, %s505
          %s507 = sshll.u32 %s500, 4
          %s508 = int_to_ptr.vmem [resolvable:$true] %s507
          %513 = dma.hbm_to_vmem [thread:$0]  %s506, 12288, %s508, %s497, 384, 384, 24
        $region36: #{tpu_custom_call.1} parent=31 // pred_fallthru
          _
        // Predicated region
        $region37: #{tpu_custom_call.1} parent=31 // pred_check
          %p514 = pneg %p113
        $region38: #{tpu_custom_call.1} parent=31 // pred_check_branch
          %516 = sbr.rel (%p514) target = $region40
        $region39: #{tpu_custom_call.1} parent=31 // pred_region
          %s517 = sand.u32 %s25, 1
          %s518 = scalar_lea.sflag [#allocation4], %s517
          %s519 = sand.u32 %s103, 1
          %s520 = smul.addr %s519, 6
          %s521 = scalar_lea.vmem [#allocation9], %s520
          %s523 = ssub.s32 96, 96
          %524 = vsyncadd %s518, %s523
          %s525 = smul.addr %s25, 6
          %s526 = smul.addr %s525, 16
          %s527 = scalar_lea.hbm %s3, %s526
          %s529 = sshll.u32 %s521, 4
          %s530 = int_to_ptr.vmem [resolvable:$true] %s529
          %532 = dma.hbm_to_vmem [thread:$0]  %s527, 96, %s530, %s518
        $region40: #{tpu_custom_call.1} parent=31 // pred_fallthru
          _
        // Predicated region
        $region41: #{tpu_custom_call.1} parent=31 // pred_check
          %p533 = pneg %p139
        $region42: #{tpu_custom_call.1} parent=31 // pred_check_branch
          %535 = sbr.rel (%p533) target = $region44
        $region43: #{tpu_custom_call.1} parent=31 // pred_region
          %s536 = sand.u32 %s25, 1
          %s537 = scalar_lea.sflag [#allocation4], %s536
          %s538 = sand.u32 %s129, 1
          %s539 = smul.addr %s538, 256
          %s540 = scalar_lea.vmem [#allocation10], %s539
          %s542 = ssub.s32 4096, 4096
          %543 = vsyncadd %s537, %s542
          %s544 = smul.addr %s25, 64
          %s545 = smul.addr %s544, 64
          %s546 = scalar_lea.hbm %s4, %s545
          %s547 = sshll.u32 %s540, 4
          %s548 = int_to_ptr.vmem [resolvable:$true] %s547
          %553 = dma.hbm_to_vmem [thread:$0]  %s546, 4096, %s548, %s537, 128, 128, 8
        $region44: #{tpu_custom_call.1} parent=31 // pred_fallthru
          _
        // Predicated region
        $region45: #{tpu_custom_call.1} parent=31 // pred_check
          %p554 = pneg %p165
        $region46: #{tpu_custom_call.1} parent=31 // pred_check_branch
          %556 = sbr.rel (%p554) target = $region48
        $region47: #{tpu_custom_call.1} parent=31 // pred_region
          %p557 = scmp.lt.s32.totalorder %s25, 1
          %s558 = scalar_select %p557, %s25, 1
          %s559 = smul.addr %s558, 2
          %s560 = scalar_lea.vmem %s5, %s559
        $region48: #{tpu_custom_call.1} parent=31 // pred_fallthru
          _
        // Predicated region
        $region49: #{tpu_custom_call.1} parent=31 // pred_check
          %p561 = pneg %p191
        $region50: #{tpu_custom_call.1} parent=31 // pred_check_branch
          %563 = sbr.rel (%p561) target = $region52
        $region51: #{tpu_custom_call.1} parent=31 // pred_region
          %p564 = scmp.lt.s32.totalorder %s25, 1
          %s565 = scalar_select %p564, %s25, 1
          %s566 = smul.addr %s565, 2
          %s567 = scalar_lea.vmem %s6, %s566
        $region52: #{tpu_custom_call.1} parent=31 // pred_fallthru
          _
        // Predicated region
        $region53: #{tpu_custom_call.1} parent=31 // pred_check
          %p568 = pneg %p217
        $region54: #{tpu_custom_call.1} parent=31 // pred_check_branch
          %570 = sbr.rel (%p568) target = $region56
        $region55: #{tpu_custom_call.1} parent=31 // pred_region
          %p571 = scmp.lt.s32.totalorder %s25, 1
          %s572 = scalar_select %p571, %s25, 1
          %s573 = smul.addr %s572, 2
          %s574 = scalar_lea.vmem %s7, %s573
        $region56: #{tpu_custom_call.1} parent=31 // pred_fallthru
          _
        // Predicated region
        $region57: #{tpu_custom_call.1} parent=31 // pred_check
          %p575 = pneg %p243
        $region58: #{tpu_custom_call.1} parent=31 // pred_check_branch
          %577 = sbr.rel (%p575) target = $region60
        $region59: #{tpu_custom_call.1} parent=31 // pred_region
          %s578 = sand.u32 %s25, 1
          %s579 = scalar_lea.sflag [#allocation4], %s578
          %s580 = sand.u32 %s233, 1
          %s581 = smul.addr %s580, 512
          %s582 = scalar_lea.vmem [#allocation11], %s581
          %s584 = ssub.s32 8192, 8192
          %585 = vsyncadd %s579, %s584
          %s586 = smul.addr %s25, 128
          %s587 = smul.addr %s586, 64
          %s588 = scalar_lea.hbm %s8, %s587
          %s589 = sshll.u32 %s582, 4
          %s590 = int_to_ptr.vmem [resolvable:$true] %s589
          %595 = dma.hbm_to_vmem [thread:$0]  %s588, 8192, %s590, %s579, 256, 256, 16
        $region60: #{tpu_custom_call.1} parent=31 // pred_fallthru
          _
        // Predicated region
        $region61: #{tpu_custom_call.1} parent=31 // pred_check
          %p596 = pneg %p269
        $region62: #{tpu_custom_call.1} parent=31 // pred_check_branch
          %598 = sbr.rel (%p596) target = $region64
        $region63: #{tpu_custom_call.1} parent=31 // pred_region
          %p599 = scmp.lt.s32.totalorder %s25, 1
          %s600 = scalar_select %p599, %s25, 1
          %s601 = smul.addr %s600, 4
          %s602 = scalar_lea.vmem %s9, %s601
        $region64: #{tpu_custom_call.1} parent=31 // pred_fallthru
          _
        // Predicated region
        $region65: #{tpu_custom_call.1} parent=31 // pred_check
          %p603 = pneg %p295
        $region66: #{tpu_custom_call.1} parent=31 // pred_check_branch
          %605 = sbr.rel (%p603) target = $region68
        $region67: #{tpu_custom_call.1} parent=31 // pred_region
          %s606 = sand.u32 %s25, 1
          %s607 = scalar_lea.sflag [#allocation4], %s606
          %s608 = sand.u32 %s285, 1
          %s609 = smul.addr %s608, 512
          %s610 = scalar_lea.vmem [#allocation12], %s609
          %s612 = ssub.s32 8192, 8192
          %613 = vsyncadd %s607, %s612
          %s614 = smul.addr %s25, 128
          %s615 = smul.addr %s614, 64
          %s616 = scalar_lea.hbm %s10, %s615
          %s617 = sshll.u32 %s610, 4
          %s618 = int_to_ptr.vmem [resolvable:$true] %s617
          %623 = dma.hbm_to_vmem [thread:$0]  %s616, 8192, %s618, %s607, 128, 128, 8
        $region68: #{tpu_custom_call.1} parent=31 // pred_fallthru
          _
        // Predicated region
        $region69: #{tpu_custom_call.1} parent=31 // pred_check
          %p624 = pneg %p321
        $region70: #{tpu_custom_call.1} parent=31 // pred_check_branch
          %626 = sbr.rel (%p624) target = $region72
        $region71: #{tpu_custom_call.1} parent=31 // pred_region
          %p627 = scmp.lt.s32.totalorder %s25, 1
          %s628 = scalar_select %p627, %s25, 1
          %s629 = smul.addr %s628, 2
          %s630 = scalar_lea.vmem %s11, %s629
        $region72: #{tpu_custom_call.1} parent=31 // pred_fallthru
          _
        // Predicated region
        $region73: #{tpu_custom_call.1} parent=31 // pred_check
          %p631 = pneg %p347
        $region74: #{tpu_custom_call.1} parent=31 // pred_check_branch
          %633 = sbr.rel (%p631) target = $region76
        $region75: #{tpu_custom_call.1} parent=31 // pred_region
          %p634 = scmp.lt.s32.totalorder %s25, 1
          %s635 = scalar_select %p634, %s25, 1
          %s636 = smul.addr %s635, 2
          %s637 = scalar_lea.vmem %s12, %s636
        $region76: #{tpu_custom_call.1} parent=31 // pred_fallthru
          _
        // Predicated region
        $region77: #{tpu_custom_call.1} parent=31 // pred_check
          %p638 = pneg %p373
        $region78: #{tpu_custom_call.1} parent=31 // pred_check_branch
          %640 = sbr.rel (%p638) target = $region80
        $region79: #{tpu_custom_call.1} parent=31 // pred_region
          %p641 = scmp.lt.s32.totalorder %s25, 1
          %s642 = scalar_select %p641, %s25, 1
          %s643 = smul.addr %s642, 2
          %s644 = scalar_lea.vmem %s13, %s643
        $region80: #{tpu_custom_call.1} parent=31 // pred_fallthru
          _
      $region32: #{tpu_custom_call.1} parent=5 // pred_fallthru
        _
      %p645 = scmp.le.s32.totalorder 1, %s25
      %p646 = scmp.lt.s32.totalorder %s25, 3
      %p647 = pnand %p645, %p646
      %p648 = pneg %p647
      // Predicated region
      $region81: #{tpu_custom_call.1} parent=5 // pred_check
        _
      $region82: #{tpu_custom_call.1} parent=5 // pred_check_branch
        %650 = sbr.rel (%p647) target = $region84
      $region83: #{tpu_custom_call.1} parent=5 // pred_region
        %s651 = ssub.s32 %s25, 1
        // Predicated region
        $region85: #{tpu_custom_call.1} parent=83 // pred_check
          %p652 = pneg %p46
        $region86: #{tpu_custom_call.1} parent=83 // pred_check_branch
          %654 = sbr.rel (%p652) target = $region88
        $region87: #{tpu_custom_call.1} parent=83 // pred_region
          %655 = dma.done [#allocation4], 4096
        $region88: #{tpu_custom_call.1} parent=83 // pred_fallthru
          _
        // Predicated region
        $region89: #{tpu_custom_call.1} parent=83 // pred_check
          %p656 = pneg %p67
        $region90: #{tpu_custom_call.1} parent=83 // pred_check_branch
          %658 = sbr.rel (%p656) target = $region92
        $region91: #{tpu_custom_call.1} parent=83 // pred_region
          %659 = dma.done [#allocation7], 4096
        $region92: #{tpu_custom_call.1} parent=83 // pred_fallthru
          _
        %s660 = sand.u32 %s30, 1
        %s661 = scalar_lea.sflag [#allocation4], %s660
        %s662 = sand.u32 %s80, 1
        %s663 = smul.addr %s662, 768
        %s664 = scalar_lea.vmem [#allocation8], %s663
        // Predicated region
        $region93: #{tpu_custom_call.1} parent=83 // pred_check
          %p665 = pneg %p93
        $region94: #{tpu_custom_call.1} parent=83 // pred_check_branch
          %667 = sbr.rel (%p665) target = $region96
        $region95: #{tpu_custom_call.1} parent=83 // pred_region
          %668 = dma.done %s661, 12288
        $region96: #{tpu_custom_call.1} parent=83 // pred_fallthru
          _
        %s669 = sand.u32 %s30, 1
        %s670 = scalar_lea.sflag [#allocation4], %s669
        %s671 = sand.u32 %s106, 1
        %s672 = smul.addr %s671, 6
        %s673 = scalar_lea.vmem [#allocation9], %s672
        // Predicated region
        $region97: #{tpu_custom_call.1} parent=83 // pred_check
          %p674 = pneg %p119
        $region98: #{tpu_custom_call.1} parent=83 // pred_check_branch
          %676 = sbr.rel (%p674) target = $region100
        $region99: #{tpu_custom_call.1} parent=83 // pred_region
          %677 = dma.done %s670, 96
        $region100: #{tpu_custom_call.1} parent=83 // pred_fallthru
          _
        %s678 = sand.u32 %s30, 1
        %s679 = scalar_lea.sflag [#allocation4], %s678
        %s680 = sand.u32 %s132, 1
        %s681 = smul.addr %s680, 256
        %s682 = scalar_lea.vmem [#allocation10], %s681
        // Predicated region
        $region101: #{tpu_custom_call.1} parent=83 // pred_check
          %p683 = pneg %p145
        $region102: #{tpu_custom_call.1} parent=83 // pred_check_branch
          %685 = sbr.rel (%p683) target = $region104
        $region103: #{tpu_custom_call.1} parent=83 // pred_region
          %686 = dma.done %s679, 4096
        $region104: #{tpu_custom_call.1} parent=83 // pred_fallthru
          _
        %s687 = sand.u32 %s30, 1
        %s688 = scalar_lea.sflag [#allocation4], %s687
        %s689 = sand.u32 %s236, 1
        %s690 = smul.addr %s689, 512
        %s691 = scalar_lea.vmem [#allocation11], %s690
        // Predicated region
        $region105: #{tpu_custom_call.1} parent=83 // pred_check
          %p692 = pneg %p249
        $region106: #{tpu_custom_call.1} parent=83 // pred_check_branch
          %694 = sbr.rel (%p692) target = $region108
        $region107: #{tpu_custom_call.1} parent=83 // pred_region
          %695 = dma.done %s688, 8192
        $region108: #{tpu_custom_call.1} parent=83 // pred_fallthru
          _
        %s696 = sand.u32 %s30, 1
        %s697 = scalar_lea.sflag [#allocation4], %s696
        %s698 = sand.u32 %s288, 1
        %s699 = smul.addr %s698, 512
        %s700 = scalar_lea.vmem [#allocation12], %s699
        // Predicated region
        $region109: #{tpu_custom_call.1} parent=83 // pred_check
          %p701 = pneg %p301
        $region110: #{tpu_custom_call.1} parent=83 // pred_check_branch
          %703 = sbr.rel (%p701) target = $region112
        $region111: #{tpu_custom_call.1} parent=83 // pred_region
          %704 = dma.done %s697, 8192
        $region112: #{tpu_custom_call.1} parent=83 // pred_fallthru
          _
        %p705 = pneg %p46
        %p706 = pneg %p43
        %p707 = pneg %p67
        %p708 = pneg %p64
        %s709 = sand.u32 %s30, 1
        %s710 = scalar_lea.sflag [#allocation4], %s709
        %s711 = sand.u32 %s80, 1
        %s712 = smul.addr %s711, 768
        %s713 = scalar_lea.vmem [#allocation8], %s712
        %p714 = pneg %p93
        %p715 = pneg %p90
        %s716 = sand.u32 %s30, 1
        %s717 = scalar_lea.sflag [#allocation4], %s716
        %s718 = sand.u32 %s106, 1
        %s719 = smul.addr %s718, 6
        %s720 = scalar_lea.vmem [#allocation9], %s719
        %p721 = pneg %p119
        %p722 = pneg %p116
        %s723 = sand.u32 %s30, 1
        %s724 = scalar_lea.sflag [#allocation4], %s723
        %s725 = sand.u32 %s132, 1
        %s726 = smul.addr %s725, 256
        %s727 = scalar_lea.vmem [#allocation10], %s726
        %p728 = pneg %p145
        %p729 = pneg %p142
        %p730 = scmp.lt.s32.totalorder %s30, 1
        %s731 = scalar_select %p730, %s30, 1
        %s732 = smul.addr %s731, 2
        %s733 = scalar_lea.vmem %s5, %s732
        %p734 = pneg %p171
        %p735 = pneg %p168
        %p736 = scmp.lt.s32.totalorder %s30, 1
        %s737 = scalar_select %p736, %s30, 1
        %s738 = smul.addr %s737, 2
        %s739 = scalar_lea.vmem %s6, %s738
        %p740 = pneg %p197
        %p741 = pneg %p194
        %p742 = scmp.lt.s32.totalorder %s30, 1
        %s743 = scalar_select %p742, %s30, 1
        %s744 = smul.addr %s743, 2
        %s745 = scalar_lea.vmem %s7, %s744
        %p746 = pneg %p223
        %p747 = pneg %p220
        %s748 = sand.u32 %s30, 1
        %s749 = scalar_lea.sflag [#allocation4], %s748
        %s750 = sand.u32 %s236, 1
        %s751 = smul.addr %s750, 512
        %s752 = scalar_lea.vmem [#allocation11], %s751
        %p753 = pneg %p249
        %p754 = pneg %p246
        %p755 = scmp.lt.s32.totalorder %s30, 1
        %s756 = scalar_select %p755, %s30, 1
        %s757 = smul.addr %s756, 4
        %s758 = scalar_lea.vmem %s9, %s757
        %p759 = pneg %p275
        %p760 = pneg %p272
        %s761 = sand.u32 %s30, 1
        %s762 = scalar_lea.sflag [#allocation4], %s761
        %s763 = sand.u32 %s288, 1
        %s764 = smul.addr %s763, 512
        %s765 = scalar_lea.vmem [#allocation12], %s764
        %p766 = pneg %p301
        %p767 = pneg %p298
        %p768 = scmp.lt.s32.totalorder %s30, 1
        %s769 = scalar_select %p768, %s30, 1
        %s770 = smul.addr %s769, 2
        %s771 = scalar_lea.vmem %s11, %s770
        %p772 = pneg %p327
        %p773 = pneg %p324
        %p774 = scmp.lt.s32.totalorder %s30, 1
        %s775 = scalar_select %p774, %s30, 1
        %s776 = smul.addr %s775, 2
        %s777 = scalar_lea.vmem %s12, %s776
        %p778 = pneg %p353
        %p779 = pneg %p350
        %p780 = scmp.lt.s32.totalorder %s30, 1
        %s781 = scalar_select %p780, %s30, 1
        %s782 = smul.addr %s781, 2
        %s783 = scalar_lea.vmem %s13, %s782
        %p784 = pneg %p379
        %p785 = pneg %p376
        %p786 = pneg %p400
        %p787 = pneg %p397
        %p788 = pneg %p421
        %p789 = pneg %p418
        %p790 = pneg %p442
        %p791 = pneg %p439
        %p792 = scmp.lt.s32.totalorder %s30, 1
        %s793 = scalar_select %p792, %s30, 1
        %s794 = smul.addr %s793, 2
        %s795 = scalar_lea.vmem %s5, %s794
        %p796 = scmp.lt.s32.totalorder %s30, 1
        %s797 = scalar_select %p796, %s30, 1
        %s798 = smul.addr %s797, 2
        %s799 = scalar_lea.vmem %s6, %s798
        %p800 = scmp.lt.s32.totalorder %s30, 1
        %s801 = scalar_select %p800, %s30, 1
        %s802 = smul.addr %s801, 2
        %s803 = scalar_lea.vmem %s7, %s802
        %p804 = scmp.lt.s32.totalorder %s30, 1
        %s805 = scalar_select %p804, %s30, 1
        %s806 = smul.addr %s805, 4
        %s807 = scalar_lea.vmem %s9, %s806
        %p808 = scmp.lt.s32.totalorder %s30, 1
        %s809 = scalar_select %p808, %s30, 1
        %s810 = smul.addr %s809, 2
        %s811 = scalar_lea.vmem %s11, %s810
        %p812 = scmp.lt.s32.totalorder %s30, 1
        %s813 = scalar_select %p812, %s30, 1
        %s814 = smul.addr %s813, 2
        %s815 = scalar_lea.vmem %s12, %s814
        %p816 = scmp.lt.s32.totalorder %s30, 1
        %s817 = scalar_select %p816, %s30, 1
        %s818 = smul.addr %s817, 2
        %s819 = scalar_lea.vmem %s13, %s818
        %p821 = scmp.eq.s32.totalorder %s30, 0
        // Predicated region
        $region113: #{tpu_custom_call.1} parent=83 // pred_check
          %p822 = pneg %p821
        $region114: #{tpu_custom_call.1} parent=83 // pred_check_branch
          %824 = sbr.rel (%p822) target = $region116
        $region115: #{tpu_custom_call.1} parent=83 // pred_region
          %v825 = vld [vmem:[#allocation3] sm:$0xff]
          %v826 = vld [vmem:[#allocation3 + $0x8] sm:$0xff]
          %v827 = vld [vmem:[#allocation3 + $0x10] sm:$0xff]
          %v828 = vld [vmem:[#allocation3 + $0x18] sm:$0xff]
          %v829 = vld [vmem:[#allocation3 + $0x20] sm:$0xff]
          %v830 = vld [vmem:[#allocation3 + $0x28] sm:$0xff]
          %v831 = vld [vmem:[#allocation3 + $0x30] sm:$0xff]
          %v832 = vld [vmem:[#allocation3 + $0x38] sm:$0xff]
          %v833 = vld [vmem:[#allocation3 + $0x40] sm:$0xff]
          %v834 = vld [vmem:[#allocation3 + $0x48] sm:$0xff]
          %v835 = vld [vmem:[#allocation3 + $0x50] sm:$0xff]
          %v836 = vld [vmem:[#allocation3 + $0x58] sm:$0xff]
          %v837 = vld [vmem:[#allocation3 + $0x60] sm:$0xff]
          %v838 = vld [vmem:[#allocation3 + $0x68] sm:$0xff]
          %v839 = vld [vmem:[#allocation3 + $0x70] sm:$0xff]
          %v840 = vld [vmem:[#allocation3 + $0x78] sm:$0xff]
          %v841 = vld [vmem:[#allocation3 + $0x80] sm:$0xff]
          %v842 = vld [vmem:[#allocation3 + $0x88] sm:$0xff]
          %v843 = vld [vmem:[#allocation3 + $0x90] sm:$0xff]
          %v844 = vld [vmem:[#allocation3 + $0x98] sm:$0xff]
          %v845 = vld [vmem:[#allocation3 + $0xa0] sm:$0xff]
          %v846 = vld [vmem:[#allocation3 + $0xa8] sm:$0xff]
          %v847 = vld [vmem:[#allocation3 + $0xb0] sm:$0xff]
          %v848 = vld [vmem:[#allocation3 + $0xb8] sm:$0xff]
          %v849 = vld [vmem:[#allocation3 + $0xc0] sm:$0xff]
          %v850 = vld [vmem:[#allocation3 + $0xc8] sm:$0xff]
          %v851 = vld [vmem:[#allocation3 + $0xd0] sm:$0xff]
          %v852 = vld [vmem:[#allocation3 + $0xd8] sm:$0xff]
          %v853 = vld [vmem:[#allocation3 + $0xe0] sm:$0xff]
          %v854 = vld [vmem:[#allocation3 + $0xe8] sm:$0xff]
          %v855 = vld [vmem:[#allocation3 + $0xf0] sm:$0xff]
          %v856 = vld [vmem:[#allocation3 + $0xf8] sm:$0xff]
          %v857 = vld [vmem:[#allocation6] sm:$0xff]
          %v858 = vld [vmem:[#allocation6 + $0x8] sm:$0xff]
          %v859 = vld [vmem:[#allocation6 + $0x10] sm:$0xff]
          %v860 = vld [vmem:[#allocation6 + $0x18] sm:$0xff]
          %v861 = vld [vmem:[#allocation6 + $0x20] sm:$0xff]
          %v862 = vld [vmem:[#allocation6 + $0x28] sm:$0xff]
          %v863 = vld [vmem:[#allocation6 + $0x30] sm:$0xff]
          %v864 = vld [vmem:[#allocation6 + $0x38] sm:$0xff]
          %v865 = vld [vmem:[#allocation6 + $0x40] sm:$0xff]
          %v866 = vld [vmem:[#allocation6 + $0x48] sm:$0xff]
          %v867 = vld [vmem:[#allocation6 + $0x50] sm:$0xff]
          %v868 = vld [vmem:[#allocation6 + $0x58] sm:$0xff]
          %v869 = vld [vmem:[#allocation6 + $0x60] sm:$0xff]
          %v870 = vld [vmem:[#allocation6 + $0x68] sm:$0xff]
          %v871 = vld [vmem:[#allocation6 + $0x70] sm:$0xff]
          %v872 = vld [vmem:[#allocation6 + $0x78] sm:$0xff]
          %v873 = vld [vmem:[#allocation6 + $0x80] sm:$0xff]
          %v874 = vld [vmem:[#allocation6 + $0x88] sm:$0xff]
          %v875 = vld [vmem:[#allocation6 + $0x90] sm:$0xff]
          %v876 = vld [vmem:[#allocation6 + $0x98] sm:$0xff]
          %v877 = vld [vmem:[#allocation6 + $0xa0] sm:$0xff]
          %v878 = vld [vmem:[#allocation6 + $0xa8] sm:$0xff]
          %v879 = vld [vmem:[#allocation6 + $0xb0] sm:$0xff]
          %v880 = vld [vmem:[#allocation6 + $0xb8] sm:$0xff]
          %v881 = vld [vmem:[#allocation6 + $0xc0] sm:$0xff]
          %v882 = vld [vmem:[#allocation6 + $0xc8] sm:$0xff]
          %v883 = vld [vmem:[#allocation6 + $0xd0] sm:$0xff]
          %v884 = vld [vmem:[#allocation6 + $0xd8] sm:$0xff]
          %v885 = vld [vmem:[#allocation6 + $0xe0] sm:$0xff]
          %v886 = vld [vmem:[#allocation6 + $0xe8] sm:$0xff]
          %v887 = vld [vmem:[#allocation6 + $0xf0] sm:$0xff]
          %v888 = vld [vmem:[#allocation6 + $0xf8] sm:$0xff]
          %v889 = vmul.f32 %v857, 0.1
          %v890 = vmul.f32 %v858, 0.1
          %v891 = vmul.f32 %v859, 0.1
          %v892 = vmul.f32 %v860, 0.1
          %v893 = vmul.f32 %v861, 0.1
          %v894 = vmul.f32 %v862, 0.1
          %v895 = vmul.f32 %v863, 0.1
          %v896 = vmul.f32 %v864, 0.1
          %v897 = vmul.f32 %v865, 0.1
          %v898 = vmul.f32 %v866, 0.1
          %v899 = vmul.f32 %v867, 0.1
          %v900 = vmul.f32 %v868, 0.1
          %v901 = vmul.f32 %v869, 0.1
          %v902 = vmul.f32 %v870, 0.1
          %v903 = vmul.f32 %v871, 0.1
          %v904 = vmul.f32 %v872, 0.1
          %v905 = vmul.f32 %v873, 0.1
          %v906 = vmul.f32 %v874, 0.1
          %v907 = vmul.f32 %v875, 0.1
          %v908 = vmul.f32 %v876, 0.1
          %v909 = vmul.f32 %v877, 0.1
          %v910 = vmul.f32 %v878, 0.1
          %v911 = vmul.f32 %v879, 0.1
          %v912 = vmul.f32 %v880, 0.1
          %v913 = vmul.f32 %v881, 0.1
          %v914 = vmul.f32 %v882, 0.1
          %v915 = vmul.f32 %v883, 0.1
          %v916 = vmul.f32 %v884, 0.1
          %v917 = vmul.f32 %v885, 0.1
          %v918 = vmul.f32 %v886, 0.1
          %v919 = vmul.f32 %v887, 0.1
          %v920 = vmul.f32 %v888, 0.1
          %v921 = vadd.f32 %v825, %v889
          %v922 = vadd.f32 %v826, %v890
          %v923 = vadd.f32 %v827, %v891
          %v924 = vadd.f32 %v828, %v892
          %v925 = vadd.f32 %v829, %v893
          %v926 = vadd.f32 %v830, %v894
          %v927 = vadd.f32 %v831, %v895
          %v928 = vadd.f32 %v832, %v896
          %v929 = vadd.f32 %v833, %v897
          %v930 = vadd.f32 %v834, %v898
          %v931 = vadd.f32 %v835, %v899
          %v932 = vadd.f32 %v836, %v900
          %v933 = vadd.f32 %v837, %v901
          %v934 = vadd.f32 %v838, %v902
          %v935 = vadd.f32 %v839, %v903
          %v936 = vadd.f32 %v840, %v904
          %v937 = vadd.f32 %v841, %v905
          %v938 = vadd.f32 %v842, %v906
          %v939 = vadd.f32 %v843, %v907
          %v940 = vadd.f32 %v844, %v908
          %v941 = vadd.f32 %v845, %v909
          %v942 = vadd.f32 %v846, %v910
          %v943 = vadd.f32 %v847, %v911
          %v944 = vadd.f32 %v848, %v912
          %v945 = vadd.f32 %v849, %v913
          %v946 = vadd.f32 %v850, %v914
          %v947 = vadd.f32 %v851, %v915
          %v948 = vadd.f32 %v852, %v916
          %v949 = vadd.f32 %v853, %v917
          %v950 = vadd.f32 %v854, %v918
          %v951 = vadd.f32 %v855, %v919
          %v952 = vadd.f32 %v856, %v920
          %953 = vst [vmem:[#allocation2] sm:$0xff] %v921
          %954 = vst [vmem:[#allocation2 + $0x8] sm:$0xff] %v922
          %955 = vst [vmem:[#allocation2 + $0x10] sm:$0xff] %v923
          %956 = vst [vmem:[#allocation2 + $0x18] sm:$0xff] %v924
          %957 = vst [vmem:[#allocation2 + $0x20] sm:$0xff] %v925
          %958 = vst [vmem:[#allocation2 + $0x28] sm:$0xff] %v926
          %959 = vst [vmem:[#allocation2 + $0x30] sm:$0xff] %v927
          %960 = vst [vmem:[#allocation2 + $0x38] sm:$0xff] %v928
          %961 = vst [vmem:[#allocation2 + $0x40] sm:$0xff] %v929
          %962 = vst [vmem:[#allocation2 + $0x48] sm:$0xff] %v930
          %963 = vst [vmem:[#allocation2 + $0x50] sm:$0xff] %v931
          %964 = vst [vmem:[#allocation2 + $0x58] sm:$0xff] %v932
          %965 = vst [vmem:[#allocation2 + $0x60] sm:$0xff] %v933
          %966 = vst [vmem:[#allocation2 + $0x68] sm:$0xff] %v934
          %967 = vst [vmem:[#allocation2 + $0x70] sm:$0xff] %v935
          %968 = vst [vmem:[#allocation2 + $0x78] sm:$0xff] %v936
          %969 = vst [vmem:[#allocation2 + $0x80] sm:$0xff] %v937
          %970 = vst [vmem:[#allocation2 + $0x88] sm:$0xff] %v938
          %971 = vst [vmem:[#allocation2 + $0x90] sm:$0xff] %v939
          %972 = vst [vmem:[#allocation2 + $0x98] sm:$0xff] %v940
          %973 = vst [vmem:[#allocation2 + $0xa0] sm:$0xff] %v941
          %974 = vst [vmem:[#allocation2 + $0xa8] sm:$0xff] %v942
          %975 = vst [vmem:[#allocation2 + $0xb0] sm:$0xff] %v943
          %976 = vst [vmem:[#allocation2 + $0xb8] sm:$0xff] %v944
          %977 = vst [vmem:[#allocation2 + $0xc0] sm:$0xff] %v945
          %978 = vst [vmem:[#allocation2 + $0xc8] sm:$0xff] %v946
          %979 = vst [vmem:[#allocation2 + $0xd0] sm:$0xff] %v947
          %980 = vst [vmem:[#allocation2 + $0xd8] sm:$0xff] %v948
          %981 = vst [vmem:[#allocation2 + $0xe0] sm:$0xff] %v949
          %982 = vst [vmem:[#allocation2 + $0xe8] sm:$0xff] %v950
          %983 = vst [vmem:[#allocation2 + $0xf0] sm:$0xff] %v951
          %984 = vst [vmem:[#allocation2 + $0xf8] sm:$0xff] %v952
        $region116: #{tpu_custom_call.1} parent=83 // pred_fallthru
          _
        %v985 = vld [vmem:[#allocation2] sm:$0xff]
        %v986 = vld [vmem:[#allocation2 + $0x8] sm:$0xff]
        %v987 = vld [vmem:[#allocation2 + $0x10] sm:$0xff]
        %v988 = vld [vmem:[#allocation2 + $0x18] sm:$0xff]
        %v989 = vld [vmem:[#allocation2 + $0x20] sm:$0xff]
        %v990 = vld [vmem:[#allocation2 + $0x28] sm:$0xff]
        %v991 = vld [vmem:[#allocation2 + $0x30] sm:$0xff]
        %v992 = vld [vmem:[#allocation2 + $0x38] sm:$0xff]
        %v993 = vld [vmem:[#allocation2 + $0x40] sm:$0xff]
        %v994 = vld [vmem:[#allocation2 + $0x48] sm:$0xff]
        %v995 = vld [vmem:[#allocation2 + $0x50] sm:$0xff]
        %v996 = vld [vmem:[#allocation2 + $0x58] sm:$0xff]
        %v997 = vld [vmem:[#allocation2 + $0x60] sm:$0xff]
        %v998 = vld [vmem:[#allocation2 + $0x68] sm:$0xff]
        %v999 = vld [vmem:[#allocation2 + $0x70] sm:$0xff]
        %v1000 = vld [vmem:[#allocation2 + $0x78] sm:$0xff]
        %v1001 = vld [vmem:[#allocation2 + $0x80] sm:$0xff]
        %v1002 = vld [vmem:[#allocation2 + $0x88] sm:$0xff]
        %v1003 = vld [vmem:[#allocation2 + $0x90] sm:$0xff]
        %v1004 = vld [vmem:[#allocation2 + $0x98] sm:$0xff]
        %v1005 = vld [vmem:[#allocation2 + $0xa0] sm:$0xff]
        %v1006 = vld [vmem:[#allocation2 + $0xa8] sm:$0xff]
        %v1007 = vld [vmem:[#allocation2 + $0xb0] sm:$0xff]
        %v1008 = vld [vmem:[#allocation2 + $0xb8] sm:$0xff]
        %v1009 = vld [vmem:[#allocation2 + $0xc0] sm:$0xff]
        %v1010 = vld [vmem:[#allocation2 + $0xc8] sm:$0xff]
        %v1011 = vld [vmem:[#allocation2 + $0xd0] sm:$0xff]
        %v1012 = vld [vmem:[#allocation2 + $0xd8] sm:$0xff]
        %v1013 = vld [vmem:[#allocation2 + $0xe0] sm:$0xff]
        %v1014 = vld [vmem:[#allocation2 + $0xe8] sm:$0xff]
        %v1015 = vld [vmem:[#allocation2 + $0xf0] sm:$0xff]
        %v1016 = vld [vmem:[#allocation2 + $0xf8] sm:$0xff]
        %v1017 = vld [vmem:[%s664] sm:$0xff]
        %v1018 = vld [vmem:[%s664 + $0x8] sm:$0xff]
        %v1019 = vld [vmem:[%s664 + $0x10] sm:$0xff]
        %v1020 = vld [vmem:[%s664 + $0x18] sm:$0xff]
        %v1021 = vld [vmem:[%s664 + $0x20] sm:$0xff]
        %v1022 = vld [vmem:[%s664 + $0x28] sm:$0xff]
        %v1023 = vld [vmem:[%s664 + $0x30] sm:$0xff]
        %v1024 = vld [vmem:[%s664 + $0x38] sm:$0xff]
        %v1025 = vld [vmem:[%s664 + $0x40] sm:$0xff]
        %v1026 = vld [vmem:[%s664 + $0x48] sm:$0xff]
        %v1027 = vld [vmem:[%s664 + $0x50] sm:$0xff]
        %v1028 = vld [vmem:[%s664 + $0x58] sm:$0xff]
        %v1029 = vld [vmem:[%s664 + $0x60] sm:$0xff]
        %v1030 = vld [vmem:[%s664 + $0x68] sm:$0xff]
        %v1031 = vld [vmem:[%s664 + $0x70] sm:$0xff]
        %v1032 = vld [vmem:[%s664 + $0x78] sm:$0xff]
        %v1033 = vld [vmem:[%s664 + $0x80] sm:$0xff]
        %v1034 = vld [vmem:[%s664 + $0x88] sm:$0xff]
        %v1035 = vld [vmem:[%s664 + $0x90] sm:$0xff]
        %v1036 = vld [vmem:[%s664 + $0x98] sm:$0xff]
        %v1037 = vld [vmem:[%s664 + $0xa0] sm:$0xff]
        %v1038 = vld [vmem:[%s664 + $0xa8] sm:$0xff]
        %v1039 = vld [vmem:[%s664 + $0xb0] sm:$0xff]
        %v1040 = vld [vmem:[%s664 + $0xb8] sm:$0xff]
        %v1041 = vld [vmem:[%s664 + $0xc0] sm:$0xff]
        %v1042 = vld [vmem:[%s664 + $0xc8] sm:$0xff]
        %v1043 = vld [vmem:[%s664 + $0xd0] sm:$0xff]
        %v1044 = vld [vmem:[%s664 + $0xd8] sm:$0xff]
        %v1045 = vld [vmem:[%s664 + $0xe0] sm:$0xff]
        %v1046 = vld [vmem:[%s664 + $0xe8] sm:$0xff]
        %v1047 = vld [vmem:[%s664 + $0xf0] sm:$0xff]
        %v1048 = vld [vmem:[%s664 + $0xf8] sm:$0xff]
        %v1049 = vld [vmem:[%s664 + $0x100] sm:$0xff]
        %v1050 = vld [vmem:[%s664 + $0x108] sm:$0xff]
        %v1051 = vld [vmem:[%s664 + $0x110] sm:$0xff]
        %v1052 = vld [vmem:[%s664 + $0x118] sm:$0xff]
        %v1053 = vld [vmem:[%s664 + $0x120] sm:$0xff]
        %v1054 = vld [vmem:[%s664 + $0x128] sm:$0xff]
        %v1055 = vld [vmem:[%s664 + $0x130] sm:$0xff]
        %v1056 = vld [vmem:[%s664 + $0x138] sm:$0xff]
        %v1057 = vld [vmem:[%s664 + $0x140] sm:$0xff]
        %v1058 = vld [vmem:[%s664 + $0x148] sm:$0xff]
        %v1059 = vld [vmem:[%s664 + $0x150] sm:$0xff]
        %v1060 = vld [vmem:[%s664 + $0x158] sm:$0xff]
        %v1061 = vld [vmem:[%s664 + $0x160] sm:$0xff]
        %v1062 = vld [vmem:[%s664 + $0x168] sm:$0xff]
        %v1063 = vld [vmem:[%s664 + $0x170] sm:$0xff]
        %v1064 = vld [vmem:[%s664 + $0x178] sm:$0xff]
        %v1065 = vld [vmem:[%s664 + $0x180] sm:$0xff]
        %v1066 = vld [vmem:[%s664 + $0x188] sm:$0xff]
        %v1067 = vld [vmem:[%s664 + $0x190] sm:$0xff]
        %v1068 = vld [vmem:[%s664 + $0x198] sm:$0xff]
        %v1069 = vld [vmem:[%s664 + $0x1a0] sm:$0xff]
        %v1070 = vld [vmem:[%s664 + $0x1a8] sm:$0xff]
        %v1071 = vld [vmem:[%s664 + $0x1b0] sm:$0xff]
        %v1072 = vld [vmem:[%s664 + $0x1b8] sm:$0xff]
        %v1073 = vld [vmem:[%s664 + $0x1c0] sm:$0xff]
        %v1074 = vld [vmem:[%s664 + $0x1c8] sm:$0xff]
        %v1075 = vld [vmem:[%s664 + $0x1d0] sm:$0xff]
        %v1076 = vld [vmem:[%s664 + $0x1d8] sm:$0xff]
        %v1077 = vld [vmem:[%s664 + $0x1e0] sm:$0xff]
        %v1078 = vld [vmem:[%s664 + $0x1e8] sm:$0xff]
        %v1079 = vld [vmem:[%s664 + $0x1f0] sm:$0xff]
        %v1080 = vld [vmem:[%s664 + $0x1f8] sm:$0xff]
        %v1081 = vld [vmem:[%s664 + $0x200] sm:$0xff]
        %v1082 = vld [vmem:[%s664 + $0x208] sm:$0xff]
        %v1083 = vld [vmem:[%s664 + $0x210] sm:$0xff]
        %v1084 = vld [vmem:[%s664 + $0x218] sm:$0xff]
        %v1085 = vld [vmem:[%s664 + $0x220] sm:$0xff]
        %v1086 = vld [vmem:[%s664 + $0x228] sm:$0xff]
        %v1087 = vld [vmem:[%s664 + $0x230] sm:$0xff]
        %v1088 = vld [vmem:[%s664 + $0x238] sm:$0xff]
        %v1089 = vld [vmem:[%s664 + $0x240] sm:$0xff]
        %v1090 = vld [vmem:[%s664 + $0x248] sm:$0xff]
        %v1091 = vld [vmem:[%s664 + $0x250] sm:$0xff]
        %v1092 = vld [vmem:[%s664 + $0x258] sm:$0xff]
        %v1093 = vld [vmem:[%s664 + $0x260] sm:$0xff]
        %v1094 = vld [vmem:[%s664 + $0x268] sm:$0xff]
        %v1095 = vld [vmem:[%s664 + $0x270] sm:$0xff]
        %v1096 = vld [vmem:[%s664 + $0x278] sm:$0xff]
        %v1097 = vld [vmem:[%s664 + $0x280] sm:$0xff]
        %v1098 = vld [vmem:[%s664 + $0x288] sm:$0xff]
        %v1099 = vld [vmem:[%s664 + $0x290] sm:$0xff]
        %v1100 = vld [vmem:[%s664 + $0x298] sm:$0xff]
        %v1101 = vld [vmem:[%s664 + $0x2a0] sm:$0xff]
        %v1102 = vld [vmem:[%s664 + $0x2a8] sm:$0xff]
        %v1103 = vld [vmem:[%s664 + $0x2b0] sm:$0xff]
        %v1104 = vld [vmem:[%s664 + $0x2b8] sm:$0xff]
        %v1105 = vld [vmem:[%s664 + $0x2c0] sm:$0xff]
        %v1106 = vld [vmem:[%s664 + $0x2c8] sm:$0xff]
        %v1107 = vld [vmem:[%s664 + $0x2d0] sm:$0xff]
        %v1108 = vld [vmem:[%s664 + $0x2d8] sm:$0xff]
        %v1109 = vld [vmem:[%s664 + $0x2e0] sm:$0xff]
        %v1110 = vld [vmem:[%s664 + $0x2e8] sm:$0xff]
        %v1111 = vld [vmem:[%s664 + $0x2f0] sm:$0xff]
        %v1112 = vld [vmem:[%s664 + $0x2f8] sm:$0xff]
        %v1113 = vpack.c.bf16 %v987, %v985
        %v1114 = vpack.c.bf16 %v988, %v986
        %v1115 = vpack.c.bf16 %v991, %v989
        %v1116 = vpack.c.bf16 %v992, %v990
        %v1117 = vpack.c.bf16 %v995, %v993
        %v1118 = vpack.c.bf16 %v996, %v994
        %v1119 = vpack.c.bf16 %v999, %v997
        %v1120 = vpack.c.bf16 %v1000, %v998
        %v1121 = vpack.c.bf16 %v1003, %v1001
        %v1122 = vpack.c.bf16 %v1004, %v1002
        %v1123 = vpack.c.bf16 %v1007, %v1005
        %v1124 = vpack.c.bf16 %v1008, %v1006
        %v1125 = vpack.c.bf16 %v1011, %v1009
        %v1126 = vpack.c.bf16 %v1012, %v1010
        %v1127 = vpack.c.bf16 %v1015, %v1013
        %v1128 = vpack.c.bf16 %v1016, %v1014
        %v1129 = vld [vmem:[%s673] sm:$0x3f]
        %v1131 = vlaneseq
        %v1132 = vshrl.u32 %v1131, 7
        %v1133 = vsub.s32 0, %v1132
        %v1134 = vrot.slane %v1129, %v1133
        %v1135 = vlaneseq
        %v1136 = vshrl.u32 %v1135, 7
        %v1137 = vsub.s32 1, %v1136
        %v1138 = vrot.slane %v1129, %v1137
        %v1139 = vlaneseq
        %v1140 = vshrl.u32 %v1139, 7
        %v1141 = vsub.s32 2, %v1140
        %v1142 = vrot.slane %v1129, %v1141
        %v1143 = vlaneseq
        %v1144 = vshrl.u32 %v1143, 7
        %v1145 = vsub.s32 3, %v1144
        %v1146 = vrot.slane %v1129, %v1145
        %v1147 = vlaneseq
        %v1148 = vshrl.u32 %v1147, 7
        %v1149 = vsub.s32 4, %v1148
        %v1150 = vrot.slane %v1129, %v1149
        %v1151 = vlaneseq
        %v1152 = vshrl.u32 %v1151, 7
        %v1153 = vsub.s32 5, %v1152
        %v1154 = vrot.slane %v1129, %v1153
        %v1257 = vunpack.c.l.b16 %v1017
        %v1258 = vunpack.c.h.b16 %v1017
        %v1259 = vunpack.c.l.b16 %v1018
        %v1260 = vunpack.c.h.b16 %v1018
        %v1261 = vunpack.c.l.b16 %v1019
        %v1262 = vunpack.c.h.b16 %v1019
        %v1263 = vunpack.c.l.b16 %v1020
        %v1264 = vunpack.c.h.b16 %v1020
        %v1265 = vunpack.c.l.b16 %v1021
        %v1266 = vunpack.c.h.b16 %v1021
        %v1267 = vunpack.c.l.b16 %v1022
        %v1268 = vunpack.c.h.b16 %v1022
        %v1269 = vunpack.c.l.b16 %v1023
        %v1270 = vunpack.c.h.b16 %v1023
        %v1271 = vunpack.c.l.b16 %v1024
        %v1272 = vunpack.c.h.b16 %v1024
        %v1273 = vunpack.c.l.b16 %v1025
        %v1274 = vunpack.c.h.b16 %v1025
        %v1275 = vunpack.c.l.b16 %v1026
        %v1276 = vunpack.c.h.b16 %v1026
        %v1277 = vunpack.c.l.b16 %v1027
        %v1278 = vunpack.c.h.b16 %v1027
        %v1279 = vunpack.c.l.b16 %v1028
        %v1280 = vunpack.c.h.b16 %v1028
        %v1281 = vunpack.c.l.b16 %v1029
        %v1282 = vunpack.c.h.b16 %v1029
        %v1283 = vunpack.c.l.b16 %v1030
        %v1284 = vunpack.c.h.b16 %v1030
        %v1285 = vunpack.c.l.b16 %v1031
        %v1286 = vunpack.c.h.b16 %v1031
        %v1287 = vunpack.c.l.b16 %v1032
        %v1288 = vunpack.c.h.b16 %v1032
        %v1289 = vunpack.c.l.b16 %v1033
        %v1290 = vunpack.c.h.b16 %v1033
        %v1291 = vunpack.c.l.b16 %v1034
        %v1292 = vunpack.c.h.b16 %v1034
        %v1293 = vunpack.c.l.b16 %v1035
        %v1294 = vunpack.c.h.b16 %v1035
        %v1295 = vunpack.c.l.b16 %v1036
        %v1296 = vunpack.c.h.b16 %v1036
        %v1297 = vunpack.c.l.b16 %v1037
        %v1298 = vunpack.c.h.b16 %v1037
        %v1299 = vunpack.c.l.b16 %v1038
        %v1300 = vunpack.c.h.b16 %v1038
        %v1301 = vunpack.c.l.b16 %v1039
        %v1302 = vunpack.c.h.b16 %v1039
        %v1303 = vunpack.c.l.b16 %v1040
        %v1304 = vunpack.c.h.b16 %v1040
        %v1305 = vunpack.c.l.b16 %v1041
        %v1306 = vunpack.c.h.b16 %v1041
        %v1307 = vunpack.c.l.b16 %v1042
        %v1308 = vunpack.c.h.b16 %v1042
        %v1309 = vunpack.c.l.b16 %v1043
        %v1310 = vunpack.c.h.b16 %v1043
        %v1311 = vunpack.c.l.b16 %v1044
        %v1312 = vunpack.c.h.b16 %v1044
        %v1313 = vunpack.c.l.b16 %v1045
        %v1314 = vunpack.c.h.b16 %v1045
        %v1315 = vunpack.c.l.b16 %v1046
        %v1316 = vunpack.c.h.b16 %v1046
        %v1317 = vunpack.c.l.b16 %v1047
        %v1318 = vunpack.c.h.b16 %v1047
        %v1319 = vunpack.c.l.b16 %v1048
        %v1320 = vunpack.c.h.b16 %v1048
        %v1321 = vunpack.c.l.b16 %v1049
        %v1322 = vunpack.c.h.b16 %v1049
        %v1323 = vunpack.c.l.b16 %v1050
        %v1324 = vunpack.c.h.b16 %v1050
        %v1325 = vunpack.c.l.b16 %v1051
        %v1326 = vunpack.c.h.b16 %v1051
        %v1327 = vunpack.c.l.b16 %v1052
        %v1328 = vunpack.c.h.b16 %v1052
        %v1329 = vunpack.c.l.b16 %v1053
        %v1330 = vunpack.c.h.b16 %v1053
        %v1331 = vunpack.c.l.b16 %v1054
        %v1332 = vunpack.c.h.b16 %v1054
        %v1333 = vunpack.c.l.b16 %v1055
        %v1334 = vunpack.c.h.b16 %v1055
        %v1335 = vunpack.c.l.b16 %v1056
        %v1336 = vunpack.c.h.b16 %v1056
        %v1337 = vunpack.c.l.b16 %v1057
        %v1338 = vunpack.c.h.b16 %v1057
        %v1339 = vunpack.c.l.b16 %v1058
        %v1340 = vunpack.c.h.b16 %v1058
        %v1341 = vunpack.c.l.b16 %v1059
        %v1342 = vunpack.c.h.b16 %v1059
        %v1343 = vunpack.c.l.b16 %v1060
        %v1344 = vunpack.c.h.b16 %v1060
        %v1345 = vunpack.c.l.b16 %v1061
        %v1346 = vunpack.c.h.b16 %v1061
        %v1347 = vunpack.c.l.b16 %v1062
        %v1348 = vunpack.c.h.b16 %v1062
        %v1349 = vunpack.c.l.b16 %v1063
        %v1350 = vunpack.c.h.b16 %v1063
        %v1351 = vunpack.c.l.b16 %v1064
        %v1352 = vunpack.c.h.b16 %v1064
        %v1353 = vunpack.c.l.b16 %v1065
        %v1354 = vunpack.c.h.b16 %v1065
        %v1355 = vunpack.c.l.b16 %v1066
        %v1356 = vunpack.c.h.b16 %v1066
        %v1357 = vunpack.c.l.b16 %v1067
        %v1358 = vunpack.c.h.b16 %v1067
        %v1359 = vunpack.c.l.b16 %v1068
        %v1360 = vunpack.c.h.b16 %v1068
        %v1361 = vunpack.c.l.b16 %v1069
        %v1362 = vunpack.c.h.b16 %v1069
        %v1363 = vunpack.c.l.b16 %v1070
        %v1364 = vunpack.c.h.b16 %v1070
        %v1365 = vunpack.c.l.b16 %v1071
        %v1366 = vunpack.c.h.b16 %v1071
        %v1367 = vunpack.c.l.b16 %v1072
        %v1368 = vunpack.c.h.b16 %v1072
        %v1369 = vunpack.c.l.b16 %v1073
        %v1370 = vunpack.c.h.b16 %v1073
        %v1371 = vunpack.c.l.b16 %v1074
        %v1372 = vunpack.c.h.b16 %v1074
        %v1373 = vunpack.c.l.b16 %v1075
        %v1374 = vunpack.c.h.b16 %v1075
        %v1375 = vunpack.c.l.b16 %v1076
        %v1376 = vunpack.c.h.b16 %v1076
        %v1377 = vunpack.c.l.b16 %v1077
        %v1378 = vunpack.c.h.b16 %v1077
        %v1379 = vunpack.c.l.b16 %v1078
        %v1380 = vunpack.c.h.b16 %v1078
        %v1381 = vunpack.c.l.b16 %v1079
        %v1382 = vunpack.c.h.b16 %v1079
        %v1383 = vunpack.c.l.b16 %v1080
        %v1384 = vunpack.c.h.b16 %v1080
        %v1385 = vunpack.c.l.b16 %v1081
        %v1386 = vunpack.c.h.b16 %v1081
        %v1387 = vunpack.c.l.b16 %v1082
        %v1388 = vunpack.c.h.b16 %v1082
        %v1389 = vunpack.c.l.b16 %v1083
        %v1390 = vunpack.c.h.b16 %v1083
        %v1391 = vunpack.c.l.b16 %v1084
        %v1392 = vunpack.c.h.b16 %v1084
        %v1393 = vunpack.c.l.b16 %v1085
        %v1394 = vunpack.c.h.b16 %v1085
        %v1395 = vunpack.c.l.b16 %v1086
        %v1396 = vunpack.c.h.b16 %v1086
        %v1397 = vunpack.c.l.b16 %v1087
        %v1398 = vunpack.c.h.b16 %v1087
        %v1399 = vunpack.c.l.b16 %v1088
        %v1400 = vunpack.c.h.b16 %v1088
        %v1401 = vunpack.c.l.b16 %v1089
        %v1402 = vunpack.c.h.b16 %v1089
        %v1403 = vunpack.c.l.b16 %v1090
        %v1404 = vunpack.c.h.b16 %v1090
        %v1405 = vunpack.c.l.b16 %v1091
        %v1406 = vunpack.c.h.b16 %v1091
        %v1407 = vunpack.c.l.b16 %v1092
        %v1408 = vunpack.c.h.b16 %v1092
        %v1409 = vunpack.c.l.b16 %v1093
        %v1410 = vunpack.c.h.b16 %v1093
        %v1411 = vunpack.c.l.b16 %v1094
        %v1412 = vunpack.c.h.b16 %v1094
        %v1413 = vunpack.c.l.b16 %v1095
        %v1414 = vunpack.c.h.b16 %v1095
        %v1415 = vunpack.c.l.b16 %v1096
        %v1416 = vunpack.c.h.b16 %v1096
        %v1417 = vunpack.c.l.b16 %v1097
        %v1418 = vunpack.c.h.b16 %v1097
        %v1419 = vunpack.c.l.b16 %v1098
        %v1420 = vunpack.c.h.b16 %v1098
        %v1421 = vunpack.c.l.b16 %v1099
        %v1422 = vunpack.c.h.b16 %v1099
        %v1423 = vunpack.c.l.b16 %v1100
        %v1424 = vunpack.c.h.b16 %v1100
        %v1425 = vunpack.c.l.b16 %v1101
        %v1426 = vunpack.c.h.b16 %v1101
        %v1427 = vunpack.c.l.b16 %v1102
        %v1428 = vunpack.c.h.b16 %v1102
        %v1429 = vunpack.c.l.b16 %v1103
        %v1430 = vunpack.c.h.b16 %v1103
        %v1431 = vunpack.c.l.b16 %v1104
        %v1432 = vunpack.c.h.b16 %v1104
        %v1433 = vunpack.c.l.b16 %v1105
        %v1434 = vunpack.c.h.b16 %v1105
        %v1435 = vunpack.c.l.b16 %v1106
        %v1436 = vunpack.c.h.b16 %v1106
        %v1437 = vunpack.c.l.b16 %v1107
        %v1438 = vunpack.c.h.b16 %v1107
        %v1439 = vunpack.c.l.b16 %v1108
        %v1440 = vunpack.c.h.b16 %v1108
        %v1441 = vunpack.c.l.b16 %v1109
        %v1442 = vunpack.c.h.b16 %v1109
        %v1443 = vunpack.c.l.b16 %v1110
        %v1444 = vunpack.c.h.b16 %v1110
        %v1445 = vunpack.c.l.b16 %v1111
        %v1446 = vunpack.c.h.b16 %v1111
        %v1447 = vunpack.c.l.b16 %v1112
        %v1448 = vunpack.c.h.b16 %v1112
        %v1449 = vpack.c.b16 %v1263, %v1257
        %v1450 = vpack.c.b16 %v1264, %v1258
        %v1451 = vpack.c.b16 %v1265, %v1259
        %v1452 = vpack.c.b16 %v1266, %v1260
        %v1453 = vpack.c.b16 %v1267, %v1261
        %v1454 = vpack.c.b16 %v1268, %v1262
        %v1455 = vpack.c.b16 %v1275, %v1269
        %v1456 = vpack.c.b16 %v1276, %v1270
        %v1457 = vpack.c.b16 %v1277, %v1271
        %v1458 = vpack.c.b16 %v1278, %v1272
        %v1459 = vpack.c.b16 %v1279, %v1273
        %v1460 = vpack.c.b16 %v1280, %v1274
        %v1461 = vpack.c.b16 %v1287, %v1281
        %v1462 = vpack.c.b16 %v1288, %v1282
        %v1463 = vpack.c.b16 %v1289, %v1283
        %v1464 = vpack.c.b16 %v1290, %v1284
        %v1465 = vpack.c.b16 %v1291, %v1285
        %v1466 = vpack.c.b16 %v1292, %v1286
        %v1467 = vpack.c.b16 %v1299, %v1293
        %v1468 = vpack.c.b16 %v1300, %v1294
        %v1469 = vpack.c.b16 %v1301, %v1295
        %v1470 = vpack.c.b16 %v1302, %v1296
        %v1471 = vpack.c.b16 %v1303, %v1297
        %v1472 = vpack.c.b16 %v1304, %v1298
        %v1473 = vpack.c.b16 %v1311, %v1305
        %v1474 = vpack.c.b16 %v1312, %v1306
        %v1475 = vpack.c.b16 %v1313, %v1307
        %v1476 = vpack.c.b16 %v1314, %v1308
        %v1477 = vpack.c.b16 %v1315, %v1309
        %v1478 = vpack.c.b16 %v1316, %v1310
        %v1479 = vpack.c.b16 %v1323, %v1317
        %v1480 = vpack.c.b16 %v1324, %v1318
        %v1481 = vpack.c.b16 %v1325, %v1319
        %v1482 = vpack.c.b16 %v1326, %v1320
        %v1483 = vpack.c.b16 %v1327, %v1321
        %v1484 = vpack.c.b16 %v1328, %v1322
        %v1485 = vpack.c.b16 %v1335, %v1329
        %v1486 = vpack.c.b16 %v1336, %v1330
        %v1487 = vpack.c.b16 %v1337, %v1331
        %v1488 = vpack.c.b16 %v1338, %v1332
        %v1489 = vpack.c.b16 %v1339, %v1333
        %v1490 = vpack.c.b16 %v1340, %v1334
        %v1491 = vpack.c.b16 %v1347, %v1341
        %v1492 = vpack.c.b16 %v1348, %v1342
        %v1493 = vpack.c.b16 %v1349, %v1343
        %v1494 = vpack.c.b16 %v1350, %v1344
        %v1495 = vpack.c.b16 %v1351, %v1345
        %v1496 = vpack.c.b16 %v1352, %v1346
        %v1497 = vpack.c.b16 %v1359, %v1353
        %v1498 = vpack.c.b16 %v1360, %v1354
        %v1499 = vpack.c.b16 %v1361, %v1355
        %v1500 = vpack.c.b16 %v1362, %v1356
        %v1501 = vpack.c.b16 %v1363, %v1357
        %v1502 = vpack.c.b16 %v1364, %v1358
        %v1503 = vpack.c.b16 %v1371, %v1365
        %v1504 = vpack.c.b16 %v1372, %v1366
        %v1505 = vpack.c.b16 %v1373, %v1367
        %v1506 = vpack.c.b16 %v1374, %v1368
        %v1507 = vpack.c.b16 %v1375, %v1369
        %v1508 = vpack.c.b16 %v1376, %v1370
        %v1509 = vpack.c.b16 %v1383, %v1377
        %v1510 = vpack.c.b16 %v1384, %v1378
        %v1511 = vpack.c.b16 %v1385, %v1379
        %v1512 = vpack.c.b16 %v1386, %v1380
        %v1513 = vpack.c.b16 %v1387, %v1381
        %v1514 = vpack.c.b16 %v1388, %v1382
        %v1515 = vpack.c.b16 %v1395, %v1389
        %v1516 = vpack.c.b16 %v1396, %v1390
        %v1517 = vpack.c.b16 %v1397, %v1391
        %v1518 = vpack.c.b16 %v1398, %v1392
        %v1519 = vpack.c.b16 %v1399, %v1393
        %v1520 = vpack.c.b16 %v1400, %v1394
        %v1521 = vpack.c.b16 %v1407, %v1401
        %v1522 = vpack.c.b16 %v1408, %v1402
        %v1523 = vpack.c.b16 %v1409, %v1403
        %v1524 = vpack.c.b16 %v1410, %v1404
        %v1525 = vpack.c.b16 %v1411, %v1405
        %v1526 = vpack.c.b16 %v1412, %v1406
        %v1527 = vpack.c.b16 %v1419, %v1413
        %v1528 = vpack.c.b16 %v1420, %v1414
        %v1529 = vpack.c.b16 %v1421, %v1415
        %v1530 = vpack.c.b16 %v1422, %v1416
        %v1531 = vpack.c.b16 %v1423, %v1417
        %v1532 = vpack.c.b16 %v1424, %v1418
        %v1533 = vpack.c.b16 %v1431, %v1425
        %v1534 = vpack.c.b16 %v1432, %v1426
        %v1535 = vpack.c.b16 %v1433, %v1427
        %v1536 = vpack.c.b16 %v1434, %v1428
        %v1537 = vpack.c.b16 %v1435, %v1429
        %v1538 = vpack.c.b16 %v1436, %v1430
        %v1539 = vpack.c.b16 %v1443, %v1437
        %v1540 = vpack.c.b16 %v1444, %v1438
        %v1541 = vpack.c.b16 %v1445, %v1439
        %v1542 = vpack.c.b16 %v1446, %v1440
        %v1543 = vpack.c.b16 %v1447, %v1441
        %v1544 = vpack.c.b16 %v1448, %v1442
        %1641 = vmatprep.subr.bf16.mxu0 %v1450
        %1642 = vmatpush1.bf16.msra.mxu0 %v1449
        %1643 = vmatprep.subr.bf16.mxu0 %v1456
        %1644 = vmatpush1.bf16.msra.mxu0 %v1455
        %1645 = vmatprep.subr.bf16.mxu0 %v1462
        %1646 = vmatpush1.bf16.msra.mxu0 %v1461
        %1647 = vmatprep.subr.bf16.mxu0 %v1468
        %1648 = vmatpush1.bf16.msra.mxu0 %v1467
        %1649 = vmatprep.subr.bf16.mxu0 %v1474
        %1650 = vmatpush1.bf16.msra.mxu0 %v1473
        %1651 = vmatprep.subr.bf16.mxu0 %v1480
        %1652 = vmatpush1.bf16.msra.mxu0 %v1479
        %1653 = vmatprep.subr.bf16.mxu0 %v1486
        %1654 = vmatpush1.bf16.msra.mxu0 %v1485
        %1655 = vmatprep.subr.bf16.mxu0 %v1492
        %1656 = vmatpush1.bf16.msra.mxu0 %v1491
        %1657 = vmatprep.subr.bf16.mxu0 %v1498
        %1658 = vmatpush1.bf16.msra.mxu0 %v1497
        %1659 = vmatprep.subr.bf16.mxu0 %v1504
        %1660 = vmatpush1.bf16.msra.mxu0 %v1503
        %1661 = vmatprep.subr.bf16.mxu0 %v1510
        %1662 = vmatpush1.bf16.msra.mxu0 %v1509
        %1663 = vmatprep.subr.bf16.mxu0 %v1516
        %1664 = vmatpush1.bf16.msra.mxu0 %v1515
        %1665 = vmatprep.subr.bf16.mxu0 %v1522
        %1666 = vmatpush1.bf16.msra.mxu0 %v1521
        %1667 = vmatprep.subr.bf16.mxu0 %v1528
        %1668 = vmatpush1.bf16.msra.mxu0 %v1527
        %1669 = vmatprep.subr.bf16.mxu0 %v1534
        %1670 = vmatpush1.bf16.msra.mxu0 %v1533
        %1671 = vmatprep.subr.bf16.mxu0 %v1540
        %1672 = vmatpush1.bf16.msra.mxu0 %v1539
        %1673 = vmatprep.mubr.bf16.mxu0 %v1114
        %1674 = vmatmul.mubr.bf16.gmra.mrb[0].mxu0 %v1113
        %v1675 = vpop.f32.mrb[0].mxu0
        %v1676 = vadd.f32 %v1134, %v1675
        %v1677 = vpop.f32.mrb[0].mxu0
        %v1678 = vadd.f32 %v1138, %v1677
        %v1679 = vpop.f32.mrb[0].mxu0
        %v1680 = vadd.f32 %v1134, %v1679
        %v1681 = vpop.f32.mrb[0].mxu0
        %v1682 = vadd.f32 %v1138, %v1681
        %1683 = vmatprep.mubr.bf16.mxu0 %v1116
        %1684 = vmatmul.mubr.bf16.gmra.mrb[0].mxu0 %v1115
        %v1685 = vpop.f32.mrb[0].mxu0
        %v1686 = vadd.f32 %v1134, %v1685
        %v1687 = vpop.f32.mrb[0].mxu0
        %v1688 = vadd.f32 %v1138, %v1687
        %v1689 = vpop.f32.mrb[0].mxu0
        %v1690 = vadd.f32 %v1134, %v1689
        %v1691 = vpop.f32.mrb[0].mxu0
        %v1692 = vadd.f32 %v1138, %v1691
        %1693 = vmatprep.mubr.bf16.mxu0 %v1118
        %1694 = vmatmul.mubr.bf16.gmra.mrb[0].mxu0 %v1117
        %v1695 = vpop.f32.mrb[0].mxu0
        %v1696 = vadd.f32 %v1134, %v1695
        %v1697 = vpop.f32.mrb[0].mxu0
        %v1698 = vadd.f32 %v1138, %v1697
        %v1699 = vpop.f32.mrb[0].mxu0
        %v1700 = vadd.f32 %v1134, %v1699
        %v1701 = vpop.f32.mrb[0].mxu0
        %v1702 = vadd.f32 %v1138, %v1701
        %1703 = vmatprep.mubr.bf16.mxu0 %v1120
        %1704 = vmatmul.mubr.bf16.gmra.mrb[0].mxu0 %v1119
        %v1705 = vpop.f32.mrb[0].mxu0
        %v1706 = vadd.f32 %v1134, %v1705
        %v1707 = vpop.f32.mrb[0].mxu0
        %v1708 = vadd.f32 %v1138, %v1707
        %v1709 = vpop.f32.mrb[0].mxu0
        %v1710 = vadd.f32 %v1134, %v1709
        %v1711 = vpop.f32.mrb[0].mxu0
        %v1712 = vadd.f32 %v1138, %v1711
        %1713 = vmatprep.mubr.bf16.mxu0 %v1122
        %1714 = vmatmul.mubr.bf16.gmra.mrb[0].mxu0 %v1121
        %v1715 = vpop.f32.mrb[0].mxu0
        %v1716 = vadd.f32 %v1134, %v1715
        %v1717 = vpop.f32.mrb[0].mxu0
        %v1718 = vadd.f32 %v1138, %v1717
        %v1719 = vpop.f32.mrb[0].mxu0
        %v1720 = vadd.f32 %v1134, %v1719
        %v1721 = vpop.f32.mrb[0].mxu0
        %v1722 = vadd.f32 %v1138, %v1721
        %1723 = vmatprep.mubr.bf16.mxu0 %v1124
        %1724 = vmatmul.mubr.bf16.gmra.mrb[0].mxu0 %v1123
        %v1725 = vpop.f32.mrb[0].mxu0
        %v1726 = vadd.f32 %v1134, %v1725
        %v1727 = vpop.f32.mrb[0].mxu0
        %v1728 = vadd.f32 %v1138, %v1727
        %v1729 = vpop.f32.mrb[0].mxu0
        %v1730 = vadd.f32 %v1134, %v1729
        %v1731 = vpop.f32.mrb[0].mxu0
        %v1732 = vadd.f32 %v1138, %v1731
        %1733 = vmatprep.mubr.bf16.mxu0 %v1126
        %1734 = vmatmul.mubr.bf16.gmra.mrb[0].mxu0 %v1125
        %v1735 = vpop.f32.mrb[0].mxu0
        %v1736 = vadd.f32 %v1134, %v1735
        %v1737 = vpop.f32.mrb[0].mxu0
        %v1738 = vadd.f32 %v1138, %v1737
        %v1739 = vpop.f32.mrb[0].mxu0
        %v1740 = vadd.f32 %v1134, %v1739
        %v1741 = vpop.f32.mrb[0].mxu0
        %v1742 = vadd.f32 %v1138, %v1741
        %1743 = vmatprep.mubr.bf16.mxu0 %v1128
        %1744 = vmatmul.mubr.bf16.gmra.mrb[0].mxu0 %v1127
        %v1745 = vpop.f32.mrb[0].mxu0
        %v1746 = vadd.f32 %v1134, %v1745
        %v1747 = vpop.f32.mrb[0].mxu0
        %v1748 = vadd.f32 %v1138, %v1747
        %v1749 = vpop.f32.mrb[0].mxu0
        %v1750 = vadd.f32 %v1134, %v1749
        %v1751 = vpop.f32.mrb[0].mxu0
        %v1752 = vadd.f32 %v1138, %v1751
        %1753 = vdwg.mxu0
        %1754 = vmatprep.subr.bf16.mxu0 %v1452
        %1755 = vmatpush1.bf16.msra.mxu0 %v1451
        %1756 = vmatprep.subr.bf16.mxu0 %v1458
        %1757 = vmatpush1.bf16.msra.mxu0 %v1457
        %1758 = vmatprep.subr.bf16.mxu0 %v1464
        %1759 = vmatpush1.bf16.msra.mxu0 %v1463
        %1760 = vmatprep.subr.bf16.mxu0 %v1470
        %1761 = vmatpush1.bf16.msra.mxu0 %v1469
        %1762 = vmatprep.subr.bf16.mxu0 %v1476
        %1763 = vmatpush1.bf16.msra.mxu0 %v1475
        %1764 = vmatprep.subr.bf16.mxu0 %v1482
        %1765 = vmatpush1.bf16.msra.mxu0 %v1481
        %1766 = vmatprep.subr.bf16.mxu0 %v1488
        %1767 = vmatpush1.bf16.msra.mxu0 %v1487
        %1768 = vmatprep.subr.bf16.mxu0 %v1494
        %1769 = vmatpush1.bf16.msra.mxu0 %v1493
        %1770 = vmatprep.subr.bf16.mxu0 %v1500
        %1771 = vmatpush1.bf16.msra.mxu0 %v1499
        %1772 = vmatprep.subr.bf16.mxu0 %v1506
        %1773 = vmatpush1.bf16.msra.mxu0 %v1505
        %1774 = vmatprep.subr.bf16.mxu0 %v1512
        %1775 = vmatpush1.bf16.msra.mxu0 %v1511
        %1776 = vmatprep.subr.bf16.mxu0 %v1518
        %1777 = vmatpush1.bf16.msra.mxu0 %v1517
        %1778 = vmatprep.subr.bf16.mxu0 %v1524
        %1779 = vmatpush1.bf16.msra.mxu0 %v1523
        %1780 = vmatprep.subr.bf16.mxu0 %v1530
        %1781 = vmatpush1.bf16.msra.mxu0 %v1529
        %1782 = vmatprep.subr.bf16.mxu0 %v1536
        %1783 = vmatpush1.bf16.msra.mxu0 %v1535
        %1784 = vmatprep.subr.bf16.mxu0 %v1542
        %1785 = vmatpush1.bf16.msra.mxu0 %v1541
        %1786 = vmatprep.mubr.bf16.mxu0 %v1114
        %1787 = vmatmul.mubr.bf16.gmra.mrb[0].mxu0 %v1113
        %v1788 = vpop.f32.mrb[0].mxu0
        %v1789 = vadd.f32 %v1142, %v1788
        %v1790 = vpop.f32.mrb[0].mxu0
        %v1791 = vadd.f32 %v1146, %v1790
        %v1792 = vpop.f32.mrb[0].mxu0
        %v1793 = vadd.f32 %v1142, %v1792
        %v1794 = vpop.f32.mrb[0].mxu0
        %v1795 = vadd.f32 %v1146, %v1794
        %1796 = vmatprep.mubr.bf16.mxu0 %v1116
        %1797 = vmatmul.mubr.bf16.gmra.mrb[0].mxu0 %v1115
        %v1798 = vpop.f32.mrb[0].mxu0
        %v1799 = vadd.f32 %v1142, %v1798
        %v1800 = vpop.f32.mrb[0].mxu0
        %v1801 = vadd.f32 %v1146, %v1800
        %v1802 = vpop.f32.mrb[0].mxu0
        %v1803 = vadd.f32 %v1142, %v1802
        %v1804 = vpop.f32.mrb[0].mxu0
        %v1805 = vadd.f32 %v1146, %v1804
        %1806 = vmatprep.mubr.bf16.mxu0 %v1118
        %1807 = vmatmul.mubr.bf16.gmra.mrb[0].mxu0 %v1117
        %v1808 = vpop.f32.mrb[0].mxu0
        %v1809 = vadd.f32 %v1142, %v1808
        %v1810 = vpop.f32.mrb[0].mxu0
        %v1811 = vadd.f32 %v1146, %v1810
        %v1812 = vpop.f32.mrb[0].mxu0
        %v1813 = vadd.f32 %v1142, %v1812
        %v1814 = vpop.f32.mrb[0].mxu0
        %v1815 = vadd.f32 %v1146, %v1814
        %1816 = vmatprep.mubr.bf16.mxu0 %v1120
        %1817 = vmatmul.mubr.bf16.gmra.mrb[0].mxu0 %v1119
        %v1818 = vpop.f32.mrb[0].mxu0
        %v1819 = vadd.f32 %v1142, %v1818
        %v1820 = vpop.f32.mrb[0].mxu0
        %v1821 = vadd.f32 %v1146, %v1820
        %v1822 = vpop.f32.mrb[0].mxu0
        %v1823 = vadd.f32 %v1142, %v1822
        %v1824 = vpop.f32.mrb[0].mxu0
        %v1825 = vadd.f32 %v1146, %v1824
        %1826 = vmatprep.mubr.bf16.mxu0 %v1122
        %1827 = vmatmul.mubr.bf16.gmra.mrb[0].mxu0 %v1121
        %v1828 = vpop.f32.mrb[0].mxu0
        %v1829 = vadd.f32 %v1142, %v1828
        %v1830 = vpop.f32.mrb[0].mxu0
        %v1831 = vadd.f32 %v1146, %v1830
        %v1832 = vpop.f32.mrb[0].mxu0
        %v1833 = vadd.f32 %v1142, %v1832
        %v1834 = vpop.f32.mrb[0].mxu0
        %v1835 = vadd.f32 %v1146, %v1834
        %1836 = vmatprep.mubr.bf16.mxu0 %v1124
        %1837 = vmatmul.mubr.bf16.gmra.mrb[0].mxu0 %v1123
        %v1838 = vpop.f32.mrb[0].mxu0
        %v1839 = vadd.f32 %v1142, %v1838
        %v1840 = vpop.f32.mrb[0].mxu0
        %v1841 = vadd.f32 %v1146, %v1840
        %v1842 = vpop.f32.mrb[0].mxu0
        %v1843 = vadd.f32 %v1142, %v1842
        %v1844 = vpop.f32.mrb[0].mxu0
        %v1845 = vadd.f32 %v1146, %v1844
        %1846 = vmatprep.mubr.bf16.mxu0 %v1126
        %1847 = vmatmul.mubr.bf16.gmra.mrb[0].mxu0 %v1125
        %v1848 = vpop.f32.mrb[0].mxu0
        %v1849 = vadd.f32 %v1142, %v1848
        %v1850 = vpop.f32.mrb[0].mxu0
        %v1851 = vadd.f32 %v1146, %v1850
        %v1852 = vpop.f32.mrb[0].mxu0
        %v1853 = vadd.f32 %v1142, %v1852
        %v1854 = vpop.f32.mrb[0].mxu0
        %v1855 = vadd.f32 %v1146, %v1854
        %1856 = vmatprep.mubr.bf16.mxu0 %v1128
        %1857 = vmatmul.mubr.bf16.gmra.mrb[0].mxu0 %v1127
        %v1858 = vpop.f32.mrb[0].mxu0
        %v1859 = vadd.f32 %v1142, %v1858
        %v1860 = vpop.f32.mrb[0].mxu0
        %v1861 = vadd.f32 %v1146, %v1860
        %v1862 = vpop.f32.mrb[0].mxu0
        %v1863 = vadd.f32 %v1142, %v1862
        %v1864 = vpop.f32.mrb[0].mxu0
        %v1865 = vadd.f32 %v1146, %v1864
        %1866 = vdwg.mxu0
        %1867 = vmatprep.subr.bf16.mxu0 %v1454
        %1868 = vmatpush1.bf16.msra.mxu0 %v1453
        %1869 = vmatprep.subr.bf16.mxu0 %v1460
        %1870 = vmatpush1.bf16.msra.mxu0 %v1459
        %1871 = vmatprep.subr.bf16.mxu0 %v1466
        %1872 = vmatpush1.bf16.msra.mxu0 %v1465
        %1873 = vmatprep.subr.bf16.mxu0 %v1472
        %1874 = vmatpush1.bf16.msra.mxu0 %v1471
        %1875 = vmatprep.subr.bf16.mxu0 %v1478
        %1876 = vmatpush1.bf16.msra.mxu0 %v1477
        %1877 = vmatprep.subr.bf16.mxu0 %v1484
        %1878 = vmatpush1.bf16.msra.mxu0 %v1483
        %1879 = vmatprep.subr.bf16.mxu0 %v1490
        %1880 = vmatpush1.bf16.msra.mxu0 %v1489
        %1881 = vmatprep.subr.bf16.mxu0 %v1496
        %1882 = vmatpush1.bf16.msra.mxu0 %v1495
        %1883 = vmatprep.subr.bf16.mxu0 %v1502
        %1884 = vmatpush1.bf16.msra.mxu0 %v1501
        %1885 = vmatprep.subr.bf16.mxu0 %v1508
        %1886 = vmatpush1.bf16.msra.mxu0 %v1507
        %1887 = vmatprep.subr.bf16.mxu0 %v1514
        %1888 = vmatpush1.bf16.msra.mxu0 %v1513
        %1889 = vmatprep.subr.bf16.mxu0 %v1520
        %1890 = vmatpush1.bf16.msra.mxu0 %v1519
        %1891 = vmatprep.subr.bf16.mxu0 %v1526
        %1892 = vmatpush1.bf16.msra.mxu0 %v1525
        %1893 = vmatprep.subr.bf16.mxu0 %v1532
        %1894 = vmatpush1.bf16.msra.mxu0 %v1531
        %1895 = vmatprep.subr.bf16.mxu0 %v1538
        %1896 = vmatpush1.bf16.msra.mxu0 %v1537
        %1897 = vmatprep.subr.bf16.mxu0 %v1544
        %1898 = vmatpush1.bf16.msra.mxu0 %v1543
        %1899 = vmatprep.mubr.bf16.mxu0 %v1114
        %1900 = vmatmul.mubr.bf16.gmra.mrb[0].mxu0 %v1113
        %v1901 = vpop.f32.mrb[0].mxu0
        %v1902 = vadd.f32 %v1150, %v1901
        %v1903 = vpop.f32.mrb[0].mxu0
        %v1904 = vadd.f32 %v1154, %v1903
        %v1905 = vpop.f32.mrb[0].mxu0
        %v1906 = vadd.f32 %v1150, %v1905
        %v1907 = vpop.f32.mrb[0].mxu0
        %v1908 = vadd.f32 %v1154, %v1907
        %1909 = vmatprep.mubr.bf16.mxu0 %v1116
        %1910 = vmatmul.mubr.bf16.gmra.mrb[0].mxu0 %v1115
        %v1911 = vpop.f32.mrb[0].mxu0
        %v1912 = vadd.f32 %v1150, %v1911
        %v1913 = vpop.f32.mrb[0].mxu0
        %v1914 = vadd.f32 %v1154, %v1913
        %v1915 = vpop.f32.mrb[0].mxu0
        %v1916 = vadd.f32 %v1150, %v1915
        %v1917 = vpop.f32.mrb[0].mxu0
        %v1918 = vadd.f32 %v1154, %v1917
        %1919 = vmatprep.mubr.bf16.mxu0 %v1118
        %1920 = vmatmul.mubr.bf16.gmra.mrb[0].mxu0 %v1117
        %v1921 = vpop.f32.mrb[0].mxu0
        %v1922 = vadd.f32 %v1150, %v1921
        %v1923 = vpop.f32.mrb[0].mxu0
        %v1924 = vadd.f32 %v1154, %v1923
        %v1925 = vpop.f32.mrb[0].mxu0
        %v1926 = vadd.f32 %v1150, %v1925
        %v1927 = vpop.f32.mrb[0].mxu0
        %v1928 = vadd.f32 %v1154, %v1927
        %1929 = vmatprep.mubr.bf16.mxu0 %v1120
        %1930 = vmatmul.mubr.bf16.gmra.mrb[0].mxu0 %v1119
        %v1931 = vpop.f32.mrb[0].mxu0
        %v1932 = vadd.f32 %v1150, %v1931
        %v1933 = vpop.f32.mrb[0].mxu0
        %v1934 = vadd.f32 %v1154, %v1933
        %v1935 = vpop.f32.mrb[0].mxu0
        %v1936 = vadd.f32 %v1150, %v1935
        %v1937 = vpop.f32.mrb[0].mxu0
        %v1938 = vadd.f32 %v1154, %v1937
        %1939 = vmatprep.mubr.bf16.mxu0 %v1122
        %1940 = vmatmul.mubr.bf16.gmra.mrb[0].mxu0 %v1121
        %v1941 = vpop.f32.mrb[0].mxu0
        %v1942 = vadd.f32 %v1150, %v1941
        %v1943 = vpop.f32.mrb[0].mxu0
        %v1944 = vadd.f32 %v1154, %v1943
        %v1945 = vpop.f32.mrb[0].mxu0
        %v1946 = vadd.f32 %v1150, %v1945
        %v1947 = vpop.f32.mrb[0].mxu0
        %v1948 = vadd.f32 %v1154, %v1947
        %1949 = vmatprep.mubr.bf16.mxu0 %v1124
        %1950 = vmatmul.mubr.bf16.gmra.mrb[0].mxu0 %v1123
        %v1951 = vpop.f32.mrb[0].mxu0
        %v1952 = vadd.f32 %v1150, %v1951
        %v1953 = vpop.f32.mrb[0].mxu0
        %v1954 = vadd.f32 %v1154, %v1953
        %v1955 = vpop.f32.mrb[0].mxu0
        %v1956 = vadd.f32 %v1150, %v1955
        %v1957 = vpop.f32.mrb[0].mxu0
        %v1958 = vadd.f32 %v1154, %v1957
        %1959 = vmatprep.mubr.bf16.mxu0 %v1126
        %1960 = vmatmul.mubr.bf16.gmra.mrb[0].mxu0 %v1125
        %v1961 = vpop.f32.mrb[0].mxu0
        %v1962 = vadd.f32 %v1150, %v1961
        %v1963 = vpop.f32.mrb[0].mxu0
        %v1964 = vadd.f32 %v1154, %v1963
        %v1965 = vpop.f32.mrb[0].mxu0
        %v1966 = vadd.f32 %v1150, %v1965
        %v1967 = vpop.f32.mrb[0].mxu0
        %v1968 = vadd.f32 %v1154, %v1967
        %1969 = vmatprep.mubr.bf16.mxu0 %v1128
        %1970 = vmatmul.mubr.bf16.gmra.mrb[0].mxu0 %v1127
        %v1971 = vpop.f32.mrb[0].mxu0
        %v1972 = vadd.f32 %v1150, %v1971
        %v1973 = vpop.f32.mrb[0].mxu0
        %v1974 = vadd.f32 %v1154, %v1973
        %v1975 = vpop.f32.mrb[0].mxu0
        %v1976 = vadd.f32 %v1150, %v1975
        %v1977 = vpop.f32.mrb[0].mxu0
        %v1978 = vadd.f32 %v1154, %v1977
        %1979 = vdwg.mxu0
        %v1980 = vld [vmem:[%s682] sm:$0xff]
        %v1981 = vld [vmem:[%s682 + $0x8] sm:$0xff]
        %v1982 = vld [vmem:[%s682 + $0x10] sm:$0xff]
        %v1983 = vld [vmem:[%s682 + $0x18] sm:$0xff]
        %v1984 = vld [vmem:[%s682 + $0x20] sm:$0xff]
        %v1985 = vld [vmem:[%s682 + $0x28] sm:$0xff]
        %v1986 = vld [vmem:[%s682 + $0x30] sm:$0xff]
        %v1987 = vld [vmem:[%s682 + $0x38] sm:$0xff]
        %v1988 = vld [vmem:[%s682 + $0x40] sm:$0xff]
        %v1989 = vld [vmem:[%s682 + $0x48] sm:$0xff]
        %v1990 = vld [vmem:[%s682 + $0x50] sm:$0xff]
        %v1991 = vld [vmem:[%s682 + $0x58] sm:$0xff]
        %v1992 = vld [vmem:[%s682 + $0x60] sm:$0xff]
        %v1993 = vld [vmem:[%s682 + $0x68] sm:$0xff]
        %v1994 = vld [vmem:[%s682 + $0x70] sm:$0xff]
        %v1995 = vld [vmem:[%s682 + $0x78] sm:$0xff]
        %v1996 = vld [vmem:[%s682 + $0x80] sm:$0xff]
        %v1997 = vld [vmem:[%s682 + $0x88] sm:$0xff]
        %v1998 = vld [vmem:[%s682 + $0x90] sm:$0xff]
        %v1999 = vld [vmem:[%s682 + $0x98] sm:$0xff]
        %v2000 = vld [vmem:[%s682 + $0xa0] sm:$0xff]
        %v2001 = vld [vmem:[%s682 + $0xa8] sm:$0xff]
        %v2002 = vld [vmem:[%s682 + $0xb0] sm:$0xff]
        %v2003 = vld [vmem:[%s682 + $0xb8] sm:$0xff]
        %v2004 = vld [vmem:[%s682 + $0xc0] sm:$0xff]
        %v2005 = vld [vmem:[%s682 + $0xc8] sm:$0xff]
        %v2006 = vld [vmem:[%s682 + $0xd0] sm:$0xff]
        %v2007 = vld [vmem:[%s682 + $0xd8] sm:$0xff]
        %v2008 = vld [vmem:[%s682 + $0xe0] sm:$0xff]
        %v2009 = vld [vmem:[%s682 + $0xe8] sm:$0xff]
        %v2010 = vld [vmem:[%s682 + $0xf0] sm:$0xff]
        %v2011 = vld [vmem:[%s682 + $0xf8] sm:$0xff]
        %v2012 = vld [vmem:[%s795] sm:$0x3]
        %v2013 = vpack.c.bf16 %v1680, %v1676
        %v2014 = vpack.c.bf16 %v1690, %v1686
        %v2015 = vpack.c.bf16 %v1700, %v1696
        %v2016 = vpack.c.bf16 %v1710, %v1706
        %v2017 = vpack.c.bf16 %v1720, %v1716
        %v2018 = vpack.c.bf16 %v1730, %v1726
        %v2019 = vpack.c.bf16 %v1740, %v1736
        %v2020 = vpack.c.bf16 %v1750, %v1746
        %v2021 = vpack.c.bf16 %v1793, %v1789
        %v2022 = vpack.c.bf16 %v1803, %v1799
        %v2023 = vpack.c.bf16 %v1813, %v1809
        %v2024 = vpack.c.bf16 %v1823, %v1819
        %v2025 = vpack.c.bf16 %v1833, %v1829
        %v2026 = vpack.c.bf16 %v1843, %v1839
        %v2027 = vpack.c.bf16 %v1853, %v1849
        %v2028 = vpack.c.bf16 %v1863, %v1859
        %2029 = vmatprep.subr.bf16.mxu0 0
        %2030 = vmatpush1.bf16.xpose.msra.mxu0 %v2021
        %2031 = vmatprep.subr.bf16.mxu0 0
        %2032 = vmatpush1.bf16.xpose.msra.mxu0 %v2022
        %2033 = vmatprep.subr.bf16.mxu0 0
        %2034 = vmatpush1.bf16.xpose.msra.mxu0 %v2023
        %2035 = vmatprep.subr.bf16.mxu0 0
        %2036 = vmatpush1.bf16.xpose.msra.mxu0 %v2024
        %2037 = vmatprep.subr.bf16.mxu0 0
        %2038 = vmatpush1.bf16.xpose.msra.mxu0 %v2025
        %2039 = vmatprep.subr.bf16.mxu0 0
        %2040 = vmatpush1.bf16.xpose.msra.mxu0 %v2026
        %2041 = vmatprep.subr.bf16.mxu0 0
        %2042 = vmatpush1.bf16.xpose.msra.mxu0 %v2027
        %2043 = vmatprep.subr.bf16.mxu0 0
        %2044 = vmatpush1.bf16.xpose.msra.mxu0 %v2028
        %2045 = vmatprep.subr.bf16.mxu0 0
        %2046 = vmatpush1.bf16.xpose.msra.mxu0 0
        %2047 = vmatprep.subr.bf16.mxu0 0
        %2048 = vmatpush1.bf16.xpose.msra.mxu0 0
        %2049 = vmatprep.subr.bf16.mxu0 0
        %2050 = vmatpush1.bf16.xpose.msra.mxu0 0
        %2051 = vmatprep.subr.bf16.mxu0 0
        %2052 = vmatpush1.bf16.xpose.msra.mxu0 0
        %2053 = vmatprep.subr.bf16.mxu0 0
        %2054 = vmatpush1.bf16.xpose.msra.mxu0 0
        %2055 = vmatprep.subr.bf16.mxu0 0
        %2056 = vmatpush1.bf16.xpose.msra.mxu0 0
        %2057 = vmatprep.subr.bf16.mxu0 0
        %2058 = vmatpush1.bf16.xpose.msra.mxu0 0
        %2059 = vmatprep.subr.bf16.mxu0 0
        %2060 = vmatpush1.bf16.xpose.msra.mxu0 0
        %2061 = vmatprep.mubr.bf16.mxu0 0
        %2062 = vmatmul.mubr.bf16.gmra.mrb[0].mxu0 %v2013
        %v2063 = vpop.f32.mrb[0].mxu0
        %v2064 = vadd.f32 0.0, %v2063
        %v2065 = vpop.f32.mrb[0].mxu0
        %v2066 = vpop.f32.mrb[0].mxu0
        %v2067 = vadd.f32 0.0, %v2066
        %v2068 = vpop.f32.mrb[0].mxu0
        %2069 = vmatprep.mubr.bf16.mxu0 0
        %2070 = vmatmul.mubr.bf16.gmra.mrb[0].mxu0 %v2014
        %v2071 = vpop.f32.mrb[0].mxu0
        %v2072 = vadd.f32 0.0, %v2071
        %v2073 = vpop.f32.mrb[0].mxu0
        %v2074 = vpop.f32.mrb[0].mxu0
        %v2075 = vadd.f32 0.0, %v2074
        %v2076 = vpop.f32.mrb[0].mxu0
        %2077 = vmatprep.mubr.bf16.mxu0 0
        %2078 = vmatmul.mubr.bf16.gmra.mrb[0].mxu0 %v2015
        %v2079 = vpop.f32.mrb[0].mxu0
        %v2080 = vadd.f32 0.0, %v2079
        %v2081 = vpop.f32.mrb[0].mxu0
        %v2082 = vpop.f32.mrb[0].mxu0
        %v2083 = vadd.f32 0.0, %v2082
        %v2084 = vpop.f32.mrb[0].mxu0
        %2085 = vmatprep.mubr.bf16.mxu0 0
        %2086 = vmatmul.mubr.bf16.gmra.mrb[0].mxu0 %v2016
        %v2087 = vpop.f32.mrb[0].mxu0
        %v2088 = vadd.f32 0.0, %v2087
        %v2089 = vpop.f32.mrb[0].mxu0
        %v2090 = vpop.f32.mrb[0].mxu0
        %v2091 = vadd.f32 0.0, %v2090
        %v2092 = vpop.f32.mrb[0].mxu0
        %2093 = vmatprep.mubr.bf16.mxu0 0
        %2094 = vmatmul.mubr.bf16.gmra.mrb[0].mxu0 %v2017
        %v2095 = vpop.f32.mrb[0].mxu0
        %v2096 = vadd.f32 0.0, %v2095
        %v2097 = vpop.f32.mrb[0].mxu0
        %v2098 = vpop.f32.mrb[0].mxu0
        %v2099 = vadd.f32 0.0, %v2098
        %v2100 = vpop.f32.mrb[0].mxu0
        %2101 = vmatprep.mubr.bf16.mxu0 0
        %2102 = vmatmul.mubr.bf16.gmra.mrb[0].mxu0 %v2018
        %v2103 = vpop.f32.mrb[0].mxu0
        %v2104 = vadd.f32 0.0, %v2103
        %v2105 = vpop.f32.mrb[0].mxu0
        %v2106 = vpop.f32.mrb[0].mxu0
        %v2107 = vadd.f32 0.0, %v2106
        %v2108 = vpop.f32.mrb[0].mxu0
        %2109 = vmatprep.mubr.bf16.mxu0 0
        %2110 = vmatmul.mubr.bf16.gmra.mrb[0].mxu0 %v2019
        %v2111 = vpop.f32.mrb[0].mxu0
        %v2112 = vadd.f32 0.0, %v2111
        %v2113 = vpop.f32.mrb[0].mxu0
        %v2114 = vpop.f32.mrb[0].mxu0
        %v2115 = vadd.f32 0.0, %v2114
        %v2116 = vpop.f32.mrb[0].mxu0
        %2117 = vmatprep.mubr.bf16.mxu0 0
        %2118 = vmatmul.mubr.bf16.gmra.mrb[0].mxu0 %v2020
        %v2119 = vpop.f32.mrb[0].mxu0
        %v2120 = vadd.f32 0.0, %v2119
        %v2121 = vpop.f32.mrb[0].mxu0
        %v2122 = vpop.f32.mrb[0].mxu0
        %v2123 = vadd.f32 0.0, %v2122
        %v2124 = vpop.f32.mrb[0].mxu0
        %2125 = vdwg.mxu0
        %v2126 = vmul.f32 %v2064, 0.088388346
        %v2127 = vmul.f32 %v2067, 0.088388346
        %v2128 = vmul.f32 %v2072, 0.088388346
        %v2129 = vmul.f32 %v2075, 0.088388346
        %v2130 = vmul.f32 %v2080, 0.088388346
        %v2131 = vmul.f32 %v2083, 0.088388346
        %v2132 = vmul.f32 %v2088, 0.088388346
        %v2133 = vmul.f32 %v2091, 0.088388346
        %v2134 = vmul.f32 %v2096, 0.088388346
        %v2135 = vmul.f32 %v2099, 0.088388346
        %v2136 = vmul.f32 %v2104, 0.088388346
        %v2137 = vmul.f32 %v2107, 0.088388346
        %v2138 = vmul.f32 %v2112, 0.088388346
        %v2139 = vmul.f32 %v2115, 0.088388346
        %v2140 = vmul.f32 %v2120, 0.088388346
        %v2141 = vmul.f32 %v2123, 0.088388346
        %2142 = vmax.xlane.f32.xlu0 %v2126
        %v2143 = vpop.xlane.xlu0 %2142
        %2144 = vmax.xlane.f32.xlu0 %v2127
        %v2145 = vpop.xlane.xlu0 %2144
        %2146 = vmax.xlane.f32.xlu0 %v2128
        %v2147 = vpop.xlane.xlu0 %2146
        %2148 = vmax.xlane.f32.xlu0 %v2129
        %v2149 = vpop.xlane.xlu0 %2148
        %2150 = vmax.xlane.f32.xlu0 %v2130
        %v2151 = vpop.xlane.xlu0 %2150
        %2152 = vmax.xlane.f32.xlu0 %v2131
        %v2153 = vpop.xlane.xlu0 %2152
        %2154 = vmax.xlane.f32.xlu0 %v2132
        %v2155 = vpop.xlane.xlu0 %2154
        %2156 = vmax.xlane.f32.xlu0 %v2133
        %v2157 = vpop.xlane.xlu0 %2156
        %2158 = vmax.xlane.f32.xlu0 %v2134
        %v2159 = vpop.xlane.xlu0 %2158
        %2160 = vmax.xlane.f32.xlu0 %v2135
        %v2161 = vpop.xlane.xlu0 %2160
        %2162 = vmax.xlane.f32.xlu0 %v2136
        %v2163 = vpop.xlane.xlu0 %2162
        %2164 = vmax.xlane.f32.xlu0 %v2137
        %v2165 = vpop.xlane.xlu0 %2164
        %2166 = vmax.xlane.f32.xlu0 %v2138
        %v2167 = vpop.xlane.xlu0 %2166
        %2168 = vmax.xlane.f32.xlu0 %v2139
        %v2169 = vpop.xlane.xlu0 %2168
        %2170 = vmax.xlane.f32.xlu0 %v2140
        %v2171 = vpop.xlane.xlu0 %2170
        %2172 = vmax.xlane.f32.xlu0 %v2141
        %v2173 = vpop.xlane.xlu0 %2172
        %v2174 = vsub.f32 %v2126, %v2143
        %v2175 = vsub.f32 %v2127, %v2145
        %v2176 = vsub.f32 %v2128, %v2147
        %v2177 = vsub.f32 %v2129, %v2149
        %v2178 = vsub.f32 %v2130, %v2151
        %v2179 = vsub.f32 %v2131, %v2153
        %v2180 = vsub.f32 %v2132, %v2155
        %v2181 = vsub.f32 %v2133, %v2157
        %v2182 = vsub.f32 %v2134, %v2159
        %v2183 = vsub.f32 %v2135, %v2161
        %v2184 = vsub.f32 %v2136, %v2163
        %v2185 = vsub.f32 %v2137, %v2165
        %v2186 = vsub.f32 %v2138, %v2167
        %v2187 = vsub.f32 %v2139, %v2169
        %v2188 = vsub.f32 %v2140, %v2171
        %v2189 = vsub.f32 %v2141, %v2173
        %v2190 = vmul.f32 %v2174, 1.442695
        %v2191 = vpow.pop %v2190
        %v2192 = vmul.f32 %v2175, 1.442695
        %v2193 = vpow.pop %v2192
        %v2194 = vmul.f32 %v2176, 1.442695
        %v2195 = vpow.pop %v2194
        %v2196 = vmul.f32 %v2177, 1.442695
        %v2197 = vpow.pop %v2196
        %v2198 = vmul.f32 %v2178, 1.442695
        %v2199 = vpow.pop %v2198
        %v2200 = vmul.f32 %v2179, 1.442695
        %v2201 = vpow.pop %v2200
        %v2202 = vmul.f32 %v2180, 1.442695
        %v2203 = vpow.pop %v2202
        %v2204 = vmul.f32 %v2181, 1.442695
        %v2205 = vpow.pop %v2204
        %v2206 = vmul.f32 %v2182, 1.442695
        %v2207 = vpow.pop %v2206
        %v2208 = vmul.f32 %v2183, 1.442695
        %v2209 = vpow.pop %v2208
        %v2210 = vmul.f32 %v2184, 1.442695
        %v2211 = vpow.pop %v2210
        %v2212 = vmul.f32 %v2185, 1.442695
        %v2213 = vpow.pop %v2212
        %v2214 = vmul.f32 %v2186, 1.442695
        %v2215 = vpow.pop %v2214
        %v2216 = vmul.f32 %v2187, 1.442695
        %v2217 = vpow.pop %v2216
        %v2218 = vmul.f32 %v2188, 1.442695
        %v2219 = vpow.pop %v2218
        %v2220 = vmul.f32 %v2189, 1.442695
        %v2221 = vpow.pop %v2220
        %2222 = vadd.xlane.f32.xlu0 %v2191
        %v2223 = vpop.xlane.xlu0 %2222
        %2224 = vadd.xlane.f32.xlu0 %v2193
        %v2225 = vpop.xlane.xlu0 %2224
        %2226 = vadd.xlane.f32.xlu0 %v2195
        %v2227 = vpop.xlane.xlu0 %2226
        %2228 = vadd.xlane.f32.xlu0 %v2197
        %v2229 = vpop.xlane.xlu0 %2228
        %2230 = vadd.xlane.f32.xlu0 %v2199
        %v2231 = vpop.xlane.xlu0 %2230
        %2232 = vadd.xlane.f32.xlu0 %v2201
        %v2233 = vpop.xlane.xlu0 %2232
        %2234 = vadd.xlane.f32.xlu0 %v2203
        %v2235 = vpop.xlane.xlu0 %2234
        %2236 = vadd.xlane.f32.xlu0 %v2205
        %v2237 = vpop.xlane.xlu0 %2236
        %2238 = vadd.xlane.f32.xlu0 %v2207
        %v2239 = vpop.xlane.xlu0 %2238
        %2240 = vadd.xlane.f32.xlu0 %v2209
        %v2241 = vpop.xlane.xlu0 %2240
        %2242 = vadd.xlane.f32.xlu0 %v2211
        %v2243 = vpop.xlane.xlu0 %2242
        %2244 = vadd.xlane.f32.xlu0 %v2213
        %v2245 = vpop.xlane.xlu0 %2244
        %2246 = vadd.xlane.f32.xlu0 %v2215
        %v2247 = vpop.xlane.xlu0 %2246
        %2248 = vadd.xlane.f32.xlu0 %v2217
        %v2249 = vpop.xlane.xlu0 %2248
        %2250 = vadd.xlane.f32.xlu0 %v2219
        %v2251 = vpop.xlane.xlu0 %2250
        %2252 = vadd.xlane.f32.xlu0 %v2221
        %v2253 = vpop.xlane.xlu0 %2252
        %v2254 = vrcp.pop %v2223
        %v2255 = vrcp.pop %v2225
        %v2256 = vrcp.pop %v2227
        %v2257 = vrcp.pop %v2229
        %v2258 = vrcp.pop %v2231
        %v2259 = vrcp.pop %v2233
        %v2260 = vrcp.pop %v2235
        %v2261 = vrcp.pop %v2237
        %v2262 = vrcp.pop %v2239
        %v2263 = vrcp.pop %v2241
        %v2264 = vrcp.pop %v2243
        %v2265 = vrcp.pop %v2245
        %v2266 = vrcp.pop %v2247
        %v2267 = vrcp.pop %v2249
        %v2268 = vrcp.pop %v2251
        %v2269 = vrcp.pop %v2253
        %v2270 = vmul.f32 %v2191, %v2254
        %v2271 = vmul.f32 %v2193, %v2255
        %v2272 = vmul.f32 %v2195, %v2256
        %v2273 = vmul.f32 %v2197, %v2257
        %v2274 = vmul.f32 %v2199, %v2258
        %v2275 = vmul.f32 %v2201, %v2259
        %v2276 = vmul.f32 %v2203, %v2260
        %v2277 = vmul.f32 %v2205, %v2261
        %v2278 = vmul.f32 %v2207, %v2262
        %v2279 = vmul.f32 %v2209, %v2263
        %v2280 = vmul.f32 %v2211, %v2264
        %v2281 = vmul.f32 %v2213, %v2265
        %v2282 = vmul.f32 %v2215, %v2266
        %v2283 = vmul.f32 %v2217, %v2267
        %v2284 = vmul.f32 %v2219, %v2268
        %v2285 = vmul.f32 %v2221, %v2269
        %v2286 = vpack.c.bf16 %v2271, %v2270
        %v2287 = vpack.c.bf16 %v2273, %v2272
        %v2288 = vpack.c.bf16 %v2275, %v2274
        %v2289 = vpack.c.bf16 %v2277, %v2276
        %v2290 = vpack.c.bf16 %v2279, %v2278
        %v2291 = vpack.c.bf16 %v2281, %v2280
        %v2292 = vpack.c.bf16 %v2283, %v2282
        %v2293 = vpack.c.bf16 %v2285, %v2284
        %v2294 = vpack.c.bf16 %v1906, %v1902
        %v2295 = vpack.c.bf16 %v1916, %v1912
        %v2296 = vpack.c.bf16 %v1926, %v1922
        %v2297 = vpack.c.bf16 %v1936, %v1932
        %v2298 = vpack.c.bf16 %v1946, %v1942
        %v2299 = vpack.c.bf16 %v1956, %v1952
        %v2300 = vpack.c.bf16 %v1966, %v1962
        %v2301 = vpack.c.bf16 %v1976, %v1972
        %2302 = vmatprep.subr.bf16.mxu0 0
        %2303 = vmatpush1.bf16.msra.mxu0 %v2294
        %2304 = vmatprep.subr.bf16.mxu0 0
        %2305 = vmatpush1.bf16.msra.mxu0 %v2295
        %2306 = vmatprep.subr.bf16.mxu0 0
        %2307 = vmatpush1.bf16.msra.mxu0 %v2296
        %2308 = vmatprep.subr.bf16.mxu0 0
        %2309 = vmatpush1.bf16.msra.mxu0 %v2297
        %2310 = vmatprep.subr.bf16.mxu0 0
        %2311 = vmatpush1.bf16.msra.mxu0 %v2298
        %2312 = vmatprep.subr.bf16.mxu0 0
        %2313 = vmatpush1.bf16.msra.mxu0 %v2299
        %2314 = vmatprep.subr.bf16.mxu0 0
        %2315 = vmatpush1.bf16.msra.mxu0 %v2300
        %2316 = vmatprep.subr.bf16.mxu0 0
        %2317 = vmatpush1.bf16.msra.mxu0 %v2301
        %2318 = vmatprep.subr.bf16.mxu0 0
        %2319 = vmatpush1.bf16.msra.mxu0 0
        %2320 = vmatprep.subr.bf16.mxu0 0
        %2321 = vmatpush1.bf16.msra.mxu0 0
        %2322 = vmatprep.subr.bf16.mxu0 0
        %2323 = vmatpush1.bf16.msra.mxu0 0
        %2324 = vmatprep.subr.bf16.mxu0 0
        %2325 = vmatpush1.bf16.msra.mxu0 0
        %2326 = vmatprep.subr.bf16.mxu0 0
        %2327 = vmatpush1.bf16.msra.mxu0 0
        %2328 = vmatprep.subr.bf16.mxu0 0
        %2329 = vmatpush1.bf16.msra.mxu0 0
        %2330 = vmatprep.subr.bf16.mxu0 0
        %2331 = vmatpush1.bf16.msra.mxu0 0
        %2332 = vmatprep.subr.bf16.mxu0 0
        %2333 = vmatpush1.bf16.msra.mxu0 0
        %2334 = vmatprep.mubr.bf16.mxu0 0
        %2335 = vmatmul.mubr.bf16.gmra.mrb[0].mxu0 %v2286
        %v2336 = vpop.f32.mrb[0].mxu0
        %v2337 = vadd.f32 0.0, %v2336
        %v2338 = vpop.f32.mrb[0].mxu0
        %v2339 = vpop.f32.mrb[0].mxu0
        %v2340 = vadd.f32 0.0, %v2339
        %v2341 = vpop.f32.mrb[0].mxu0
        %2342 = vmatprep.mubr.bf16.mxu0 0
        %2343 = vmatmul.mubr.bf16.gmra.mrb[0].mxu0 %v2287
        %v2344 = vpop.f32.mrb[0].mxu0
        %v2345 = vadd.f32 0.0, %v2344
        %v2346 = vpop.f32.mrb[0].mxu0
        %v2347 = vpop.f32.mrb[0].mxu0
        %v2348 = vadd.f32 0.0, %v2347
        %v2349 = vpop.f32.mrb[0].mxu0
        %2350 = vmatprep.mubr.bf16.mxu0 0
        %2351 = vmatmul.mubr.bf16.gmra.mrb[0].mxu0 %v2288
        %v2352 = vpop.f32.mrb[0].mxu0
        %v2353 = vadd.f32 0.0, %v2352
        %v2354 = vpop.f32.mrb[0].mxu0
        %v2355 = vpop.f32.mrb[0].mxu0
        %v2356 = vadd.f32 0.0, %v2355
        %v2357 = vpop.f32.mrb[0].mxu0
        %2358 = vmatprep.mubr.bf16.mxu0 0
        %2359 = vmatmul.mubr.bf16.gmra.mrb[0].mxu0 %v2289
        %v2360 = vpop.f32.mrb[0].mxu0
        %v2361 = vadd.f32 0.0, %v2360
        %v2362 = vpop.f32.mrb[0].mxu0
        %v2363 = vpop.f32.mrb[0].mxu0
        %v2364 = vadd.f32 0.0, %v2363
        %v2365 = vpop.f32.mrb[0].mxu0
        %2366 = vmatprep.mubr.bf16.mxu0 0
        %2367 = vmatmul.mubr.bf16.gmra.mrb[0].mxu0 %v2290
        %v2368 = vpop.f32.mrb[0].mxu0
        %v2369 = vadd.f32 0.0, %v2368
        %v2370 = vpop.f32.mrb[0].mxu0
        %v2371 = vpop.f32.mrb[0].mxu0
        %v2372 = vadd.f32 0.0, %v2371
        %v2373 = vpop.f32.mrb[0].mxu0
        %2374 = vmatprep.mubr.bf16.mxu0 0
        %2375 = vmatmul.mubr.bf16.gmra.mrb[0].mxu0 %v2291
        %v2376 = vpop.f32.mrb[0].mxu0
        %v2377 = vadd.f32 0.0, %v2376
        %v2378 = vpop.f32.mrb[0].mxu0
        %v2379 = vpop.f32.mrb[0].mxu0
        %v2380 = vadd.f32 0.0, %v2379
        %v2381 = vpop.f32.mrb[0].mxu0
        %2382 = vmatprep.mubr.bf16.mxu0 0
        %2383 = vmatmul.mubr.bf16.gmra.mrb[0].mxu0 %v2292
        %v2384 = vpop.f32.mrb[0].mxu0
        %v2385 = vadd.f32 0.0, %v2384
        %v2386 = vpop.f32.mrb[0].mxu0
        %v2387 = vpop.f32.mrb[0].mxu0
        %v2388 = vadd.f32 0.0, %v2387
        %v2389 = vpop.f32.mrb[0].mxu0
        %2390 = vmatprep.mubr.bf16.mxu0 0
        %2391 = vmatmul.mubr.bf16.gmra.mrb[0].mxu0 %v2293
        %v2392 = vpop.f32.mrb[0].mxu0
        %v2393 = vadd.f32 0.0, %v2392
        %v2394 = vpop.f32.mrb[0].mxu0
        %v2395 = vpop.f32.mrb[0].mxu0
        %v2396 = vadd.f32 0.0, %v2395
        %v2397 = vpop.f32.mrb[0].mxu0
        %2398 = vdwg.mxu0
        %v2399 = vpack.c.bf16 %v2340, %v2337
        %v2400 = vpack.c.bf16 %v2348, %v2345
        %v2401 = vpack.c.bf16 %v2356, %v2353
        %v2402 = vpack.c.bf16 %v2364, %v2361
        %v2403 = vpack.c.bf16 %v2372, %v2369
        %v2404 = vpack.c.bf16 %v2380, %v2377
        %v2405 = vpack.c.bf16 %v2388, %v2385
        %v2406 = vpack.c.bf16 %v2396, %v2393
        %v2407 = vpack.c.bf16 %v1682, %v1678
        %v2408 = vpack.c.bf16 %v1692, %v1688
        %v2409 = vpack.c.bf16 %v1702, %v1698
        %v2410 = vpack.c.bf16 %v1712, %v1708
        %v2411 = vpack.c.bf16 %v1722, %v1718
        %v2412 = vpack.c.bf16 %v1732, %v1728
        %v2413 = vpack.c.bf16 %v1742, %v1738
        %v2414 = vpack.c.bf16 %v1752, %v1748
        %v2415 = vpack.c.bf16 %v1795, %v1791
        %v2416 = vpack.c.bf16 %v1805, %v1801
        %v2417 = vpack.c.bf16 %v1815, %v1811
        %v2418 = vpack.c.bf16 %v1825, %v1821
        %v2419 = vpack.c.bf16 %v1835, %v1831
        %v2420 = vpack.c.bf16 %v1845, %v1841
        %v2421 = vpack.c.bf16 %v1855, %v1851
        %v2422 = vpack.c.bf16 %v1865, %v1861
        %2423 = vmatprep.subr.bf16.mxu0 0
        %2424 = vmatpush1.bf16.xpose.msra.mxu0 %v2415
        %2425 = vmatprep.subr.bf16.mxu0 0
        %2426 = vmatpush1.bf16.xpose.msra.mxu0 %v2416
        %2427 = vmatprep.subr.bf16.mxu0 0
        %2428 = vmatpush1.bf16.xpose.msra.mxu0 %v2417
        %2429 = vmatprep.subr.bf16.mxu0 0
        %2430 = vmatpush1.bf16.xpose.msra.mxu0 %v2418
        %2431 = vmatprep.subr.bf16.mxu0 0
        %2432 = vmatpush1.bf16.xpose.msra.mxu0 %v2419
        %2433 = vmatprep.subr.bf16.mxu0 0
        %2434 = vmatpush1.bf16.xpose.msra.mxu0 %v2420
        %2435 = vmatprep.subr.bf16.mxu0 0
        %2436 = vmatpush1.bf16.xpose.msra.mxu0 %v2421
        %2437 = vmatprep.subr.bf16.mxu0 0
        %2438 = vmatpush1.bf16.xpose.msra.mxu0 %v2422
        %2439 = vmatprep.subr.bf16.mxu0 0
        %2440 = vmatpush1.bf16.xpose.msra.mxu0 0
        %2441 = vmatprep.subr.bf16.mxu0 0
        %2442 = vmatpush1.bf16.xpose.msra.mxu0 0
        %2443 = vmatprep.subr.bf16.mxu0 0
        %2444 = vmatpush1.bf16.xpose.msra.mxu0 0
        %2445 = vmatprep.subr.bf16.mxu0 0
        %2446 = vmatpush1.bf16.xpose.msra.mxu0 0
        %2447 = vmatprep.subr.bf16.mxu0 0
        %2448 = vmatpush1.bf16.xpose.msra.mxu0 0
        %2449 = vmatprep.subr.bf16.mxu0 0
        %2450 = vmatpush1.bf16.xpose.msra.mxu0 0
        %2451 = vmatprep.subr.bf16.mxu0 0
        %2452 = vmatpush1.bf16.xpose.msra.mxu0 0
        %2453 = vmatprep.subr.bf16.mxu0 0
        %2454 = vmatpush1.bf16.xpose.msra.mxu0 0
        %2455 = vmatprep.mubr.bf16.mxu0 0
        %2456 = vmatmul.mubr.bf16.gmra.mrb[0].mxu0 %v2407
        %v2457 = vpop.f32.mrb[0].mxu0
        %v2458 = vadd.f32 0.0, %v2457
        %v2459 = vpop.f32.mrb[0].mxu0
        %v2460 = vpop.f32.mrb[0].mxu0
        %v2461 = vadd.f32 0.0, %v2460
        %v2462 = vpop.f32.mrb[0].mxu0
        %2463 = vmatprep.mubr.bf16.mxu0 0
        %2464 = vmatmul.mubr.bf16.gmra.mrb[0].mxu0 %v2408
        %v2465 = vpop.f32.mrb[0].mxu0
        %v2466 = vadd.f32 0.0, %v2465
        %v2467 = vpop.f32.mrb[0].mxu0
        %v2468 = vpop.f32.mrb[0].mxu0
        %v2469 = vadd.f32 0.0, %v2468
        %v2470 = vpop.f32.mrb[0].mxu0
        %2471 = vmatprep.mubr.bf16.mxu0 0
        %2472 = vmatmul.mubr.bf16.gmra.mrb[0].mxu0 %v2409
        %v2473 = vpop.f32.mrb[0].mxu0
        %v2474 = vadd.f32 0.0, %v2473
        %v2475 = vpop.f32.mrb[0].mxu0
        %v2476 = vpop.f32.mrb[0].mxu0
        %v2477 = vadd.f32 0.0, %v2476
        %v2478 = vpop.f32.mrb[0].mxu0
        %2479 = vmatprep.mubr.bf16.mxu0 0
        %2480 = vmatmul.mubr.bf16.gmra.mrb[0].mxu0 %v2410
        %v2481 = vpop.f32.mrb[0].mxu0
        %v2482 = vadd.f32 0.0, %v2481
        %v2483 = vpop.f32.mrb[0].mxu0
        %v2484 = vpop.f32.mrb[0].mxu0
        %v2485 = vadd.f32 0.0, %v2484
        %v2486 = vpop.f32.mrb[0].mxu0
        %2487 = vmatprep.mubr.bf16.mxu0 0
        %2488 = vmatmul.mubr.bf16.gmra.mrb[0].mxu0 %v2411
        %v2489 = vpop.f32.mrb[0].mxu0
        %v2490 = vadd.f32 0.0, %v2489
        %v2491 = vpop.f32.mrb[0].mxu0
        %v2492 = vpop.f32.mrb[0].mxu0
        %v2493 = vadd.f32 0.0, %v2492
        %v2494 = vpop.f32.mrb[0].mxu0
        %2495 = vmatprep.mubr.bf16.mxu0 0
        %2496 = vmatmul.mubr.bf16.gmra.mrb[0].mxu0 %v2412
        %v2497 = vpop.f32.mrb[0].mxu0
        %v2498 = vadd.f32 0.0, %v2497
        %v2499 = vpop.f32.mrb[0].mxu0
        %v2500 = vpop.f32.mrb[0].mxu0
        %v2501 = vadd.f32 0.0, %v2500
        %v2502 = vpop.f32.mrb[0].mxu0
        %2503 = vmatprep.mubr.bf16.mxu0 0
        %2504 = vmatmul.mubr.bf16.gmra.mrb[0].mxu0 %v2413
        %v2505 = vpop.f32.mrb[0].mxu0
        %v2506 = vadd.f32 0.0, %v2505
        %v2507 = vpop.f32.mrb[0].mxu0
        %v2508 = vpop.f32.mrb[0].mxu0
        %v2509 = vadd.f32 0.0, %v2508
        %v2510 = vpop.f32.mrb[0].mxu0
        %2511 = vmatprep.mubr.bf16.mxu0 0
        %2512 = vmatmul.mubr.bf16.gmra.mrb[0].mxu0 %v2414
        %v2513 = vpop.f32.mrb[0].mxu0
        %v2514 = vadd.f32 0.0, %v2513
        %v2515 = vpop.f32.mrb[0].mxu0
        %v2516 = vpop.f32.mrb[0].mxu0
        %v2517 = vadd.f32 0.0, %v2516
        %v2518 = vpop.f32.mrb[0].mxu0
        %2519 = vdwg.mxu0
        %v2520 = vmul.f32 %v2458, 0.088388346
        %v2521 = vmul.f32 %v2461, 0.088388346
        %v2522 = vmul.f32 %v2466, 0.088388346
        %v2523 = vmul.f32 %v2469, 0.088388346
        %v2524 = vmul.f32 %v2474, 0.088388346
        %v2525 = vmul.f32 %v2477, 0.088388346
        %v2526 = vmul.f32 %v2482, 0.088388346
        %v2527 = vmul.f32 %v2485, 0.088388346
        %v2528 = vmul.f32 %v2490, 0.088388346
        %v2529 = vmul.f32 %v2493, 0.088388346
        %v2530 = vmul.f32 %v2498, 0.088388346
        %v2531 = vmul.f32 %v2501, 0.088388346
        %v2532 = vmul.f32 %v2506, 0.088388346
        %v2533 = vmul.f32 %v2509, 0.088388346
        %v2534 = vmul.f32 %v2514, 0.088388346
        %v2535 = vmul.f32 %v2517, 0.088388346
        %2536 = vmax.xlane.f32.xlu0 %v2520
        %v2537 = vpop.xlane.xlu0 %2536
        %2538 = vmax.xlane.f32.xlu0 %v2521
        %v2539 = vpop.xlane.xlu0 %2538
        %2540 = vmax.xlane.f32.xlu0 %v2522
        %v2541 = vpop.xlane.xlu0 %2540
        %2542 = vmax.xlane.f32.xlu0 %v2523
        %v2543 = vpop.xlane.xlu0 %2542
        %2544 = vmax.xlane.f32.xlu0 %v2524
        %v2545 = vpop.xlane.xlu0 %2544
        %2546 = vmax.xlane.f32.xlu0 %v2525
        %v2547 = vpop.xlane.xlu0 %2546
        %2548 = vmax.xlane.f32.xlu0 %v2526
        %v2549 = vpop.xlane.xlu0 %2548
        %2550 = vmax.xlane.f32.xlu0 %v2527
        %v2551 = vpop.xlane.xlu0 %2550
        %2552 = vmax.xlane.f32.xlu0 %v2528
        %v2553 = vpop.xlane.xlu0 %2552
        %2554 = vmax.xlane.f32.xlu0 %v2529
        %v2555 = vpop.xlane.xlu0 %2554
        %2556 = vmax.xlane.f32.xlu0 %v2530
        %v2557 = vpop.xlane.xlu0 %2556
        %2558 = vmax.xlane.f32.xlu0 %v2531
        %v2559 = vpop.xlane.xlu0 %2558
        %2560 = vmax.xlane.f32.xlu0 %v2532
        %v2561 = vpop.xlane.xlu0 %2560
        %2562 = vmax.xlane.f32.xlu0 %v2533
        %v2563 = vpop.xlane.xlu0 %2562
        %2564 = vmax.xlane.f32.xlu0 %v2534
        %v2565 = vpop.xlane.xlu0 %2564
        %2566 = vmax.xlane.f32.xlu0 %v2535
        %v2567 = vpop.xlane.xlu0 %2566
        %v2568 = vsub.f32 %v2520, %v2537
        %v2569 = vsub.f32 %v2521, %v2539
        %v2570 = vsub.f32 %v2522, %v2541
        %v2571 = vsub.f32 %v2523, %v2543
        %v2572 = vsub.f32 %v2524, %v2545
        %v2573 = vsub.f32 %v2525, %v2547
        %v2574 = vsub.f32 %v2526, %v2549
        %v2575 = vsub.f32 %v2527, %v2551
        %v2576 = vsub.f32 %v2528, %v2553
        %v2577 = vsub.f32 %v2529, %v2555
        %v2578 = vsub.f32 %v2530, %v2557
        %v2579 = vsub.f32 %v2531, %v2559
        %v2580 = vsub.f32 %v2532, %v2561
        %v2581 = vsub.f32 %v2533, %v2563
        %v2582 = vsub.f32 %v2534, %v2565
        %v2583 = vsub.f32 %v2535, %v2567
        %v2584 = vmul.f32 %v2568, 1.442695
        %v2585 = vpow.pop %v2584
        %v2586 = vmul.f32 %v2569, 1.442695
        %v2587 = vpow.pop %v2586
        %v2588 = vmul.f32 %v2570, 1.442695
        %v2589 = vpow.pop %v2588
        %v2590 = vmul.f32 %v2571, 1.442695
        %v2591 = vpow.pop %v2590
        %v2592 = vmul.f32 %v2572, 1.442695
        %v2593 = vpow.pop %v2592
        %v2594 = vmul.f32 %v2573, 1.442695
        %v2595 = vpow.pop %v2594
        %v2596 = vmul.f32 %v2574, 1.442695
        %v2597 = vpow.pop %v2596
        %v2598 = vmul.f32 %v2575, 1.442695
        %v2599 = vpow.pop %v2598
        %v2600 = vmul.f32 %v2576, 1.442695
        %v2601 = vpow.pop %v2600
        %v2602 = vmul.f32 %v2577, 1.442695
        %v2603 = vpow.pop %v2602
        %v2604 = vmul.f32 %v2578, 1.442695
        %v2605 = vpow.pop %v2604
        %v2606 = vmul.f32 %v2579, 1.442695
        %v2607 = vpow.pop %v2606
        %v2608 = vmul.f32 %v2580, 1.442695
        %v2609 = vpow.pop %v2608
        %v2610 = vmul.f32 %v2581, 1.442695
        %v2611 = vpow.pop %v2610
        %v2612 = vmul.f32 %v2582, 1.442695
        %v2613 = vpow.pop %v2612
        %v2614 = vmul.f32 %v2583, 1.442695
        %v2615 = vpow.pop %v2614
        %2616 = vadd.xlane.f32.xlu0 %v2585
        %v2617 = vpop.xlane.xlu0 %2616
        %2618 = vadd.xlane.f32.xlu0 %v2587
        %v2619 = vpop.xlane.xlu0 %2618
        %2620 = vadd.xlane.f32.xlu0 %v2589
        %v2621 = vpop.xlane.xlu0 %2620
        %2622 = vadd.xlane.f32.xlu0 %v2591
        %v2623 = vpop.xlane.xlu0 %2622
        %2624 = vadd.xlane.f32.xlu0 %v2593
        %v2625 = vpop.xlane.xlu0 %2624
        %2626 = vadd.xlane.f32.xlu0 %v2595
        %v2627 = vpop.xlane.xlu0 %2626
        %2628 = vadd.xlane.f32.xlu0 %v2597
        %v2629 = vpop.xlane.xlu0 %2628
        %2630 = vadd.xlane.f32.xlu0 %v2599
        %v2631 = vpop.xlane.xlu0 %2630
        %2632 = vadd.xlane.f32.xlu0 %v2601
        %v2633 = vpop.xlane.xlu0 %2632
        %2634 = vadd.xlane.f32.xlu0 %v2603
        %v2635 = vpop.xlane.xlu0 %2634
        %2636 = vadd.xlane.f32.xlu0 %v2605
        %v2637 = vpop.xlane.xlu0 %2636
        %2638 = vadd.xlane.f32.xlu0 %v2607
        %v2639 = vpop.xlane.xlu0 %2638
        %2640 = vadd.xlane.f32.xlu0 %v2609
        %v2641 = vpop.xlane.xlu0 %2640
        %2642 = vadd.xlane.f32.xlu0 %v2611
        %v2643 = vpop.xlane.xlu0 %2642
        %2644 = vadd.xlane.f32.xlu0 %v2613
        %v2645 = vpop.xlane.xlu0 %2644
        %2646 = vadd.xlane.f32.xlu0 %v2615
        %v2647 = vpop.xlane.xlu0 %2646
        %v2648 = vrcp.pop %v2617
        %v2649 = vrcp.pop %v2619
        %v2650 = vrcp.pop %v2621
        %v2651 = vrcp.pop %v2623
        %v2652 = vrcp.pop %v2625
        %v2653 = vrcp.pop %v2627
        %v2654 = vrcp.pop %v2629
        %v2655 = vrcp.pop %v2631
        %v2656 = vrcp.pop %v2633
        %v2657 = vrcp.pop %v2635
        %v2658 = vrcp.pop %v2637
        %v2659 = vrcp.pop %v2639
        %v2660 = vrcp.pop %v2641
        %v2661 = vrcp.pop %v2643
        %v2662 = vrcp.pop %v2645
        %v2663 = vrcp.pop %v2647
        %v2664 = vmul.f32 %v2585, %v2648
        %v2665 = vmul.f32 %v2587, %v2649
        %v2666 = vmul.f32 %v2589, %v2650
        %v2667 = vmul.f32 %v2591, %v2651
        %v2668 = vmul.f32 %v2593, %v2652
        %v2669 = vmul.f32 %v2595, %v2653
        %v2670 = vmul.f32 %v2597, %v2654
        %v2671 = vmul.f32 %v2599, %v2655
        %v2672 = vmul.f32 %v2601, %v2656
        %v2673 = vmul.f32 %v2603, %v2657
        %v2674 = vmul.f32 %v2605, %v2658
        %v2675 = vmul.f32 %v2607, %v2659
        %v2676 = vmul.f32 %v2609, %v2660
        %v2677 = vmul.f32 %v2611, %v2661
        %v2678 = vmul.f32 %v2613, %v2662
        %v2679 = vmul.f32 %v2615, %v2663
        %v2680 = vpack.c.bf16 %v2665, %v2664
        %v2681 = vpack.c.bf16 %v2667, %v2666
        %v2682 = vpack.c.bf16 %v2669, %v2668
        %v2683 = vpack.c.bf16 %v2671, %v2670
        %v2684 = vpack.c.bf16 %v2673, %v2672
        %v2685 = vpack.c.bf16 %v2675, %v2674
        %v2686 = vpack.c.bf16 %v2677, %v2676
        %v2687 = vpack.c.bf16 %v2679, %v2678
        %v2688 = vpack.c.bf16 %v1908, %v1904
        %v2689 = vpack.c.bf16 %v1918, %v1914
        %v2690 = vpack.c.bf16 %v1928, %v1924
        %v2691 = vpack.c.bf16 %v1938, %v1934
        %v2692 = vpack.c.bf16 %v1948, %v1944
        %v2693 = vpack.c.bf16 %v1958, %v1954
        %v2694 = vpack.c.bf16 %v1968, %v1964
        %v2695 = vpack.c.bf16 %v1978, %v1974
        %2696 = vmatprep.subr.bf16.mxu0 0
        %2697 = vmatpush1.bf16.msra.mxu0 %v2688
        %2698 = vmatprep.subr.bf16.mxu0 0
        %2699 = vmatpush1.bf16.msra.mxu0 %v2689
        %2700 = vmatprep.subr.bf16.mxu0 0
        %2701 = vmatpush1.bf16.msra.mxu0 %v2690
        %2702 = vmatprep.subr.bf16.mxu0 0
        %2703 = vmatpush1.bf16.msra.mxu0 %v2691
        %2704 = vmatprep.subr.bf16.mxu0 0
        %2705 = vmatpush1.bf16.msra.mxu0 %v2692
        %2706 = vmatprep.subr.bf16.mxu0 0
        %2707 = vmatpush1.bf16.msra.mxu0 %v2693
        %2708 = vmatprep.subr.bf16.mxu0 0
        %2709 = vmatpush1.bf16.msra.mxu0 %v2694
        %2710 = vmatprep.subr.bf16.mxu0 0
        %2711 = vmatpush1.bf16.msra.mxu0 %v2695
        %2712 = vmatprep.subr.bf16.mxu0 0
        %2713 = vmatpush1.bf16.msra.mxu0 0
        %2714 = vmatprep.subr.bf16.mxu0 0
        %2715 = vmatpush1.bf16.msra.mxu0 0
        %2716 = vmatprep.subr.bf16.mxu0 0
        %2717 = vmatpush1.bf16.msra.mxu0 0
        %2718 = vmatprep.subr.bf16.mxu0 0
        %2719 = vmatpush1.bf16.msra.mxu0 0
        %2720 = vmatprep.subr.bf16.mxu0 0
        %2721 = vmatpush1.bf16.msra.mxu0 0
        %2722 = vmatprep.subr.bf16.mxu0 0
        %2723 = vmatpush1.bf16.msra.mxu0 0
        %2724 = vmatprep.subr.bf16.mxu0 0
        %2725 = vmatpush1.bf16.msra.mxu0 0
        %2726 = vmatprep.subr.bf16.mxu0 0
        %2727 = vmatpush1.bf16.msra.mxu0 0
        %2728 = vmatprep.mubr.bf16.mxu0 0
        %2729 = vmatmul.mubr.bf16.gmra.mrb[0].mxu0 %v2680
        %v2730 = vpop.f32.mrb[0].mxu0
        %v2731 = vadd.f32 0.0, %v2730
        %v2732 = vpop.f32.mrb[0].mxu0
        %v2733 = vpop.f32.mrb[0].mxu0
        %v2734 = vadd.f32 0.0, %v2733
        %v2735 = vpop.f32.mrb[0].mxu0
        %2736 = vmatprep.mubr.bf16.mxu0 0
        %2737 = vmatmul.mubr.bf16.gmra.mrb[0].mxu0 %v2681
        %v2738 = vpop.f32.mrb[0].mxu0
        %v2739 = vadd.f32 0.0, %v2738
        %v2740 = vpop.f32.mrb[0].mxu0
        %v2741 = vpop.f32.mrb[0].mxu0
        %v2742 = vadd.f32 0.0, %v2741
        %v2743 = vpop.f32.mrb[0].mxu0
        %2744 = vmatprep.mubr.bf16.mxu0 0
        %2745 = vmatmul.mubr.bf16.gmra.mrb[0].mxu0 %v2682
        %v2746 = vpop.f32.mrb[0].mxu0
        %v2747 = vadd.f32 0.0, %v2746
        %v2748 = vpop.f32.mrb[0].mxu0
        %v2749 = vpop.f32.mrb[0].mxu0
        %v2750 = vadd.f32 0.0, %v2749
        %v2751 = vpop.f32.mrb[0].mxu0
        %2752 = vmatprep.mubr.bf16.mxu0 0
        %2753 = vmatmul.mubr.bf16.gmra.mrb[0].mxu0 %v2683
        %v2754 = vpop.f32.mrb[0].mxu0
        %v2755 = vadd.f32 0.0, %v2754
        %v2756 = vpop.f32.mrb[0].mxu0
        %v2757 = vpop.f32.mrb[0].mxu0
        %v2758 = vadd.f32 0.0, %v2757
        %v2759 = vpop.f32.mrb[0].mxu0
        %2760 = vmatprep.mubr.bf16.mxu0 0
        %2761 = vmatmul.mubr.bf16.gmra.mrb[0].mxu0 %v2684
        %v2762 = vpop.f32.mrb[0].mxu0
        %v2763 = vadd.f32 0.0, %v2762
        %v2764 = vpop.f32.mrb[0].mxu0
        %v2765 = vpop.f32.mrb[0].mxu0
        %v2766 = vadd.f32 0.0, %v2765
        %v2767 = vpop.f32.mrb[0].mxu0
        %2768 = vmatprep.mubr.bf16.mxu0 0
        %2769 = vmatmul.mubr.bf16.gmra.mrb[0].mxu0 %v2685
        %v2770 = vpop.f32.mrb[0].mxu0
        %v2771 = vadd.f32 0.0, %v2770
        %v2772 = vpop.f32.mrb[0].mxu0
        %v2773 = vpop.f32.mrb[0].mxu0
        %v2774 = vadd.f32 0.0, %v2773
        %v2775 = vpop.f32.mrb[0].mxu0
        %2776 = vmatprep.mubr.bf16.mxu0 0
        %2777 = vmatmul.mubr.bf16.gmra.mrb[0].mxu0 %v2686
        %v2778 = vpop.f32.mrb[0].mxu0
        %v2779 = vadd.f32 0.0, %v2778
        %v2780 = vpop.f32.mrb[0].mxu0
        %v2781 = vpop.f32.mrb[0].mxu0
        %v2782 = vadd.f32 0.0, %v2781
        %v2783 = vpop.f32.mrb[0].mxu0
        %2784 = vmatprep.mubr.bf16.mxu0 0
        %2785 = vmatmul.mubr.bf16.gmra.mrb[0].mxu0 %v2687
        %v2786 = vpop.f32.mrb[0].mxu0
        %v2787 = vadd.f32 0.0, %v2786
        %v2788 = vpop.f32.mrb[0].mxu0
        %v2789 = vpop.f32.mrb[0].mxu0
        %v2790 = vadd.f32 0.0, %v2789
        %v2791 = vpop.f32.mrb[0].mxu0
        %2792 = vdwg.mxu0
        %v2793 = vpack.c.bf16 %v2734, %v2731
        %v2794 = vpack.c.bf16 %v2742, %v2739
        %v2795 = vpack.c.bf16 %v2750, %v2747
        %v2796 = vpack.c.bf16 %v2758, %v2755
        %v2797 = vpack.c.bf16 %v2766, %v2763
        %v2798 = vpack.c.bf16 %v2774, %v2771
        %v2799 = vpack.c.bf16 %v2782, %v2779
        %v2800 = vpack.c.bf16 %v2790, %v2787
        %v2802 = vlaneseq
        %v2803 = vshrl.u32 %v2802, 7
        %v2804 = vsub.s32 0, %v2803
        %v2805 = vrot.slane %v2012, %v2804
        %v2806 = vlaneseq
        %v2807 = vshrl.u32 %v2806, 7
        %v2808 = vsub.s32 1, %v2807
        %v2809 = vrot.slane %v2012, %v2808
        %v2844 = vunpack.c.l.b16 %v1980
        %v2845 = vunpack.c.h.b16 %v1980
        %v2846 = vunpack.c.l.b16 %v1981
        %v2847 = vunpack.c.h.b16 %v1981
        %v2848 = vunpack.c.l.b16 %v1982
        %v2849 = vunpack.c.h.b16 %v1982
        %v2850 = vunpack.c.l.b16 %v1983
        %v2851 = vunpack.c.h.b16 %v1983
        %v2852 = vunpack.c.l.b16 %v1984
        %v2853 = vunpack.c.h.b16 %v1984
        %v2854 = vunpack.c.l.b16 %v1985
        %v2855 = vunpack.c.h.b16 %v1985
        %v2856 = vunpack.c.l.b16 %v1986
        %v2857 = vunpack.c.h.b16 %v1986
        %v2858 = vunpack.c.l.b16 %v1987
        %v2859 = vunpack.c.h.b16 %v1987
        %v2860 = vunpack.c.l.b16 %v1988
        %v2861 = vunpack.c.h.b16 %v1988
        %v2862 = vunpack.c.l.b16 %v1989
        %v2863 = vunpack.c.h.b16 %v1989
        %v2864 = vunpack.c.l.b16 %v1990
        %v2865 = vunpack.c.h.b16 %v1990
        %v2866 = vunpack.c.l.b16 %v1991
        %v2867 = vunpack.c.h.b16 %v1991
        %v2868 = vunpack.c.l.b16 %v1992
        %v2869 = vunpack.c.h.b16 %v1992
        %v2870 = vunpack.c.l.b16 %v1993
        %v2871 = vunpack.c.h.b16 %v1993
        %v2872 = vunpack.c.l.b16 %v1994
        %v2873 = vunpack.c.h.b16 %v1994
        %v2874 = vunpack.c.l.b16 %v1995
        %v2875 = vunpack.c.h.b16 %v1995
        %v2876 = vunpack.c.l.b16 %v1996
        %v2877 = vunpack.c.h.b16 %v1996
        %v2878 = vunpack.c.l.b16 %v1997
        %v2879 = vunpack.c.h.b16 %v1997
        %v2880 = vunpack.c.l.b16 %v1998
        %v2881 = vunpack.c.h.b16 %v1998
        %v2882 = vunpack.c.l.b16 %v1999
        %v2883 = vunpack.c.h.b16 %v1999
        %v2884 = vunpack.c.l.b16 %v2000
        %v2885 = vunpack.c.h.b16 %v2000
        %v2886 = vunpack.c.l.b16 %v2001
        %v2887 = vunpack.c.h.b16 %v2001
        %v2888 = vunpack.c.l.b16 %v2002
        %v2889 = vunpack.c.h.b16 %v2002
        %v2890 = vunpack.c.l.b16 %v2003
        %v2891 = vunpack.c.h.b16 %v2003
        %v2892 = vunpack.c.l.b16 %v2004
        %v2893 = vunpack.c.h.b16 %v2004
        %v2894 = vunpack.c.l.b16 %v2005
        %v2895 = vunpack.c.h.b16 %v2005
        %v2896 = vunpack.c.l.b16 %v2006
        %v2897 = vunpack.c.h.b16 %v2006
        %v2898 = vunpack.c.l.b16 %v2007
        %v2899 = vunpack.c.h.b16 %v2007
        %v2900 = vunpack.c.l.b16 %v2008
        %v2901 = vunpack.c.h.b16 %v2008
        %v2902 = vunpack.c.l.b16 %v2009
        %v2903 = vunpack.c.h.b16 %v2009
        %v2904 = vunpack.c.l.b16 %v2010
        %v2905 = vunpack.c.h.b16 %v2010
        %v2906 = vunpack.c.l.b16 %v2011
        %v2907 = vunpack.c.h.b16 %v2011
        %v2908 = vpack.c.b16 %v2846, %v2844
        %v2909 = vpack.c.b16 %v2847, %v2845
        %v2910 = vpack.c.b16 %v2850, %v2848
        %v2911 = vpack.c.b16 %v2851, %v2849
        %v2912 = vpack.c.b16 %v2854, %v2852
        %v2913 = vpack.c.b16 %v2855, %v2853
        %v2914 = vpack.c.b16 %v2858, %v2856
        %v2915 = vpack.c.b16 %v2859, %v2857
        %v2916 = vpack.c.b16 %v2862, %v2860
        %v2917 = vpack.c.b16 %v2863, %v2861
        %v2918 = vpack.c.b16 %v2866, %v2864
        %v2919 = vpack.c.b16 %v2867, %v2865
        %v2920 = vpack.c.b16 %v2870, %v2868
        %v2921 = vpack.c.b16 %v2871, %v2869
        %v2922 = vpack.c.b16 %v2874, %v2872
        %v2923 = vpack.c.b16 %v2875, %v2873
        %v2924 = vpack.c.b16 %v2878, %v2876
        %v2925 = vpack.c.b16 %v2879, %v2877
        %v2926 = vpack.c.b16 %v2882, %v2880
        %v2927 = vpack.c.b16 %v2883, %v2881
        %v2928 = vpack.c.b16 %v2886, %v2884
        %v2929 = vpack.c.b16 %v2887, %v2885
        %v2930 = vpack.c.b16 %v2890, %v2888
        %v2931 = vpack.c.b16 %v2891, %v2889
        %v2932 = vpack.c.b16 %v2894, %v2892
        %v2933 = vpack.c.b16 %v2895, %v2893
        %v2934 = vpack.c.b16 %v2898, %v2896
        %v2935 = vpack.c.b16 %v2899, %v2897
        %v2936 = vpack.c.b16 %v2902, %v2900
        %v2937 = vpack.c.b16 %v2903, %v2901
        %v2938 = vpack.c.b16 %v2906, %v2904
        %v2939 = vpack.c.b16 %v2907, %v2905
        %2972 = vmatprep.subr.bf16.mxu0 %v2909
        %2973 = vmatpush1.bf16.msra.mxu0 %v2908
        %2974 = vmatprep.subr.bf16.mxu0 %v2911
        %2975 = vmatpush1.bf16.msra.mxu0 %v2910
        %2976 = vmatprep.subr.bf16.mxu0 %v2913
        %2977 = vmatpush1.bf16.msra.mxu0 %v2912
        %2978 = vmatprep.subr.bf16.mxu0 %v2915
        %2979 = vmatpush1.bf16.msra.mxu0 %v2914
        %2980 = vmatprep.subr.bf16.mxu0 %v2917
        %2981 = vmatpush1.bf16.msra.mxu0 %v2916
        %2982 = vmatprep.subr.bf16.mxu0 %v2919
        %2983 = vmatpush1.bf16.msra.mxu0 %v2918
        %2984 = vmatprep.subr.bf16.mxu0 %v2921
        %2985 = vmatpush1.bf16.msra.mxu0 %v2920
        %2986 = vmatprep.subr.bf16.mxu0 %v2923
        %2987 = vmatpush1.bf16.msra.mxu0 %v2922
        %2988 = vmatprep.subr.bf16.mxu0 %v2925
        %2989 = vmatpush1.bf16.msra.mxu0 %v2924
        %2990 = vmatprep.subr.bf16.mxu0 %v2927
        %2991 = vmatpush1.bf16.msra.mxu0 %v2926
        %2992 = vmatprep.subr.bf16.mxu0 %v2929
        %2993 = vmatpush1.bf16.msra.mxu0 %v2928
        %2994 = vmatprep.subr.bf16.mxu0 %v2931
        %2995 = vmatpush1.bf16.msra.mxu0 %v2930
        %2996 = vmatprep.subr.bf16.mxu0 %v2933
        %2997 = vmatpush1.bf16.msra.mxu0 %v2932
        %2998 = vmatprep.subr.bf16.mxu0 %v2935
        %2999 = vmatpush1.bf16.msra.mxu0 %v2934
        %3000 = vmatprep.subr.bf16.mxu0 %v2937
        %3001 = vmatpush1.bf16.msra.mxu0 %v2936
        %3002 = vmatprep.subr.bf16.mxu0 %v2939
        %3003 = vmatpush1.bf16.msra.mxu0 %v2938
        %3004 = vmatprep.mubr.bf16.mxu0 %v2793
        %3005 = vmatmul.mubr.bf16.gmra.mrb[0].mxu0 %v2399
        %v3006 = vpop.f32.mrb[0].mxu0
        %v3007 = vadd.f32 %v2805, %v3006
        %v3008 = vpop.f32.mrb[0].mxu0
        %v3009 = vadd.f32 %v2809, %v3008
        %v3010 = vpop.f32.mrb[0].mxu0
        %v3011 = vadd.f32 %v2805, %v3010
        %v3012 = vpop.f32.mrb[0].mxu0
        %v3013 = vadd.f32 %v2809, %v3012
        %3014 = vmatprep.mubr.bf16.mxu0 %v2794
        %3015 = vmatmul.mubr.bf16.gmra.mrb[0].mxu0 %v2400
        %v3016 = vpop.f32.mrb[0].mxu0
        %v3017 = vadd.f32 %v2805, %v3016
        %v3018 = vpop.f32.mrb[0].mxu0
        %v3019 = vadd.f32 %v2809, %v3018
        %v3020 = vpop.f32.mrb[0].mxu0
        %v3021 = vadd.f32 %v2805, %v3020
        %v3022 = vpop.f32.mrb[0].mxu0
        %v3023 = vadd.f32 %v2809, %v3022
        %3024 = vmatprep.mubr.bf16.mxu0 %v2795
        %3025 = vmatmul.mubr.bf16.gmra.mrb[0].mxu0 %v2401
        %v3026 = vpop.f32.mrb[0].mxu0
        %v3027 = vadd.f32 %v2805, %v3026
        %v3028 = vpop.f32.mrb[0].mxu0
        %v3029 = vadd.f32 %v2809, %v3028
        %v3030 = vpop.f32.mrb[0].mxu0
        %v3031 = vadd.f32 %v2805, %v3030
        %v3032 = vpop.f32.mrb[0].mxu0
        %v3033 = vadd.f32 %v2809, %v3032
        %3034 = vmatprep.mubr.bf16.mxu0 %v2796
        %3035 = vmatmul.mubr.bf16.gmra.mrb[0].mxu0 %v2402
        %v3036 = vpop.f32.mrb[0].mxu0
        %v3037 = vadd.f32 %v2805, %v3036
        %v3038 = vpop.f32.mrb[0].mxu0
        %v3039 = vadd.f32 %v2809, %v3038
        %v3040 = vpop.f32.mrb[0].mxu0
        %v3041 = vadd.f32 %v2805, %v3040
        %v3042 = vpop.f32.mrb[0].mxu0
        %v3043 = vadd.f32 %v2809, %v3042
        %3044 = vmatprep.mubr.bf16.mxu0 %v2797
        %3045 = vmatmul.mubr.bf16.gmra.mrb[0].mxu0 %v2403
        %v3046 = vpop.f32.mrb[0].mxu0
        %v3047 = vadd.f32 %v2805, %v3046
        %v3048 = vpop.f32.mrb[0].mxu0
        %v3049 = vadd.f32 %v2809, %v3048
        %v3050 = vpop.f32.mrb[0].mxu0
        %v3051 = vadd.f32 %v2805, %v3050
        %v3052 = vpop.f32.mrb[0].mxu0
        %v3053 = vadd.f32 %v2809, %v3052
        %3054 = vmatprep.mubr.bf16.mxu0 %v2798
        %3055 = vmatmul.mubr.bf16.gmra.mrb[0].mxu0 %v2404
        %v3056 = vpop.f32.mrb[0].mxu0
        %v3057 = vadd.f32 %v2805, %v3056
        %v3058 = vpop.f32.mrb[0].mxu0
        %v3059 = vadd.f32 %v2809, %v3058
        %v3060 = vpop.f32.mrb[0].mxu0
        %v3061 = vadd.f32 %v2805, %v3060
        %v3062 = vpop.f32.mrb[0].mxu0
        %v3063 = vadd.f32 %v2809, %v3062
        %3064 = vmatprep.mubr.bf16.mxu0 %v2799
        %3065 = vmatmul.mubr.bf16.gmra.mrb[0].mxu0 %v2405
        %v3066 = vpop.f32.mrb[0].mxu0
        %v3067 = vadd.f32 %v2805, %v3066
        %v3068 = vpop.f32.mrb[0].mxu0
        %v3069 = vadd.f32 %v2809, %v3068
        %v3070 = vpop.f32.mrb[0].mxu0
        %v3071 = vadd.f32 %v2805, %v3070
        %v3072 = vpop.f32.mrb[0].mxu0
        %v3073 = vadd.f32 %v2809, %v3072
        %3074 = vmatprep.mubr.bf16.mxu0 %v2800
        %3075 = vmatmul.mubr.bf16.gmra.mrb[0].mxu0 %v2406
        %v3076 = vpop.f32.mrb[0].mxu0
        %v3077 = vadd.f32 %v2805, %v3076
        %v3078 = vpop.f32.mrb[0].mxu0
        %v3079 = vadd.f32 %v2809, %v3078
        %v3080 = vpop.f32.mrb[0].mxu0
        %v3081 = vadd.f32 %v2805, %v3080
        %v3082 = vpop.f32.mrb[0].mxu0
        %v3083 = vadd.f32 %v2809, %v3082
        %3084 = vdwg.mxu0
        %v3085 = vadd.f32 %v985, %v3007
        %v3086 = vadd.f32 %v986, %v3009
        %v3087 = vadd.f32 %v987, %v3011
        %v3088 = vadd.f32 %v988, %v3013
        %v3089 = vadd.f32 %v989, %v3017
        %v3090 = vadd.f32 %v990, %v3019
        %v3091 = vadd.f32 %v991, %v3021
        %v3092 = vadd.f32 %v992, %v3023
        %v3093 = vadd.f32 %v993, %v3027
        %v3094 = vadd.f32 %v994, %v3029
        %v3095 = vadd.f32 %v995, %v3031
        %v3096 = vadd.f32 %v996, %v3033
        %v3097 = vadd.f32 %v997, %v3037
        %v3098 = vadd.f32 %v998, %v3039
        %v3099 = vadd.f32 %v999, %v3041
        %v3100 = vadd.f32 %v1000, %v3043
        %v3101 = vadd.f32 %v1001, %v3047
        %v3102 = vadd.f32 %v1002, %v3049
        %v3103 = vadd.f32 %v1003, %v3051
        %v3104 = vadd.f32 %v1004, %v3053
        %v3105 = vadd.f32 %v1005, %v3057
        %v3106 = vadd.f32 %v1006, %v3059
        %v3107 = vadd.f32 %v1007, %v3061
        %v3108 = vadd.f32 %v1008, %v3063
        %v3109 = vadd.f32 %v1009, %v3067
        %v3110 = vadd.f32 %v1010, %v3069
        %v3111 = vadd.f32 %v1011, %v3071
        %v3112 = vadd.f32 %v1012, %v3073
        %v3113 = vadd.f32 %v1013, %v3077
        %v3114 = vadd.f32 %v1014, %v3079
        %v3115 = vadd.f32 %v1015, %v3081
        %v3116 = vadd.f32 %v1016, %v3083
        %v3117 = vld [vmem:[%s799] sm:$0x3]
        %v3118 = vld [vmem:[%s803] sm:$0x3]
        %v3119 = vadd.f32 %v3085, %v3086
        %3120 = vadd.xlane.f32.xlu0 %v3119
        %v3121 = vpop.xlane.xlu0 %3120
        %v3122 = vadd.f32 %v3087, %v3088
        %3123 = vadd.xlane.f32.xlu0 %v3122
        %v3124 = vpop.xlane.xlu0 %3123
        %v3125 = vadd.f32 %v3089, %v3090
        %3126 = vadd.xlane.f32.xlu0 %v3125
        %v3127 = vpop.xlane.xlu0 %3126
        %v3128 = vadd.f32 %v3091, %v3092
        %3129 = vadd.xlane.f32.xlu0 %v3128
        %v3130 = vpop.xlane.xlu0 %3129
        %v3131 = vadd.f32 %v3093, %v3094
        %3132 = vadd.xlane.f32.xlu0 %v3131
        %v3133 = vpop.xlane.xlu0 %3132
        %v3134 = vadd.f32 %v3095, %v3096
        %3135 = vadd.xlane.f32.xlu0 %v3134
        %v3136 = vpop.xlane.xlu0 %3135
        %v3137 = vadd.f32 %v3097, %v3098
        %3138 = vadd.xlane.f32.xlu0 %v3137
        %v3139 = vpop.xlane.xlu0 %3138
        %v3140 = vadd.f32 %v3099, %v3100
        %3141 = vadd.xlane.f32.xlu0 %v3140
        %v3142 = vpop.xlane.xlu0 %3141
        %v3143 = vadd.f32 %v3101, %v3102
        %3144 = vadd.xlane.f32.xlu0 %v3143
        %v3145 = vpop.xlane.xlu0 %3144
        %v3146 = vadd.f32 %v3103, %v3104
        %3147 = vadd.xlane.f32.xlu0 %v3146
        %v3148 = vpop.xlane.xlu0 %3147
        %v3149 = vadd.f32 %v3105, %v3106
        %3150 = vadd.xlane.f32.xlu0 %v3149
        %v3151 = vpop.xlane.xlu0 %3150
        %v3152 = vadd.f32 %v3107, %v3108
        %3153 = vadd.xlane.f32.xlu0 %v3152
        %v3154 = vpop.xlane.xlu0 %3153
        %v3155 = vadd.f32 %v3109, %v3110
        %3156 = vadd.xlane.f32.xlu0 %v3155
        %v3157 = vpop.xlane.xlu0 %3156
        %v3158 = vadd.f32 %v3111, %v3112
        %3159 = vadd.xlane.f32.xlu0 %v3158
        %v3160 = vpop.xlane.xlu0 %3159
        %v3161 = vadd.f32 %v3113, %v3114
        %3162 = vadd.xlane.f32.xlu0 %v3161
        %v3163 = vpop.xlane.xlu0 %3162
        %v3164 = vadd.f32 %v3115, %v3116
        %3165 = vadd.xlane.f32.xlu0 %v3164
        %v3166 = vpop.xlane.xlu0 %3165
        %v3167 = vrcp.pop 256.0
        %v3168 = vmul.f32 %v3121, %v3167
        %v3169 = vmul.f32 %v3124, %v3167
        %v3170 = vmul.f32 %v3127, %v3167
        %v3171 = vmul.f32 %v3130, %v3167
        %v3172 = vmul.f32 %v3133, %v3167
        %v3173 = vmul.f32 %v3136, %v3167
        %v3174 = vmul.f32 %v3139, %v3167
        %v3175 = vmul.f32 %v3142, %v3167
        %v3176 = vmul.f32 %v3145, %v3167
        %v3177 = vmul.f32 %v3148, %v3167
        %v3178 = vmul.f32 %v3151, %v3167
        %v3179 = vmul.f32 %v3154, %v3167
        %v3180 = vmul.f32 %v3157, %v3167
        %v3181 = vmul.f32 %v3160, %v3167
        %v3182 = vmul.f32 %v3163, %v3167
        %v3183 = vmul.f32 %v3166, %v3167
        %v3184 = vsub.f32 %v3085, %v3168
        %v3185 = vsub.f32 %v3086, %v3168
        %v3186 = vsub.f32 %v3087, %v3169
        %v3187 = vsub.f32 %v3088, %v3169
        %v3188 = vsub.f32 %v3089, %v3170
        %v3189 = vsub.f32 %v3090, %v3170
        %v3190 = vsub.f32 %v3091, %v3171
        %v3191 = vsub.f32 %v3092, %v3171
        %v3192 = vsub.f32 %v3093, %v3172
        %v3193 = vsub.f32 %v3094, %v3172
        %v3194 = vsub.f32 %v3095, %v3173
        %v3195 = vsub.f32 %v3096, %v3173
        %v3196 = vsub.f32 %v3097, %v3174
        %v3197 = vsub.f32 %v3098, %v3174
        %v3198 = vsub.f32 %v3099, %v3175
        %v3199 = vsub.f32 %v3100, %v3175
        %v3200 = vsub.f32 %v3101, %v3176
        %v3201 = vsub.f32 %v3102, %v3176
        %v3202 = vsub.f32 %v3103, %v3177
        %v3203 = vsub.f32 %v3104, %v3177
        %v3204 = vsub.f32 %v3105, %v3178
        %v3205 = vsub.f32 %v3106, %v3178
        %v3206 = vsub.f32 %v3107, %v3179
        %v3207 = vsub.f32 %v3108, %v3179
        %v3208 = vsub.f32 %v3109, %v3180
        %v3209 = vsub.f32 %v3110, %v3180
        %v3210 = vsub.f32 %v3111, %v3181
        %v3211 = vsub.f32 %v3112, %v3181
        %v3212 = vsub.f32 %v3113, %v3182
        %v3213 = vsub.f32 %v3114, %v3182
        %v3214 = vsub.f32 %v3115, %v3183
        %v3215 = vsub.f32 %v3116, %v3183
        %v3216 = vmul.f32 %v3184, %v3184
        %v3217 = vmul.f32 %v3185, %v3185
        %v3218 = vmul.f32 %v3186, %v3186
        %v3219 = vmul.f32 %v3187, %v3187
        %v3220 = vmul.f32 %v3188, %v3188
        %v3221 = vmul.f32 %v3189, %v3189
        %v3222 = vmul.f32 %v3190, %v3190
        %v3223 = vmul.f32 %v3191, %v3191
        %v3224 = vmul.f32 %v3192, %v3192
        %v3225 = vmul.f32 %v3193, %v3193
        %v3226 = vmul.f32 %v3194, %v3194
        %v3227 = vmul.f32 %v3195, %v3195
        %v3228 = vmul.f32 %v3196, %v3196
        %v3229 = vmul.f32 %v3197, %v3197
        %v3230 = vmul.f32 %v3198, %v3198
        %v3231 = vmul.f32 %v3199, %v3199
        %v3232 = vmul.f32 %v3200, %v3200
        %v3233 = vmul.f32 %v3201, %v3201
        %v3234 = vmul.f32 %v3202, %v3202
        %v3235 = vmul.f32 %v3203, %v3203
        %v3236 = vmul.f32 %v3204, %v3204
        %v3237 = vmul.f32 %v3205, %v3205
        %v3238 = vmul.f32 %v3206, %v3206
        %v3239 = vmul.f32 %v3207, %v3207
        %v3240 = vmul.f32 %v3208, %v3208
        %v3241 = vmul.f32 %v3209, %v3209
        %v3242 = vmul.f32 %v3210, %v3210
        %v3243 = vmul.f32 %v3211, %v3211
        %v3244 = vmul.f32 %v3212, %v3212
        %v3245 = vmul.f32 %v3213, %v3213
        %v3246 = vmul.f32 %v3214, %v3214
        %v3247 = vmul.f32 %v3215, %v3215
        %v3248 = vadd.f32 %v3216, %v3217
        %3249 = vadd.xlane.f32.xlu0 %v3248
        %v3250 = vpop.xlane.xlu0 %3249
        %v3251 = vadd.f32 %v3218, %v3219
        %3252 = vadd.xlane.f32.xlu0 %v3251
        %v3253 = vpop.xlane.xlu0 %3252
        %v3254 = vadd.f32 %v3220, %v3221
        %3255 = vadd.xlane.f32.xlu0 %v3254
        %v3256 = vpop.xlane.xlu0 %3255
        %v3257 = vadd.f32 %v3222, %v3223
        %3258 = vadd.xlane.f32.xlu0 %v3257
        %v3259 = vpop.xlane.xlu0 %3258
        %v3260 = vadd.f32 %v3224, %v3225
        %3261 = vadd.xlane.f32.xlu0 %v3260
        %v3262 = vpop.xlane.xlu0 %3261
        %v3263 = vadd.f32 %v3226, %v3227
        %3264 = vadd.xlane.f32.xlu0 %v3263
        %v3265 = vpop.xlane.xlu0 %3264
        %v3266 = vadd.f32 %v3228, %v3229
        %3267 = vadd.xlane.f32.xlu0 %v3266
        %v3268 = vpop.xlane.xlu0 %3267
        %v3269 = vadd.f32 %v3230, %v3231
        %3270 = vadd.xlane.f32.xlu0 %v3269
        %v3271 = vpop.xlane.xlu0 %3270
        %v3272 = vadd.f32 %v3232, %v3233
        %3273 = vadd.xlane.f32.xlu0 %v3272
        %v3274 = vpop.xlane.xlu0 %3273
        %v3275 = vadd.f32 %v3234, %v3235
        %3276 = vadd.xlane.f32.xlu0 %v3275
        %v3277 = vpop.xlane.xlu0 %3276
        %v3278 = vadd.f32 %v3236, %v3237
        %3279 = vadd.xlane.f32.xlu0 %v3278
        %v3280 = vpop.xlane.xlu0 %3279
        %v3281 = vadd.f32 %v3238, %v3239
        %3282 = vadd.xlane.f32.xlu0 %v3281
        %v3283 = vpop.xlane.xlu0 %3282
        %v3284 = vadd.f32 %v3240, %v3241
        %3285 = vadd.xlane.f32.xlu0 %v3284
        %v3286 = vpop.xlane.xlu0 %3285
        %v3287 = vadd.f32 %v3242, %v3243
        %3288 = vadd.xlane.f32.xlu0 %v3287
        %v3289 = vpop.xlane.xlu0 %3288
        %v3290 = vadd.f32 %v3244, %v3245
        %3291 = vadd.xlane.f32.xlu0 %v3290
        %v3292 = vpop.xlane.xlu0 %3291
        %v3293 = vadd.f32 %v3246, %v3247
        %3294 = vadd.xlane.f32.xlu0 %v3293
        %v3295 = vpop.xlane.xlu0 %3294
        %v3296 = vmul.f32 %v3250, %v3167
        %v3297 = vmul.f32 %v3253, %v3167
        %v3298 = vmul.f32 %v3256, %v3167
        %v3299 = vmul.f32 %v3259, %v3167
        %v3300 = vmul.f32 %v3262, %v3167
        %v3301 = vmul.f32 %v3265, %v3167
        %v3302 = vmul.f32 %v3268, %v3167
        %v3303 = vmul.f32 %v3271, %v3167
        %v3304 = vmul.f32 %v3274, %v3167
        %v3305 = vmul.f32 %v3277, %v3167
        %v3306 = vmul.f32 %v3280, %v3167
        %v3307 = vmul.f32 %v3283, %v3167
        %v3308 = vmul.f32 %v3286, %v3167
        %v3309 = vmul.f32 %v3289, %v3167
        %v3310 = vmul.f32 %v3292, %v3167
        %v3311 = vmul.f32 %v3295, %v3167
        %v3312 = vadd.f32 %v3296, 1e-05
        %v3313 = vadd.f32 %v3297, 1e-05
        %v3314 = vadd.f32 %v3298, 1e-05
        %v3315 = vadd.f32 %v3299, 1e-05
        %v3316 = vadd.f32 %v3300, 1e-05
        %v3317 = vadd.f32 %v3301, 1e-05
        %v3318 = vadd.f32 %v3302, 1e-05
        %v3319 = vadd.f32 %v3303, 1e-05
        %v3320 = vadd.f32 %v3304, 1e-05
        %v3321 = vadd.f32 %v3305, 1e-05
        %v3322 = vadd.f32 %v3306, 1e-05
        %v3323 = vadd.f32 %v3307, 1e-05
        %v3324 = vadd.f32 %v3308, 1e-05
        %v3325 = vadd.f32 %v3309, 1e-05
        %v3326 = vadd.f32 %v3310, 1e-05
        %v3327 = vadd.f32 %v3311, 1e-05
        %v3328 = vrsqrt.pop %v3312
        %v3329 = vrsqrt.pop %v3313
        %v3330 = vrsqrt.pop %v3314
        %v3331 = vrsqrt.pop %v3315
        %v3332 = vrsqrt.pop %v3316
        %v3333 = vrsqrt.pop %v3317
        %v3334 = vrsqrt.pop %v3318
        %v3335 = vrsqrt.pop %v3319
        %v3336 = vrsqrt.pop %v3320
        %v3337 = vrsqrt.pop %v3321
        %v3338 = vrsqrt.pop %v3322
        %v3339 = vrsqrt.pop %v3323
        %v3340 = vrsqrt.pop %v3324
        %v3341 = vrsqrt.pop %v3325
        %v3342 = vrsqrt.pop %v3326
        %v3343 = vrsqrt.pop %v3327
        %v3344 = vmul.f32 %v3184, %v3328
        %v3345 = vmul.f32 %v3185, %v3328
        %v3346 = vmul.f32 %v3186, %v3329
        %v3347 = vmul.f32 %v3187, %v3329
        %v3348 = vmul.f32 %v3188, %v3330
        %v3349 = vmul.f32 %v3189, %v3330
        %v3350 = vmul.f32 %v3190, %v3331
        %v3351 = vmul.f32 %v3191, %v3331
        %v3352 = vmul.f32 %v3192, %v3332
        %v3353 = vmul.f32 %v3193, %v3332
        %v3354 = vmul.f32 %v3194, %v3333
        %v3355 = vmul.f32 %v3195, %v3333
        %v3356 = vmul.f32 %v3196, %v3334
        %v3357 = vmul.f32 %v3197, %v3334
        %v3358 = vmul.f32 %v3198, %v3335
        %v3359 = vmul.f32 %v3199, %v3335
        %v3360 = vmul.f32 %v3200, %v3336
        %v3361 = vmul.f32 %v3201, %v3336
        %v3362 = vmul.f32 %v3202, %v3337
        %v3363 = vmul.f32 %v3203, %v3337
        %v3364 = vmul.f32 %v3204, %v3338
        %v3365 = vmul.f32 %v3205, %v3338
        %v3366 = vmul.f32 %v3206, %v3339
        %v3367 = vmul.f32 %v3207, %v3339
        %v3368 = vmul.f32 %v3208, %v3340
        %v3369 = vmul.f32 %v3209, %v3340
        %v3370 = vmul.f32 %v3210, %v3341
        %v3371 = vmul.f32 %v3211, %v3341
        %v3372 = vmul.f32 %v3212, %v3342
        %v3373 = vmul.f32 %v3213, %v3342
        %v3374 = vmul.f32 %v3214, %v3343
        %v3375 = vmul.f32 %v3215, %v3343
        %v3377 = vlaneseq
        %v3378 = vshrl.u32 %v3377, 7
        %v3379 = vsub.s32 0, %v3378
        %v3380 = vrot.slane %v3117, %v3379
        %v3381 = vlaneseq
        %v3382 = vshrl.u32 %v3381, 7
        %v3383 = vsub.s32 1, %v3382
        %v3384 = vrot.slane %v3117, %v3383
        %v3387 = vmul.f32 %v3344, %v3380
        %v3388 = vmul.f32 %v3345, %v3384
        %v3389 = vmul.f32 %v3346, %v3380
        %v3390 = vmul.f32 %v3347, %v3384
        %v3391 = vmul.f32 %v3348, %v3380
        %v3392 = vmul.f32 %v3349, %v3384
        %v3393 = vmul.f32 %v3350, %v3380
        %v3394 = vmul.f32 %v3351, %v3384
        %v3395 = vmul.f32 %v3352, %v3380
        %v3396 = vmul.f32 %v3353, %v3384
        %v3397 = vmul.f32 %v3354, %v3380
        %v3398 = vmul.f32 %v3355, %v3384
        %v3399 = vmul.f32 %v3356, %v3380
        %v3400 = vmul.f32 %v3357, %v3384
        %v3401 = vmul.f32 %v3358, %v3380
        %v3402 = vmul.f32 %v3359, %v3384
        %v3403 = vmul.f32 %v3360, %v3380
        %v3404 = vmul.f32 %v3361, %v3384
        %v3405 = vmul.f32 %v3362, %v3380
        %v3406 = vmul.f32 %v3363, %v3384
        %v3407 = vmul.f32 %v3364, %v3380
        %v3408 = vmul.f32 %v3365, %v3384
        %v3409 = vmul.f32 %v3366, %v3380
        %v3410 = vmul.f32 %v3367, %v3384
        %v3411 = vmul.f32 %v3368, %v3380
        %v3412 = vmul.f32 %v3369, %v3384
        %v3413 = vmul.f32 %v3370, %v3380
        %v3414 = vmul.f32 %v3371, %v3384
        %v3415 = vmul.f32 %v3372, %v3380
        %v3416 = vmul.f32 %v3373, %v3384
        %v3417 = vmul.f32 %v3374, %v3380
        %v3418 = vmul.f32 %v3375, %v3384
        %v3420 = vlaneseq
        %v3421 = vshrl.u32 %v3420, 7
        %v3422 = vsub.s32 0, %v3421
        %v3423 = vrot.slane %v3118, %v3422
        %v3424 = vlaneseq
        %v3425 = vshrl.u32 %v3424, 7
        %v3426 = vsub.s32 1, %v3425
        %v3427 = vrot.slane %v3118, %v3426
        %v3430 = vadd.f32 %v3387, %v3423
        %v3431 = vadd.f32 %v3388, %v3427
        %v3432 = vadd.f32 %v3389, %v3423
        %v3433 = vadd.f32 %v3390, %v3427
        %v3434 = vadd.f32 %v3391, %v3423
        %v3435 = vadd.f32 %v3392, %v3427
        %v3436 = vadd.f32 %v3393, %v3423
        %v3437 = vadd.f32 %v3394, %v3427
        %v3438 = vadd.f32 %v3395, %v3423
        %v3439 = vadd.f32 %v3396, %v3427
        %v3440 = vadd.f32 %v3397, %v3423
        %v3441 = vadd.f32 %v3398, %v3427
        %v3442 = vadd.f32 %v3399, %v3423
        %v3443 = vadd.f32 %v3400, %v3427
        %v3444 = vadd.f32 %v3401, %v3423
        %v3445 = vadd.f32 %v3402, %v3427
        %v3446 = vadd.f32 %v3403, %v3423
        %v3447 = vadd.f32 %v3404, %v3427
        %v3448 = vadd.f32 %v3405, %v3423
        %v3449 = vadd.f32 %v3406, %v3427
        %v3450 = vadd.f32 %v3407, %v3423
        %v3451 = vadd.f32 %v3408, %v3427
        %v3452 = vadd.f32 %v3409, %v3423
        %v3453 = vadd.f32 %v3410, %v3427
        %v3454 = vadd.f32 %v3411, %v3423
        %v3455 = vadd.f32 %v3412, %v3427
        %v3456 = vadd.f32 %v3413, %v3423
        %v3457 = vadd.f32 %v3414, %v3427
        %v3458 = vadd.f32 %v3415, %v3423
        %v3459 = vadd.f32 %v3416, %v3427
        %v3460 = vadd.f32 %v3417, %v3423
        %v3461 = vadd.f32 %v3418, %v3427
        %v3462 = vld [vmem:[%s691] sm:$0xff]
        %v3463 = vld [vmem:[%s691 + $0x8] sm:$0xff]
        %v3464 = vld [vmem:[%s691 + $0x10] sm:$0xff]
        %v3465 = vld [vmem:[%s691 + $0x18] sm:$0xff]
        %v3466 = vld [vmem:[%s691 + $0x20] sm:$0xff]
        %v3467 = vld [vmem:[%s691 + $0x28] sm:$0xff]
        %v3468 = vld [vmem:[%s691 + $0x30] sm:$0xff]
        %v3469 = vld [vmem:[%s691 + $0x38] sm:$0xff]
        %v3470 = vld [vmem:[%s691 + $0x40] sm:$0xff]
        %v3471 = vld [vmem:[%s691 + $0x48] sm:$0xff]
        %v3472 = vld [vmem:[%s691 + $0x50] sm:$0xff]
        %v3473 = vld [vmem:[%s691 + $0x58] sm:$0xff]
        %v3474 = vld [vmem:[%s691 + $0x60] sm:$0xff]
        %v3475 = vld [vmem:[%s691 + $0x68] sm:$0xff]
        %v3476 = vld [vmem:[%s691 + $0x70] sm:$0xff]
        %v3477 = vld [vmem:[%s691 + $0x78] sm:$0xff]
        %v3478 = vld [vmem:[%s691 + $0x80] sm:$0xff]
        %v3479 = vld [vmem:[%s691 + $0x88] sm:$0xff]
        %v3480 = vld [vmem:[%s691 + $0x90] sm:$0xff]
        %v3481 = vld [vmem:[%s691 + $0x98] sm:$0xff]
        %v3482 = vld [vmem:[%s691 + $0xa0] sm:$0xff]
        %v3483 = vld [vmem:[%s691 + $0xa8] sm:$0xff]
        %v3484 = vld [vmem:[%s691 + $0xb0] sm:$0xff]
        %v3485 = vld [vmem:[%s691 + $0xb8] sm:$0xff]
        %v3486 = vld [vmem:[%s691 + $0xc0] sm:$0xff]
        %v3487 = vld [vmem:[%s691 + $0xc8] sm:$0xff]
        %v3488 = vld [vmem:[%s691 + $0xd0] sm:$0xff]
        %v3489 = vld [vmem:[%s691 + $0xd8] sm:$0xff]
        %v3490 = vld [vmem:[%s691 + $0xe0] sm:$0xff]
        %v3491 = vld [vmem:[%s691 + $0xe8] sm:$0xff]
        %v3492 = vld [vmem:[%s691 + $0xf0] sm:$0xff]
        %v3493 = vld [vmem:[%s691 + $0xf8] sm:$0xff]
        %v3494 = vld [vmem:[%s691 + $0x100] sm:$0xff]
        %v3495 = vld [vmem:[%s691 + $0x108] sm:$0xff]
        %v3496 = vld [vmem:[%s691 + $0x110] sm:$0xff]
        %v3497 = vld [vmem:[%s691 + $0x118] sm:$0xff]
        %v3498 = vld [vmem:[%s691 + $0x120] sm:$0xff]
        %v3499 = vld [vmem:[%s691 + $0x128] sm:$0xff]
        %v3500 = vld [vmem:[%s691 + $0x130] sm:$0xff]
        %v3501 = vld [vmem:[%s691 + $0x138] sm:$0xff]
        %v3502 = vld [vmem:[%s691 + $0x140] sm:$0xff]
        %v3503 = vld [vmem:[%s691 + $0x148] sm:$0xff]
        %v3504 = vld [vmem:[%s691 + $0x150] sm:$0xff]
        %v3505 = vld [vmem:[%s691 + $0x158] sm:$0xff]
        %v3506 = vld [vmem:[%s691 + $0x160] sm:$0xff]
        %v3507 = vld [vmem:[%s691 + $0x168] sm:$0xff]
        %v3508 = vld [vmem:[%s691 + $0x170] sm:$0xff]
        %v3509 = vld [vmem:[%s691 + $0x178] sm:$0xff]
        %v3510 = vld [vmem:[%s691 + $0x180] sm:$0xff]
        %v3511 = vld [vmem:[%s691 + $0x188] sm:$0xff]
        %v3512 = vld [vmem:[%s691 + $0x190] sm:$0xff]
        %v3513 = vld [vmem:[%s691 + $0x198] sm:$0xff]
        %v3514 = vld [vmem:[%s691 + $0x1a0] sm:$0xff]
        %v3515 = vld [vmem:[%s691 + $0x1a8] sm:$0xff]
        %v3516 = vld [vmem:[%s691 + $0x1b0] sm:$0xff]
        %v3517 = vld [vmem:[%s691 + $0x1b8] sm:$0xff]
        %v3518 = vld [vmem:[%s691 + $0x1c0] sm:$0xff]
        %v3519 = vld [vmem:[%s691 + $0x1c8] sm:$0xff]
        %v3520 = vld [vmem:[%s691 + $0x1d0] sm:$0xff]
        %v3521 = vld [vmem:[%s691 + $0x1d8] sm:$0xff]
        %v3522 = vld [vmem:[%s691 + $0x1e0] sm:$0xff]
        %v3523 = vld [vmem:[%s691 + $0x1e8] sm:$0xff]
        %v3524 = vld [vmem:[%s691 + $0x1f0] sm:$0xff]
        %v3525 = vld [vmem:[%s691 + $0x1f8] sm:$0xff]
        %v3526 = vpack.c.bf16 %v3432, %v3430
        %v3527 = vpack.c.bf16 %v3433, %v3431
        %v3528 = vpack.c.bf16 %v3436, %v3434
        %v3529 = vpack.c.bf16 %v3437, %v3435
        %v3530 = vpack.c.bf16 %v3440, %v3438
        %v3531 = vpack.c.bf16 %v3441, %v3439
        %v3532 = vpack.c.bf16 %v3444, %v3442
        %v3533 = vpack.c.bf16 %v3445, %v3443
        %v3534 = vpack.c.bf16 %v3448, %v3446
        %v3535 = vpack.c.bf16 %v3449, %v3447
        %v3536 = vpack.c.bf16 %v3452, %v3450
        %v3537 = vpack.c.bf16 %v3453, %v3451
        %v3538 = vpack.c.bf16 %v3456, %v3454
        %v3539 = vpack.c.bf16 %v3457, %v3455
        %v3540 = vpack.c.bf16 %v3460, %v3458
        %v3541 = vpack.c.bf16 %v3461, %v3459
        %v3542 = vld [vmem:[%s807] sm:$0xf]
        %v3544 = vlaneseq
        %v3545 = vshrl.u32 %v3544, 7
        %v3546 = vsub.s32 0, %v3545
        %v3547 = vrot.slane %v3542, %v3546
        %v3548 = vlaneseq
        %v3549 = vshrl.u32 %v3548, 7
        %v3550 = vsub.s32 1, %v3549
        %v3551 = vrot.slane %v3542, %v3550
        %v3552 = vlaneseq
        %v3553 = vshrl.u32 %v3552, 7
        %v3554 = vsub.s32 2, %v3553
        %v3555 = vrot.slane %v3542, %v3554
        %v3556 = vlaneseq
        %v3557 = vshrl.u32 %v3556, 7
        %v3558 = vsub.s32 3, %v3557
        %v3559 = vrot.slane %v3542, %v3558
        %v3628 = vunpack.c.l.b16 %v3462
        %v3629 = vunpack.c.h.b16 %v3462
        %v3630 = vunpack.c.l.b16 %v3463
        %v3631 = vunpack.c.h.b16 %v3463
        %v3632 = vunpack.c.l.b16 %v3464
        %v3633 = vunpack.c.h.b16 %v3464
        %v3634 = vunpack.c.l.b16 %v3465
        %v3635 = vunpack.c.h.b16 %v3465
        %v3636 = vunpack.c.l.b16 %v3466
        %v3637 = vunpack.c.h.b16 %v3466
        %v3638 = vunpack.c.l.b16 %v3467
        %v3639 = vunpack.c.h.b16 %v3467
        %v3640 = vunpack.c.l.b16 %v3468
        %v3641 = vunpack.c.h.b16 %v3468
        %v3642 = vunpack.c.l.b16 %v3469
        %v3643 = vunpack.c.h.b16 %v3469
        %v3644 = vunpack.c.l.b16 %v3470
        %v3645 = vunpack.c.h.b16 %v3470
        %v3646 = vunpack.c.l.b16 %v3471
        %v3647 = vunpack.c.h.b16 %v3471
        %v3648 = vunpack.c.l.b16 %v3472
        %v3649 = vunpack.c.h.b16 %v3472
        %v3650 = vunpack.c.l.b16 %v3473
        %v3651 = vunpack.c.h.b16 %v3473
        %v3652 = vunpack.c.l.b16 %v3474
        %v3653 = vunpack.c.h.b16 %v3474
        %v3654 = vunpack.c.l.b16 %v3475
        %v3655 = vunpack.c.h.b16 %v3475
        %v3656 = vunpack.c.l.b16 %v3476
        %v3657 = vunpack.c.h.b16 %v3476
        %v3658 = vunpack.c.l.b16 %v3477
        %v3659 = vunpack.c.h.b16 %v3477
        %v3660 = vunpack.c.l.b16 %v3478
        %v3661 = vunpack.c.h.b16 %v3478
        %v3662 = vunpack.c.l.b16 %v3479
        %v3663 = vunpack.c.h.b16 %v3479
        %v3664 = vunpack.c.l.b16 %v3480
        %v3665 = vunpack.c.h.b16 %v3480
        %v3666 = vunpack.c.l.b16 %v3481
        %v3667 = vunpack.c.h.b16 %v3481
        %v3668 = vunpack.c.l.b16 %v3482
        %v3669 = vunpack.c.h.b16 %v3482
        %v3670 = vunpack.c.l.b16 %v3483
        %v3671 = vunpack.c.h.b16 %v3483
        %v3672 = vunpack.c.l.b16 %v3484
        %v3673 = vunpack.c.h.b16 %v3484
        %v3674 = vunpack.c.l.b16 %v3485
        %v3675 = vunpack.c.h.b16 %v3485
        %v3676 = vunpack.c.l.b16 %v3486
        %v3677 = vunpack.c.h.b16 %v3486
        %v3678 = vunpack.c.l.b16 %v3487
        %v3679 = vunpack.c.h.b16 %v3487
        %v3680 = vunpack.c.l.b16 %v3488
        %v3681 = vunpack.c.h.b16 %v3488
        %v3682 = vunpack.c.l.b16 %v3489
        %v3683 = vunpack.c.h.b16 %v3489
        %v3684 = vunpack.c.l.b16 %v3490
        %v3685 = vunpack.c.h.b16 %v3490
        %v3686 = vunpack.c.l.b16 %v3491
        %v3687 = vunpack.c.h.b16 %v3491
        %v3688 = vunpack.c.l.b16 %v3492
        %v3689 = vunpack.c.h.b16 %v3492
        %v3690 = vunpack.c.l.b16 %v3493
        %v3691 = vunpack.c.h.b16 %v3493
        %v3692 = vunpack.c.l.b16 %v3494
        %v3693 = vunpack.c.h.b16 %v3494
        %v3694 = vunpack.c.l.b16 %v3495
        %v3695 = vunpack.c.h.b16 %v3495
        %v3696 = vunpack.c.l.b16 %v3496
        %v3697 = vunpack.c.h.b16 %v3496
        %v3698 = vunpack.c.l.b16 %v3497
        %v3699 = vunpack.c.h.b16 %v3497
        %v3700 = vunpack.c.l.b16 %v3498
        %v3701 = vunpack.c.h.b16 %v3498
        %v3702 = vunpack.c.l.b16 %v3499
        %v3703 = vunpack.c.h.b16 %v3499
        %v3704 = vunpack.c.l.b16 %v3500
        %v3705 = vunpack.c.h.b16 %v3500
        %v3706 = vunpack.c.l.b16 %v3501
        %v3707 = vunpack.c.h.b16 %v3501
        %v3708 = vunpack.c.l.b16 %v3502
        %v3709 = vunpack.c.h.b16 %v3502
        %v3710 = vunpack.c.l.b16 %v3503
        %v3711 = vunpack.c.h.b16 %v3503
        %v3712 = vunpack.c.l.b16 %v3504
        %v3713 = vunpack.c.h.b16 %v3504
        %v3714 = vunpack.c.l.b16 %v3505
        %v3715 = vunpack.c.h.b16 %v3505
        %v3716 = vunpack.c.l.b16 %v3506
        %v3717 = vunpack.c.h.b16 %v3506
        %v3718 = vunpack.c.l.b16 %v3507
        %v3719 = vunpack.c.h.b16 %v3507
        %v3720 = vunpack.c.l.b16 %v3508
        %v3721 = vunpack.c.h.b16 %v3508
        %v3722 = vunpack.c.l.b16 %v3509
        %v3723 = vunpack.c.h.b16 %v3509
        %v3724 = vunpack.c.l.b16 %v3510
        %v3725 = vunpack.c.h.b16 %v3510
        %v3726 = vunpack.c.l.b16 %v3511
        %v3727 = vunpack.c.h.b16 %v3511
        %v3728 = vunpack.c.l.b16 %v3512
        %v3729 = vunpack.c.h.b16 %v3512
        %v3730 = vunpack.c.l.b16 %v3513
        %v3731 = vunpack.c.h.b16 %v3513
        %v3732 = vunpack.c.l.b16 %v3514
        %v3733 = vunpack.c.h.b16 %v3514
        %v3734 = vunpack.c.l.b16 %v3515
        %v3735 = vunpack.c.h.b16 %v3515
        %v3736 = vunpack.c.l.b16 %v3516
        %v3737 = vunpack.c.h.b16 %v3516
        %v3738 = vunpack.c.l.b16 %v3517
        %v3739 = vunpack.c.h.b16 %v3517
        %v3740 = vunpack.c.l.b16 %v3518
        %v3741 = vunpack.c.h.b16 %v3518
        %v3742 = vunpack.c.l.b16 %v3519
        %v3743 = vunpack.c.h.b16 %v3519
        %v3744 = vunpack.c.l.b16 %v3520
        %v3745 = vunpack.c.h.b16 %v3520
        %v3746 = vunpack.c.l.b16 %v3521
        %v3747 = vunpack.c.h.b16 %v3521
        %v3748 = vunpack.c.l.b16 %v3522
        %v3749 = vunpack.c.h.b16 %v3522
        %v3750 = vunpack.c.l.b16 %v3523
        %v3751 = vunpack.c.h.b16 %v3523
        %v3752 = vunpack.c.l.b16 %v3524
        %v3753 = vunpack.c.h.b16 %v3524
        %v3754 = vunpack.c.l.b16 %v3525
        %v3755 = vunpack.c.h.b16 %v3525
        %v3756 = vpack.c.b16 %v3632, %v3628
        %v3757 = vpack.c.b16 %v3633, %v3629
        %v3758 = vpack.c.b16 %v3634, %v3630
        %v3759 = vpack.c.b16 %v3635, %v3631
        %v3760 = vpack.c.b16 %v3640, %v3636
        %v3761 = vpack.c.b16 %v3641, %v3637
        %v3762 = vpack.c.b16 %v3642, %v3638
        %v3763 = vpack.c.b16 %v3643, %v3639
        %v3764 = vpack.c.b16 %v3648, %v3644
        %v3765 = vpack.c.b16 %v3649, %v3645
        %v3766 = vpack.c.b16 %v3650, %v3646
        %v3767 = vpack.c.b16 %v3651, %v3647
        %v3768 = vpack.c.b16 %v3656, %v3652
        %v3769 = vpack.c.b16 %v3657, %v3653
        %v3770 = vpack.c.b16 %v3658, %v3654
        %v3771 = vpack.c.b16 %v3659, %v3655
        %v3772 = vpack.c.b16 %v3664, %v3660
        %v3773 = vpack.c.b16 %v3665, %v3661
        %v3774 = vpack.c.b16 %v3666, %v3662
        %v3775 = vpack.c.b16 %v3667, %v3663
        %v3776 = vpack.c.b16 %v3672, %v3668
        %v3777 = vpack.c.b16 %v3673, %v3669
        %v3778 = vpack.c.b16 %v3674, %v3670
        %v3779 = vpack.c.b16 %v3675, %v3671
        %v3780 = vpack.c.b16 %v3680, %v3676
        %v3781 = vpack.c.b16 %v3681, %v3677
        %v3782 = vpack.c.b16 %v3682, %v3678
        %v3783 = vpack.c.b16 %v3683, %v3679
        %v3784 = vpack.c.b16 %v3688, %v3684
        %v3785 = vpack.c.b16 %v3689, %v3685
        %v3786 = vpack.c.b16 %v3690, %v3686
        %v3787 = vpack.c.b16 %v3691, %v3687
        %v3788 = vpack.c.b16 %v3696, %v3692
        %v3789 = vpack.c.b16 %v3697, %v3693
        %v3790 = vpack.c.b16 %v3698, %v3694
        %v3791 = vpack.c.b16 %v3699, %v3695
        %v3792 = vpack.c.b16 %v3704, %v3700
        %v3793 = vpack.c.b16 %v3705, %v3701
        %v3794 = vpack.c.b16 %v3706, %v3702
        %v3795 = vpack.c.b16 %v3707, %v3703
        %v3796 = vpack.c.b16 %v3712, %v3708
        %v3797 = vpack.c.b16 %v3713, %v3709
        %v3798 = vpack.c.b16 %v3714, %v3710
        %v3799 = vpack.c.b16 %v3715, %v3711
        %v3800 = vpack.c.b16 %v3720, %v3716
        %v3801 = vpack.c.b16 %v3721, %v3717
        %v3802 = vpack.c.b16 %v3722, %v3718
        %v3803 = vpack.c.b16 %v3723, %v3719
        %v3804 = vpack.c.b16 %v3728, %v3724
        %v3805 = vpack.c.b16 %v3729, %v3725
        %v3806 = vpack.c.b16 %v3730, %v3726
        %v3807 = vpack.c.b16 %v3731, %v3727
        %v3808 = vpack.c.b16 %v3736, %v3732
        %v3809 = vpack.c.b16 %v3737, %v3733
        %v3810 = vpack.c.b16 %v3738, %v3734
        %v3811 = vpack.c.b16 %v3739, %v3735
        %v3812 = vpack.c.b16 %v3744, %v3740
        %v3813 = vpack.c.b16 %v3745, %v3741
        %v3814 = vpack.c.b16 %v3746, %v3742
        %v3815 = vpack.c.b16 %v3747, %v3743
        %v3816 = vpack.c.b16 %v3752, %v3748
        %v3817 = vpack.c.b16 %v3753, %v3749
        %v3818 = vpack.c.b16 %v3754, %v3750
        %v3819 = vpack.c.b16 %v3755, %v3751
        %3884 = vmatprep.subr.bf16.mxu0 %v3757
        %3885 = vmatpush1.bf16.msra.mxu0 %v3756
        %3886 = vmatprep.subr.bf16.mxu0 %v3761
        %3887 = vmatpush1.bf16.msra.mxu0 %v3760
        %3888 = vmatprep.subr.bf16.mxu0 %v3765
        %3889 = vmatpush1.bf16.msra.mxu0 %v3764
        %3890 = vmatprep.subr.bf16.mxu0 %v3769
        %3891 = vmatpush1.bf16.msra.mxu0 %v3768
        %3892 = vmatprep.subr.bf16.mxu0 %v3773
        %3893 = vmatpush1.bf16.msra.mxu0 %v3772
        %3894 = vmatprep.subr.bf16.mxu0 %v3777
        %3895 = vmatpush1.bf16.msra.mxu0 %v3776
        %3896 = vmatprep.subr.bf16.mxu0 %v3781
        %3897 = vmatpush1.bf16.msra.mxu0 %v3780
        %3898 = vmatprep.subr.bf16.mxu0 %v3785
        %3899 = vmatpush1.bf16.msra.mxu0 %v3784
        %3900 = vmatprep.subr.bf16.mxu0 %v3789
        %3901 = vmatpush1.bf16.msra.mxu0 %v3788
        %3902 = vmatprep.subr.bf16.mxu0 %v3793
        %3903 = vmatpush1.bf16.msra.mxu0 %v3792
        %3904 = vmatprep.subr.bf16.mxu0 %v3797
        %3905 = vmatpush1.bf16.msra.mxu0 %v3796
        %3906 = vmatprep.subr.bf16.mxu0 %v3801
        %3907 = vmatpush1.bf16.msra.mxu0 %v3800
        %3908 = vmatprep.subr.bf16.mxu0 %v3805
        %3909 = vmatpush1.bf16.msra.mxu0 %v3804
        %3910 = vmatprep.subr.bf16.mxu0 %v3809
        %3911 = vmatpush1.bf16.msra.mxu0 %v3808
        %3912 = vmatprep.subr.bf16.mxu0 %v3813
        %3913 = vmatpush1.bf16.msra.mxu0 %v3812
        %3914 = vmatprep.subr.bf16.mxu0 %v3817
        %3915 = vmatpush1.bf16.msra.mxu0 %v3816
        %3916 = vmatprep.mubr.bf16.mxu0 %v3527
        %3917 = vmatmul.mubr.bf16.gmra.mrb[0].mxu0 %v3526
        %v3918 = vpop.f32.mrb[0].mxu0
        %v3919 = vadd.f32 %v3547, %v3918
        %v3920 = vpop.f32.mrb[0].mxu0
        %v3921 = vadd.f32 %v3551, %v3920
        %v3922 = vpop.f32.mrb[0].mxu0
        %v3923 = vadd.f32 %v3547, %v3922
        %v3924 = vpop.f32.mrb[0].mxu0
        %v3925 = vadd.f32 %v3551, %v3924
        %3926 = vmatprep.mubr.bf16.mxu0 %v3529
        %3927 = vmatmul.mubr.bf16.gmra.mrb[0].mxu0 %v3528
        %v3928 = vpop.f32.mrb[0].mxu0
        %v3929 = vadd.f32 %v3547, %v3928
        %v3930 = vpop.f32.mrb[0].mxu0
        %v3931 = vadd.f32 %v3551, %v3930
        %v3932 = vpop.f32.mrb[0].mxu0
        %v3933 = vadd.f32 %v3547, %v3932
        %v3934 = vpop.f32.mrb[0].mxu0
        %v3935 = vadd.f32 %v3551, %v3934
        %3936 = vmatprep.mubr.bf16.mxu0 %v3531
        %3937 = vmatmul.mubr.bf16.gmra.mrb[0].mxu0 %v3530
        %v3938 = vpop.f32.mrb[0].mxu0
        %v3939 = vadd.f32 %v3547, %v3938
        %v3940 = vpop.f32.mrb[0].mxu0
        %v3941 = vadd.f32 %v3551, %v3940
        %v3942 = vpop.f32.mrb[0].mxu0
        %v3943 = vadd.f32 %v3547, %v3942
        %v3944 = vpop.f32.mrb[0].mxu0
        %v3945 = vadd.f32 %v3551, %v3944
        %3946 = vmatprep.mubr.bf16.mxu0 %v3533
        %3947 = vmatmul.mubr.bf16.gmra.mrb[0].mxu0 %v3532
        %v3948 = vpop.f32.mrb[0].mxu0
        %v3949 = vadd.f32 %v3547, %v3948
        %v3950 = vpop.f32.mrb[0].mxu0
        %v3951 = vadd.f32 %v3551, %v3950
        %v3952 = vpop.f32.mrb[0].mxu0
        %v3953 = vadd.f32 %v3547, %v3952
        %v3954 = vpop.f32.mrb[0].mxu0
        %v3955 = vadd.f32 %v3551, %v3954
        %3956 = vmatprep.mubr.bf16.mxu0 %v3535
        %3957 = vmatmul.mubr.bf16.gmra.mrb[0].mxu0 %v3534
        %v3958 = vpop.f32.mrb[0].mxu0
        %v3959 = vadd.f32 %v3547, %v3958
        %v3960 = vpop.f32.mrb[0].mxu0
        %v3961 = vadd.f32 %v3551, %v3960
        %v3962 = vpop.f32.mrb[0].mxu0
        %v3963 = vadd.f32 %v3547, %v3962
        %v3964 = vpop.f32.mrb[0].mxu0
        %v3965 = vadd.f32 %v3551, %v3964
        %3966 = vmatprep.mubr.bf16.mxu0 %v3537
        %3967 = vmatmul.mubr.bf16.gmra.mrb[0].mxu0 %v3536
        %v3968 = vpop.f32.mrb[0].mxu0
        %v3969 = vadd.f32 %v3547, %v3968
        %v3970 = vpop.f32.mrb[0].mxu0
        %v3971 = vadd.f32 %v3551, %v3970
        %v3972 = vpop.f32.mrb[0].mxu0
        %v3973 = vadd.f32 %v3547, %v3972
        %v3974 = vpop.f32.mrb[0].mxu0
        %v3975 = vadd.f32 %v3551, %v3974
        %3976 = vmatprep.mubr.bf16.mxu0 %v3539
        %3977 = vmatmul.mubr.bf16.gmra.mrb[0].mxu0 %v3538
        %v3978 = vpop.f32.mrb[0].mxu0
        %v3979 = vadd.f32 %v3547, %v3978
        %v3980 = vpop.f32.mrb[0].mxu0
        %v3981 = vadd.f32 %v3551, %v3980
        %v3982 = vpop.f32.mrb[0].mxu0
        %v3983 = vadd.f32 %v3547, %v3982
        %v3984 = vpop.f32.mrb[0].mxu0
        %v3985 = vadd.f32 %v3551, %v3984
        %3986 = vmatprep.mubr.bf16.mxu0 %v3541
        %3987 = vmatmul.mubr.bf16.gmra.mrb[0].mxu0 %v3540
        %v3988 = vpop.f32.mrb[0].mxu0
        %v3989 = vadd.f32 %v3547, %v3988
        %v3990 = vpop.f32.mrb[0].mxu0
        %v3991 = vadd.f32 %v3551, %v3990
        %v3992 = vpop.f32.mrb[0].mxu0
        %v3993 = vadd.f32 %v3547, %v3992
        %v3994 = vpop.f32.mrb[0].mxu0
        %v3995 = vadd.f32 %v3551, %v3994
        %3996 = vdwg.mxu0
        %3997 = vmatprep.subr.bf16.mxu0 %v3759
        %3998 = vmatpush1.bf16.msra.mxu0 %v3758
        %3999 = vmatprep.subr.bf16.mxu0 %v3763
        %4000 = vmatpush1.bf16.msra.mxu0 %v3762
        %4001 = vmatprep.subr.bf16.mxu0 %v3767
        %4002 = vmatpush1.bf16.msra.mxu0 %v3766
        %4003 = vmatprep.subr.bf16.mxu0 %v3771
        %4004 = vmatpush1.bf16.msra.mxu0 %v3770
        %4005 = vmatprep.subr.bf16.mxu0 %v3775
        %4006 = vmatpush1.bf16.msra.mxu0 %v3774
        %4007 = vmatprep.subr.bf16.mxu0 %v3779
        %4008 = vmatpush1.bf16.msra.mxu0 %v3778
        %4009 = vmatprep.subr.bf16.mxu0 %v3783
        %4010 = vmatpush1.bf16.msra.mxu0 %v3782
        %4011 = vmatprep.subr.bf16.mxu0 %v3787
        %4012 = vmatpush1.bf16.msra.mxu0 %v3786
        %4013 = vmatprep.subr.bf16.mxu0 %v3791
        %4014 = vmatpush1.bf16.msra.mxu0 %v3790
        %4015 = vmatprep.subr.bf16.mxu0 %v3795
        %4016 = vmatpush1.bf16.msra.mxu0 %v3794
        %4017 = vmatprep.subr.bf16.mxu0 %v3799
        %4018 = vmatpush1.bf16.msra.mxu0 %v3798
        %4019 = vmatprep.subr.bf16.mxu0 %v3803
        %4020 = vmatpush1.bf16.msra.mxu0 %v3802
        %4021 = vmatprep.subr.bf16.mxu0 %v3807
        %4022 = vmatpush1.bf16.msra.mxu0 %v3806
        %4023 = vmatprep.subr.bf16.mxu0 %v3811
        %4024 = vmatpush1.bf16.msra.mxu0 %v3810
        %4025 = vmatprep.subr.bf16.mxu0 %v3815
        %4026 = vmatpush1.bf16.msra.mxu0 %v3814
        %4027 = vmatprep.subr.bf16.mxu0 %v3819
        %4028 = vmatpush1.bf16.msra.mxu0 %v3818
        %4029 = vmatprep.mubr.bf16.mxu0 %v3527
        %4030 = vmatmul.mubr.bf16.gmra.mrb[0].mxu0 %v3526
        %v4031 = vpop.f32.mrb[0].mxu0
        %v4032 = vadd.f32 %v3555, %v4031
        %v4033 = vpop.f32.mrb[0].mxu0
        %v4034 = vadd.f32 %v3559, %v4033
        %v4035 = vpop.f32.mrb[0].mxu0
        %v4036 = vadd.f32 %v3555, %v4035
        %v4037 = vpop.f32.mrb[0].mxu0
        %v4038 = vadd.f32 %v3559, %v4037
        %4039 = vmatprep.mubr.bf16.mxu0 %v3529
        %4040 = vmatmul.mubr.bf16.gmra.mrb[0].mxu0 %v3528
        %v4041 = vpop.f32.mrb[0].mxu0
        %v4042 = vadd.f32 %v3555, %v4041
        %v4043 = vpop.f32.mrb[0].mxu0
        %v4044 = vadd.f32 %v3559, %v4043
        %v4045 = vpop.f32.mrb[0].mxu0
        %v4046 = vadd.f32 %v3555, %v4045
        %v4047 = vpop.f32.mrb[0].mxu0
        %v4048 = vadd.f32 %v3559, %v4047
        %4049 = vmatprep.mubr.bf16.mxu0 %v3531
        %4050 = vmatmul.mubr.bf16.gmra.mrb[0].mxu0 %v3530
        %v4051 = vpop.f32.mrb[0].mxu0
        %v4052 = vadd.f32 %v3555, %v4051
        %v4053 = vpop.f32.mrb[0].mxu0
        %v4054 = vadd.f32 %v3559, %v4053
        %v4055 = vpop.f32.mrb[0].mxu0
        %v4056 = vadd.f32 %v3555, %v4055
        %v4057 = vpop.f32.mrb[0].mxu0
        %v4058 = vadd.f32 %v3559, %v4057
        %4059 = vmatprep.mubr.bf16.mxu0 %v3533
        %4060 = vmatmul.mubr.bf16.gmra.mrb[0].mxu0 %v3532
        %v4061 = vpop.f32.mrb[0].mxu0
        %v4062 = vadd.f32 %v3555, %v4061
        %v4063 = vpop.f32.mrb[0].mxu0
        %v4064 = vadd.f32 %v3559, %v4063
        %v4065 = vpop.f32.mrb[0].mxu0
        %v4066 = vadd.f32 %v3555, %v4065
        %v4067 = vpop.f32.mrb[0].mxu0
        %v4068 = vadd.f32 %v3559, %v4067
        %4069 = vmatprep.mubr.bf16.mxu0 %v3535
        %4070 = vmatmul.mubr.bf16.gmra.mrb[0].mxu0 %v3534
        %v4071 = vpop.f32.mrb[0].mxu0
        %v4072 = vadd.f32 %v3555, %v4071
        %v4073 = vpop.f32.mrb[0].mxu0
        %v4074 = vadd.f32 %v3559, %v4073
        %v4075 = vpop.f32.mrb[0].mxu0
        %v4076 = vadd.f32 %v3555, %v4075
        %v4077 = vpop.f32.mrb[0].mxu0
        %v4078 = vadd.f32 %v3559, %v4077
        %4079 = vmatprep.mubr.bf16.mxu0 %v3537
        %4080 = vmatmul.mubr.bf16.gmra.mrb[0].mxu0 %v3536
        %v4081 = vpop.f32.mrb[0].mxu0
        %v4082 = vadd.f32 %v3555, %v4081
        %v4083 = vpop.f32.mrb[0].mxu0
        %v4084 = vadd.f32 %v3559, %v4083
        %v4085 = vpop.f32.mrb[0].mxu0
        %v4086 = vadd.f32 %v3555, %v4085
        %v4087 = vpop.f32.mrb[0].mxu0
        %v4088 = vadd.f32 %v3559, %v4087
        %4089 = vmatprep.mubr.bf16.mxu0 %v3539
        %4090 = vmatmul.mubr.bf16.gmra.mrb[0].mxu0 %v3538
        %v4091 = vpop.f32.mrb[0].mxu0
        %v4092 = vadd.f32 %v3555, %v4091
        %v4093 = vpop.f32.mrb[0].mxu0
        %v4094 = vadd.f32 %v3559, %v4093
        %v4095 = vpop.f32.mrb[0].mxu0
        %v4096 = vadd.f32 %v3555, %v4095
        %v4097 = vpop.f32.mrb[0].mxu0
        %v4098 = vadd.f32 %v3559, %v4097
        %4099 = vmatprep.mubr.bf16.mxu0 %v3541
        %4100 = vmatmul.mubr.bf16.gmra.mrb[0].mxu0 %v3540
        %v4101 = vpop.f32.mrb[0].mxu0
        %v4102 = vadd.f32 %v3555, %v4101
        %v4103 = vpop.f32.mrb[0].mxu0
        %v4104 = vadd.f32 %v3559, %v4103
        %v4105 = vpop.f32.mrb[0].mxu0
        %v4106 = vadd.f32 %v3555, %v4105
        %v4107 = vpop.f32.mrb[0].mxu0
        %v4108 = vadd.f32 %v3559, %v4107
        %4109 = vdwg.mxu0
        %v4110 = vmax.f32 %v3919, 0.0
        %v4111 = vmax.f32 %v3921, 0.0
        %v4112 = vmax.f32 %v4032, 0.0
        %v4113 = vmax.f32 %v4034, 0.0
        %v4114 = vmax.f32 %v3923, 0.0
        %v4115 = vmax.f32 %v3925, 0.0
        %v4116 = vmax.f32 %v4036, 0.0
        %v4117 = vmax.f32 %v4038, 0.0
        %v4118 = vmax.f32 %v3929, 0.0
        %v4119 = vmax.f32 %v3931, 0.0
        %v4120 = vmax.f32 %v4042, 0.0
        %v4121 = vmax.f32 %v4044, 0.0
        %v4122 = vmax.f32 %v3933, 0.0
        %v4123 = vmax.f32 %v3935, 0.0
        %v4124 = vmax.f32 %v4046, 0.0
        %v4125 = vmax.f32 %v4048, 0.0
        %v4126 = vmax.f32 %v3939, 0.0
        %v4127 = vmax.f32 %v3941, 0.0
        %v4128 = vmax.f32 %v4052, 0.0
        %v4129 = vmax.f32 %v4054, 0.0
        %v4130 = vmax.f32 %v3943, 0.0
        %v4131 = vmax.f32 %v3945, 0.0
        %v4132 = vmax.f32 %v4056, 0.0
        %v4133 = vmax.f32 %v4058, 0.0
        %v4134 = vmax.f32 %v3949, 0.0
        %v4135 = vmax.f32 %v3951, 0.0
        %v4136 = vmax.f32 %v4062, 0.0
        %v4137 = vmax.f32 %v4064, 0.0
        %v4138 = vmax.f32 %v3953, 0.0
        %v4139 = vmax.f32 %v3955, 0.0
        %v4140 = vmax.f32 %v4066, 0.0
        %v4141 = vmax.f32 %v4068, 0.0
        %v4142 = vmax.f32 %v3959, 0.0
        %v4143 = vmax.f32 %v3961, 0.0
        %v4144 = vmax.f32 %v4072, 0.0
        %v4145 = vmax.f32 %v4074, 0.0
        %v4146 = vmax.f32 %v3963, 0.0
        %v4147 = vmax.f32 %v3965, 0.0
        %v4148 = vmax.f32 %v4076, 0.0
        %v4149 = vmax.f32 %v4078, 0.0
        %v4150 = vmax.f32 %v3969, 0.0
        %v4151 = vmax.f32 %v3971, 0.0
        %v4152 = vmax.f32 %v4082, 0.0
        %v4153 = vmax.f32 %v4084, 0.0
        %v4154 = vmax.f32 %v3973, 0.0
        %v4155 = vmax.f32 %v3975, 0.0
        %v4156 = vmax.f32 %v4086, 0.0
        %v4157 = vmax.f32 %v4088, 0.0
        %v4158 = vmax.f32 %v3979, 0.0
        %v4159 = vmax.f32 %v3981, 0.0
        %v4160 = vmax.f32 %v4092, 0.0
        %v4161 = vmax.f32 %v4094, 0.0
        %v4162 = vmax.f32 %v3983, 0.0
        %v4163 = vmax.f32 %v3985, 0.0
        %v4164 = vmax.f32 %v4096, 0.0
        %v4165 = vmax.f32 %v4098, 0.0
        %v4166 = vmax.f32 %v3989, 0.0
        %v4167 = vmax.f32 %v3991, 0.0
        %v4168 = vmax.f32 %v4102, 0.0
        %v4169 = vmax.f32 %v4104, 0.0
        %v4170 = vmax.f32 %v3993, 0.0
        %v4171 = vmax.f32 %v3995, 0.0
        %v4172 = vmax.f32 %v4106, 0.0
        %v4173 = vmax.f32 %v4108, 0.0
        %v4174 = vld [vmem:[%s700] sm:$0xff]
        %v4175 = vld [vmem:[%s700 + $0x8] sm:$0xff]
        %v4176 = vld [vmem:[%s700 + $0x10] sm:$0xff]
        %v4177 = vld [vmem:[%s700 + $0x18] sm:$0xff]
        %v4178 = vld [vmem:[%s700 + $0x20] sm:$0xff]
        %v4179 = vld [vmem:[%s700 + $0x28] sm:$0xff]
        %v4180 = vld [vmem:[%s700 + $0x30] sm:$0xff]
        %v4181 = vld [vmem:[%s700 + $0x38] sm:$0xff]
        %v4182 = vld [vmem:[%s700 + $0x40] sm:$0xff]
        %v4183 = vld [vmem:[%s700 + $0x48] sm:$0xff]
        %v4184 = vld [vmem:[%s700 + $0x50] sm:$0xff]
        %v4185 = vld [vmem:[%s700 + $0x58] sm:$0xff]
        %v4186 = vld [vmem:[%s700 + $0x60] sm:$0xff]
        %v4187 = vld [vmem:[%s700 + $0x68] sm:$0xff]
        %v4188 = vld [vmem:[%s700 + $0x70] sm:$0xff]
        %v4189 = vld [vmem:[%s700 + $0x78] sm:$0xff]
        %v4190 = vld [vmem:[%s700 + $0x80] sm:$0xff]
        %v4191 = vld [vmem:[%s700 + $0x88] sm:$0xff]
        %v4192 = vld [vmem:[%s700 + $0x90] sm:$0xff]
        %v4193 = vld [vmem:[%s700 + $0x98] sm:$0xff]
        %v4194 = vld [vmem:[%s700 + $0xa0] sm:$0xff]
        %v4195 = vld [vmem:[%s700 + $0xa8] sm:$0xff]
        %v4196 = vld [vmem:[%s700 + $0xb0] sm:$0xff]
        %v4197 = vld [vmem:[%s700 + $0xb8] sm:$0xff]
        %v4198 = vld [vmem:[%s700 + $0xc0] sm:$0xff]
        %v4199 = vld [vmem:[%s700 + $0xc8] sm:$0xff]
        %v4200 = vld [vmem:[%s700 + $0xd0] sm:$0xff]
        %v4201 = vld [vmem:[%s700 + $0xd8] sm:$0xff]
        %v4202 = vld [vmem:[%s700 + $0xe0] sm:$0xff]
        %v4203 = vld [vmem:[%s700 + $0xe8] sm:$0xff]
        %v4204 = vld [vmem:[%s700 + $0xf0] sm:$0xff]
        %v4205 = vld [vmem:[%s700 + $0xf8] sm:$0xff]
        %v4206 = vld [vmem:[%s700 + $0x100] sm:$0xff]
        %v4207 = vld [vmem:[%s700 + $0x108] sm:$0xff]
        %v4208 = vld [vmem:[%s700 + $0x110] sm:$0xff]
        %v4209 = vld [vmem:[%s700 + $0x118] sm:$0xff]
        %v4210 = vld [vmem:[%s700 + $0x120] sm:$0xff]
        %v4211 = vld [vmem:[%s700 + $0x128] sm:$0xff]
        %v4212 = vld [vmem:[%s700 + $0x130] sm:$0xff]
        %v4213 = vld [vmem:[%s700 + $0x138] sm:$0xff]
        %v4214 = vld [vmem:[%s700 + $0x140] sm:$0xff]
        %v4215 = vld [vmem:[%s700 + $0x148] sm:$0xff]
        %v4216 = vld [vmem:[%s700 + $0x150] sm:$0xff]
        %v4217 = vld [vmem:[%s700 + $0x158] sm:$0xff]
        %v4218 = vld [vmem:[%s700 + $0x160] sm:$0xff]
        %v4219 = vld [vmem:[%s700 + $0x168] sm:$0xff]
        %v4220 = vld [vmem:[%s700 + $0x170] sm:$0xff]
        %v4221 = vld [vmem:[%s700 + $0x178] sm:$0xff]
        %v4222 = vld [vmem:[%s700 + $0x180] sm:$0xff]
        %v4223 = vld [vmem:[%s700 + $0x188] sm:$0xff]
        %v4224 = vld [vmem:[%s700 + $0x190] sm:$0xff]
        %v4225 = vld [vmem:[%s700 + $0x198] sm:$0xff]
        %v4226 = vld [vmem:[%s700 + $0x1a0] sm:$0xff]
        %v4227 = vld [vmem:[%s700 + $0x1a8] sm:$0xff]
        %v4228 = vld [vmem:[%s700 + $0x1b0] sm:$0xff]
        %v4229 = vld [vmem:[%s700 + $0x1b8] sm:$0xff]
        %v4230 = vld [vmem:[%s700 + $0x1c0] sm:$0xff]
        %v4231 = vld [vmem:[%s700 + $0x1c8] sm:$0xff]
        %v4232 = vld [vmem:[%s700 + $0x1d0] sm:$0xff]
        %v4233 = vld [vmem:[%s700 + $0x1d8] sm:$0xff]
        %v4234 = vld [vmem:[%s700 + $0x1e0] sm:$0xff]
        %v4235 = vld [vmem:[%s700 + $0x1e8] sm:$0xff]
        %v4236 = vld [vmem:[%s700 + $0x1f0] sm:$0xff]
        %v4237 = vld [vmem:[%s700 + $0x1f8] sm:$0xff]
        %v4238 = vpack.c.bf16 %v4114, %v4110
        %v4239 = vpack.c.bf16 %v4115, %v4111
        %v4240 = vpack.c.bf16 %v4116, %v4112
        %v4241 = vpack.c.bf16 %v4117, %v4113
        %v4242 = vpack.c.bf16 %v4122, %v4118
        %v4243 = vpack.c.bf16 %v4123, %v4119
        %v4244 = vpack.c.bf16 %v4124, %v4120
        %v4245 = vpack.c.bf16 %v4125, %v4121
        %v4246 = vpack.c.bf16 %v4130, %v4126
        %v4247 = vpack.c.bf16 %v4131, %v4127
        %v4248 = vpack.c.bf16 %v4132, %v4128
        %v4249 = vpack.c.bf16 %v4133, %v4129
        %v4250 = vpack.c.bf16 %v4138, %v4134
        %v4251 = vpack.c.bf16 %v4139, %v4135
        %v4252 = vpack.c.bf16 %v4140, %v4136
        %v4253 = vpack.c.bf16 %v4141, %v4137
        %v4254 = vpack.c.bf16 %v4146, %v4142
        %v4255 = vpack.c.bf16 %v4147, %v4143
        %v4256 = vpack.c.bf16 %v4148, %v4144
        %v4257 = vpack.c.bf16 %v4149, %v4145
        %v4258 = vpack.c.bf16 %v4154, %v4150
        %v4259 = vpack.c.bf16 %v4155, %v4151
        %v4260 = vpack.c.bf16 %v4156, %v4152
        %v4261 = vpack.c.bf16 %v4157, %v4153
        %v4262 = vpack.c.bf16 %v4162, %v4158
        %v4263 = vpack.c.bf16 %v4163, %v4159
        %v4264 = vpack.c.bf16 %v4164, %v4160
        %v4265 = vpack.c.bf16 %v4165, %v4161
        %v4266 = vpack.c.bf16 %v4170, %v4166
        %v4267 = vpack.c.bf16 %v4171, %v4167
        %v4268 = vpack.c.bf16 %v4172, %v4168
        %v4269 = vpack.c.bf16 %v4173, %v4169
        %v4270 = vld [vmem:[%s811] sm:$0x3]
        %v4272 = vlaneseq
        %v4273 = vshrl.u32 %v4272, 7
        %v4274 = vsub.s32 0, %v4273
        %v4275 = vrot.slane %v4270, %v4274
        %v4276 = vlaneseq
        %v4277 = vshrl.u32 %v4276, 7
        %v4278 = vsub.s32 1, %v4277
        %v4279 = vrot.slane %v4270, %v4278
        %v4346 = vunpack.c.l.b16 %v4174
        %v4347 = vunpack.c.h.b16 %v4174
        %v4348 = vunpack.c.l.b16 %v4175
        %v4349 = vunpack.c.h.b16 %v4175
        %v4350 = vunpack.c.l.b16 %v4176
        %v4351 = vunpack.c.h.b16 %v4176
        %v4352 = vunpack.c.l.b16 %v4177
        %v4353 = vunpack.c.h.b16 %v4177
        %v4354 = vunpack.c.l.b16 %v4178
        %v4355 = vunpack.c.h.b16 %v4178
        %v4356 = vunpack.c.l.b16 %v4179
        %v4357 = vunpack.c.h.b16 %v4179
        %v4358 = vunpack.c.l.b16 %v4180
        %v4359 = vunpack.c.h.b16 %v4180
        %v4360 = vunpack.c.l.b16 %v4181
        %v4361 = vunpack.c.h.b16 %v4181
        %v4362 = vunpack.c.l.b16 %v4182
        %v4363 = vunpack.c.h.b16 %v4182
        %v4364 = vunpack.c.l.b16 %v4183
        %v4365 = vunpack.c.h.b16 %v4183
        %v4366 = vunpack.c.l.b16 %v4184
        %v4367 = vunpack.c.h.b16 %v4184
        %v4368 = vunpack.c.l.b16 %v4185
        %v4369 = vunpack.c.h.b16 %v4185
        %v4370 = vunpack.c.l.b16 %v4186
        %v4371 = vunpack.c.h.b16 %v4186
        %v4372 = vunpack.c.l.b16 %v4187
        %v4373 = vunpack.c.h.b16 %v4187
        %v4374 = vunpack.c.l.b16 %v4188
        %v4375 = vunpack.c.h.b16 %v4188
        %v4376 = vunpack.c.l.b16 %v4189
        %v4377 = vunpack.c.h.b16 %v4189
        %v4378 = vunpack.c.l.b16 %v4190
        %v4379 = vunpack.c.h.b16 %v4190
        %v4380 = vunpack.c.l.b16 %v4191
        %v4381 = vunpack.c.h.b16 %v4191
        %v4382 = vunpack.c.l.b16 %v4192
        %v4383 = vunpack.c.h.b16 %v4192
        %v4384 = vunpack.c.l.b16 %v4193
        %v4385 = vunpack.c.h.b16 %v4193
        %v4386 = vunpack.c.l.b16 %v4194
        %v4387 = vunpack.c.h.b16 %v4194
        %v4388 = vunpack.c.l.b16 %v4195
        %v4389 = vunpack.c.h.b16 %v4195
        %v4390 = vunpack.c.l.b16 %v4196
        %v4391 = vunpack.c.h.b16 %v4196
        %v4392 = vunpack.c.l.b16 %v4197
        %v4393 = vunpack.c.h.b16 %v4197
        %v4394 = vunpack.c.l.b16 %v4198
        %v4395 = vunpack.c.h.b16 %v4198
        %v4396 = vunpack.c.l.b16 %v4199
        %v4397 = vunpack.c.h.b16 %v4199
        %v4398 = vunpack.c.l.b16 %v4200
        %v4399 = vunpack.c.h.b16 %v4200
        %v4400 = vunpack.c.l.b16 %v4201
        %v4401 = vunpack.c.h.b16 %v4201
        %v4402 = vunpack.c.l.b16 %v4202
        %v4403 = vunpack.c.h.b16 %v4202
        %v4404 = vunpack.c.l.b16 %v4203
        %v4405 = vunpack.c.h.b16 %v4203
        %v4406 = vunpack.c.l.b16 %v4204
        %v4407 = vunpack.c.h.b16 %v4204
        %v4408 = vunpack.c.l.b16 %v4205
        %v4409 = vunpack.c.h.b16 %v4205
        %v4410 = vunpack.c.l.b16 %v4206
        %v4411 = vunpack.c.h.b16 %v4206
        %v4412 = vunpack.c.l.b16 %v4207
        %v4413 = vunpack.c.h.b16 %v4207
        %v4414 = vunpack.c.l.b16 %v4208
        %v4415 = vunpack.c.h.b16 %v4208
        %v4416 = vunpack.c.l.b16 %v4209
        %v4417 = vunpack.c.h.b16 %v4209
        %v4418 = vunpack.c.l.b16 %v4210
        %v4419 = vunpack.c.h.b16 %v4210
        %v4420 = vunpack.c.l.b16 %v4211
        %v4421 = vunpack.c.h.b16 %v4211
        %v4422 = vunpack.c.l.b16 %v4212
        %v4423 = vunpack.c.h.b16 %v4212
        %v4424 = vunpack.c.l.b16 %v4213
        %v4425 = vunpack.c.h.b16 %v4213
        %v4426 = vunpack.c.l.b16 %v4214
        %v4427 = vunpack.c.h.b16 %v4214
        %v4428 = vunpack.c.l.b16 %v4215
        %v4429 = vunpack.c.h.b16 %v4215
        %v4430 = vunpack.c.l.b16 %v4216
        %v4431 = vunpack.c.h.b16 %v4216
        %v4432 = vunpack.c.l.b16 %v4217
        %v4433 = vunpack.c.h.b16 %v4217
        %v4434 = vunpack.c.l.b16 %v4218
        %v4435 = vunpack.c.h.b16 %v4218
        %v4436 = vunpack.c.l.b16 %v4219
        %v4437 = vunpack.c.h.b16 %v4219
        %v4438 = vunpack.c.l.b16 %v4220
        %v4439 = vunpack.c.h.b16 %v4220
        %v4440 = vunpack.c.l.b16 %v4221
        %v4441 = vunpack.c.h.b16 %v4221
        %v4442 = vunpack.c.l.b16 %v4222
        %v4443 = vunpack.c.h.b16 %v4222
        %v4444 = vunpack.c.l.b16 %v4223
        %v4445 = vunpack.c.h.b16 %v4223
        %v4446 = vunpack.c.l.b16 %v4224
        %v4447 = vunpack.c.h.b16 %v4224
        %v4448 = vunpack.c.l.b16 %v4225
        %v4449 = vunpack.c.h.b16 %v4225
        %v4450 = vunpack.c.l.b16 %v4226
        %v4451 = vunpack.c.h.b16 %v4226
        %v4452 = vunpack.c.l.b16 %v4227
        %v4453 = vunpack.c.h.b16 %v4227
        %v4454 = vunpack.c.l.b16 %v4228
        %v4455 = vunpack.c.h.b16 %v4228
        %v4456 = vunpack.c.l.b16 %v4229
        %v4457 = vunpack.c.h.b16 %v4229
        %v4458 = vunpack.c.l.b16 %v4230
        %v4459 = vunpack.c.h.b16 %v4230
        %v4460 = vunpack.c.l.b16 %v4231
        %v4461 = vunpack.c.h.b16 %v4231
        %v4462 = vunpack.c.l.b16 %v4232
        %v4463 = vunpack.c.h.b16 %v4232
        %v4464 = vunpack.c.l.b16 %v4233
        %v4465 = vunpack.c.h.b16 %v4233
        %v4466 = vunpack.c.l.b16 %v4234
        %v4467 = vunpack.c.h.b16 %v4234
        %v4468 = vunpack.c.l.b16 %v4235
        %v4469 = vunpack.c.h.b16 %v4235
        %v4470 = vunpack.c.l.b16 %v4236
        %v4471 = vunpack.c.h.b16 %v4236
        %v4472 = vunpack.c.l.b16 %v4237
        %v4473 = vunpack.c.h.b16 %v4237
        %v4474 = vpack.c.b16 %v4348, %v4346
        %v4475 = vpack.c.b16 %v4349, %v4347
        %v4476 = vpack.c.b16 %v4352, %v4350
        %v4477 = vpack.c.b16 %v4353, %v4351
        %v4478 = vpack.c.b16 %v4356, %v4354
        %v4479 = vpack.c.b16 %v4357, %v4355
        %v4480 = vpack.c.b16 %v4360, %v4358
        %v4481 = vpack.c.b16 %v4361, %v4359
        %v4482 = vpack.c.b16 %v4364, %v4362
        %v4483 = vpack.c.b16 %v4365, %v4363
        %v4484 = vpack.c.b16 %v4368, %v4366
        %v4485 = vpack.c.b16 %v4369, %v4367
        %v4486 = vpack.c.b16 %v4372, %v4370
        %v4487 = vpack.c.b16 %v4373, %v4371
        %v4488 = vpack.c.b16 %v4376, %v4374
        %v4489 = vpack.c.b16 %v4377, %v4375
        %v4490 = vpack.c.b16 %v4380, %v4378
        %v4491 = vpack.c.b16 %v4381, %v4379
        %v4492 = vpack.c.b16 %v4384, %v4382
        %v4493 = vpack.c.b16 %v4385, %v4383
        %v4494 = vpack.c.b16 %v4388, %v4386
        %v4495 = vpack.c.b16 %v4389, %v4387
        %v4496 = vpack.c.b16 %v4392, %v4390
        %v4497 = vpack.c.b16 %v4393, %v4391
        %v4498 = vpack.c.b16 %v4396, %v4394
        %v4499 = vpack.c.b16 %v4397, %v4395
        %v4500 = vpack.c.b16 %v4400, %v4398
        %v4501 = vpack.c.b16 %v4401, %v4399
        %v4502 = vpack.c.b16 %v4404, %v4402
        %v4503 = vpack.c.b16 %v4405, %v4403
        %v4504 = vpack.c.b16 %v4408, %v4406
        %v4505 = vpack.c.b16 %v4409, %v4407
        %v4506 = vpack.c.b16 %v4412, %v4410
        %v4507 = vpack.c.b16 %v4413, %v4411
        %v4508 = vpack.c.b16 %v4416, %v4414
        %v4509 = vpack.c.b16 %v4417, %v4415
        %v4510 = vpack.c.b16 %v4420, %v4418
        %v4511 = vpack.c.b16 %v4421, %v4419
        %v4512 = vpack.c.b16 %v4424, %v4422
        %v4513 = vpack.c.b16 %v4425, %v4423
        %v4514 = vpack.c.b16 %v4428, %v4426
        %v4515 = vpack.c.b16 %v4429, %v4427
        %v4516 = vpack.c.b16 %v4432, %v4430
        %v4517 = vpack.c.b16 %v4433, %v4431
        %v4518 = vpack.c.b16 %v4436, %v4434
        %v4519 = vpack.c.b16 %v4437, %v4435
        %v4520 = vpack.c.b16 %v4440, %v4438
        %v4521 = vpack.c.b16 %v4441, %v4439
        %v4522 = vpack.c.b16 %v4444, %v4442
        %v4523 = vpack.c.b16 %v4445, %v4443
        %v4524 = vpack.c.b16 %v4448, %v4446
        %v4525 = vpack.c.b16 %v4449, %v4447
        %v4526 = vpack.c.b16 %v4452, %v4450
        %v4527 = vpack.c.b16 %v4453, %v4451
        %v4528 = vpack.c.b16 %v4456, %v4454
        %v4529 = vpack.c.b16 %v4457, %v4455
        %v4530 = vpack.c.b16 %v4460, %v4458
        %v4531 = vpack.c.b16 %v4461, %v4459
        %v4532 = vpack.c.b16 %v4464, %v4462
        %v4533 = vpack.c.b16 %v4465, %v4463
        %v4534 = vpack.c.b16 %v4468, %v4466
        %v4535 = vpack.c.b16 %v4469, %v4467
        %v4536 = vpack.c.b16 %v4472, %v4470
        %v4537 = vpack.c.b16 %v4473, %v4471
        %4602 = vmatprep.subr.bf16.mxu0 %v4475
        %4603 = vmatpush1.bf16.msra.mxu0 %v4474
        %4604 = vmatprep.subr.bf16.mxu0 %v4477
        %4605 = vmatpush1.bf16.msra.mxu0 %v4476
        %4606 = vmatprep.subr.bf16.mxu0 %v4479
        %4607 = vmatpush1.bf16.msra.mxu0 %v4478
        %4608 = vmatprep.subr.bf16.mxu0 %v4481
        %4609 = vmatpush1.bf16.msra.mxu0 %v4480
        %4610 = vmatprep.subr.bf16.mxu0 %v4483
        %4611 = vmatpush1.bf16.msra.mxu0 %v4482
        %4612 = vmatprep.subr.bf16.mxu0 %v4485
        %4613 = vmatpush1.bf16.msra.mxu0 %v4484
        %4614 = vmatprep.subr.bf16.mxu0 %v4487
        %4615 = vmatpush1.bf16.msra.mxu0 %v4486
        %4616 = vmatprep.subr.bf16.mxu0 %v4489
        %4617 = vmatpush1.bf16.msra.mxu0 %v4488
        %4618 = vmatprep.subr.bf16.mxu0 %v4491
        %4619 = vmatpush1.bf16.msra.mxu0 %v4490
        %4620 = vmatprep.subr.bf16.mxu0 %v4493
        %4621 = vmatpush1.bf16.msra.mxu0 %v4492
        %4622 = vmatprep.subr.bf16.mxu0 %v4495
        %4623 = vmatpush1.bf16.msra.mxu0 %v4494
        %4624 = vmatprep.subr.bf16.mxu0 %v4497
        %4625 = vmatpush1.bf16.msra.mxu0 %v4496
        %4626 = vmatprep.subr.bf16.mxu0 %v4499
        %4627 = vmatpush1.bf16.msra.mxu0 %v4498
        %4628 = vmatprep.subr.bf16.mxu0 %v4501
        %4629 = vmatpush1.bf16.msra.mxu0 %v4500
        %4630 = vmatprep.subr.bf16.mxu0 %v4503
        %4631 = vmatpush1.bf16.msra.mxu0 %v4502
        %4632 = vmatprep.subr.bf16.mxu0 %v4505
        %4633 = vmatpush1.bf16.msra.mxu0 %v4504
        %4634 = vmatprep.mubr.bf16.mxu0 %v4239
        %4635 = vmatmul.mubr.bf16.gmra.mrb[0].mxu0 %v4238
        %v4636 = vpop.f32.mrb[0].mxu0
        %v4637 = vadd.f32 %v4275, %v4636
        %v4638 = vpop.f32.mrb[0].mxu0
        %v4639 = vadd.f32 %v4279, %v4638
        %v4640 = vpop.f32.mrb[0].mxu0
        %v4641 = vadd.f32 %v4275, %v4640
        %v4642 = vpop.f32.mrb[0].mxu0
        %v4643 = vadd.f32 %v4279, %v4642
        %4644 = vmatprep.mubr.bf16.mxu0 %v4243
        %4645 = vmatmul.mubr.bf16.gmra.mrb[0].mxu0 %v4242
        %v4646 = vpop.f32.mrb[0].mxu0
        %v4647 = vadd.f32 %v4275, %v4646
        %v4648 = vpop.f32.mrb[0].mxu0
        %v4649 = vadd.f32 %v4279, %v4648
        %v4650 = vpop.f32.mrb[0].mxu0
        %v4651 = vadd.f32 %v4275, %v4650
        %v4652 = vpop.f32.mrb[0].mxu0
        %v4653 = vadd.f32 %v4279, %v4652
        %4654 = vmatprep.mubr.bf16.mxu0 %v4247
        %4655 = vmatmul.mubr.bf16.gmra.mrb[0].mxu0 %v4246
        %v4656 = vpop.f32.mrb[0].mxu0
        %v4657 = vadd.f32 %v4275, %v4656
        %v4658 = vpop.f32.mrb[0].mxu0
        %v4659 = vadd.f32 %v4279, %v4658
        %v4660 = vpop.f32.mrb[0].mxu0
        %v4661 = vadd.f32 %v4275, %v4660
        %v4662 = vpop.f32.mrb[0].mxu0
        %v4663 = vadd.f32 %v4279, %v4662
        %4664 = vmatprep.mubr.bf16.mxu0 %v4251
        %4665 = vmatmul.mubr.bf16.gmra.mrb[0].mxu0 %v4250
        %v4666 = vpop.f32.mrb[0].mxu0
        %v4667 = vadd.f32 %v4275, %v4666
        %v4668 = vpop.f32.mrb[0].mxu0
        %v4669 = vadd.f32 %v4279, %v4668
        %v4670 = vpop.f32.mrb[0].mxu0
        %v4671 = vadd.f32 %v4275, %v4670
        %v4672 = vpop.f32.mrb[0].mxu0
        %v4673 = vadd.f32 %v4279, %v4672
        %4674 = vmatprep.mubr.bf16.mxu0 %v4255
        %4675 = vmatmul.mubr.bf16.gmra.mrb[0].mxu0 %v4254
        %v4676 = vpop.f32.mrb[0].mxu0
        %v4677 = vadd.f32 %v4275, %v4676
        %v4678 = vpop.f32.mrb[0].mxu0
        %v4679 = vadd.f32 %v4279, %v4678
        %v4680 = vpop.f32.mrb[0].mxu0
        %v4681 = vadd.f32 %v4275, %v4680
        %v4682 = vpop.f32.mrb[0].mxu0
        %v4683 = vadd.f32 %v4279, %v4682
        %4684 = vmatprep.mubr.bf16.mxu0 %v4259
        %4685 = vmatmul.mubr.bf16.gmra.mrb[0].mxu0 %v4258
        %v4686 = vpop.f32.mrb[0].mxu0
        %v4687 = vadd.f32 %v4275, %v4686
        %v4688 = vpop.f32.mrb[0].mxu0
        %v4689 = vadd.f32 %v4279, %v4688
        %v4690 = vpop.f32.mrb[0].mxu0
        %v4691 = vadd.f32 %v4275, %v4690
        %v4692 = vpop.f32.mrb[0].mxu0
        %v4693 = vadd.f32 %v4279, %v4692
        %4694 = vmatprep.mubr.bf16.mxu0 %v4263
        %4695 = vmatmul.mubr.bf16.gmra.mrb[0].mxu0 %v4262
        %v4696 = vpop.f32.mrb[0].mxu0
        %v4697 = vadd.f32 %v4275, %v4696
        %v4698 = vpop.f32.mrb[0].mxu0
        %v4699 = vadd.f32 %v4279, %v4698
        %v4700 = vpop.f32.mrb[0].mxu0
        %v4701 = vadd.f32 %v4275, %v4700
        %v4702 = vpop.f32.mrb[0].mxu0
        %v4703 = vadd.f32 %v4279, %v4702
        %4704 = vmatprep.mubr.bf16.mxu0 %v4267
        %4705 = vmatmul.mubr.bf16.gmra.mrb[0].mxu0 %v4266
        %v4706 = vpop.f32.mrb[0].mxu0
        %v4707 = vadd.f32 %v4275, %v4706
        %v4708 = vpop.f32.mrb[0].mxu0
        %v4709 = vadd.f32 %v4279, %v4708
        %v4710 = vpop.f32.mrb[0].mxu0
        %v4711 = vadd.f32 %v4275, %v4710
        %v4712 = vpop.f32.mrb[0].mxu0
        %v4713 = vadd.f32 %v4279, %v4712
        %4714 = vdwg.mxu0
        %4715 = vmatprep.subr.bf16.mxu0 %v4507
        %4716 = vmatpush1.bf16.msra.mxu0 %v4506
        %4717 = vmatprep.subr.bf16.mxu0 %v4509
        %4718 = vmatpush1.bf16.msra.mxu0 %v4508
        %4719 = vmatprep.subr.bf16.mxu0 %v4511
        %4720 = vmatpush1.bf16.msra.mxu0 %v4510
        %4721 = vmatprep.subr.bf16.mxu0 %v4513
        %4722 = vmatpush1.bf16.msra.mxu0 %v4512
        %4723 = vmatprep.subr.bf16.mxu0 %v4515
        %4724 = vmatpush1.bf16.msra.mxu0 %v4514
        %4725 = vmatprep.subr.bf16.mxu0 %v4517
        %4726 = vmatpush1.bf16.msra.mxu0 %v4516
        %4727 = vmatprep.subr.bf16.mxu0 %v4519
        %4728 = vmatpush1.bf16.msra.mxu0 %v4518
        %4729 = vmatprep.subr.bf16.mxu0 %v4521
        %4730 = vmatpush1.bf16.msra.mxu0 %v4520
        %4731 = vmatprep.subr.bf16.mxu0 %v4523
        %4732 = vmatpush1.bf16.msra.mxu0 %v4522
        %4733 = vmatprep.subr.bf16.mxu0 %v4525
        %4734 = vmatpush1.bf16.msra.mxu0 %v4524
        %4735 = vmatprep.subr.bf16.mxu0 %v4527
        %4736 = vmatpush1.bf16.msra.mxu0 %v4526
        %4737 = vmatprep.subr.bf16.mxu0 %v4529
        %4738 = vmatpush1.bf16.msra.mxu0 %v4528
        %4739 = vmatprep.subr.bf16.mxu0 %v4531
        %4740 = vmatpush1.bf16.msra.mxu0 %v4530
        %4741 = vmatprep.subr.bf16.mxu0 %v4533
        %4742 = vmatpush1.bf16.msra.mxu0 %v4532
        %4743 = vmatprep.subr.bf16.mxu0 %v4535
        %4744 = vmatpush1.bf16.msra.mxu0 %v4534
        %4745 = vmatprep.subr.bf16.mxu0 %v4537
        %4746 = vmatpush1.bf16.msra.mxu0 %v4536
        %4747 = vmatprep.mubr.bf16.mxu0 %v4241
        %4748 = vmatmul.mubr.bf16.gmra.mrb[0].mxu0 %v4240
        %v4749 = vpop.f32.mrb[0].mxu0
        %v4750 = vadd.f32 %v4637, %v4749
        %v4751 = vpop.f32.mrb[0].mxu0
        %v4752 = vadd.f32 %v4639, %v4751
        %v4753 = vpop.f32.mrb[0].mxu0
        %v4754 = vadd.f32 %v4641, %v4753
        %v4755 = vpop.f32.mrb[0].mxu0
        %v4756 = vadd.f32 %v4643, %v4755
        %4757 = vmatprep.mubr.bf16.mxu0 %v4245
        %4758 = vmatmul.mubr.bf16.gmra.mrb[0].mxu0 %v4244
        %v4759 = vpop.f32.mrb[0].mxu0
        %v4760 = vadd.f32 %v4647, %v4759
        %v4761 = vpop.f32.mrb[0].mxu0
        %v4762 = vadd.f32 %v4649, %v4761
        %v4763 = vpop.f32.mrb[0].mxu0
        %v4764 = vadd.f32 %v4651, %v4763
        %v4765 = vpop.f32.mrb[0].mxu0
        %v4766 = vadd.f32 %v4653, %v4765
        %4767 = vmatprep.mubr.bf16.mxu0 %v4249
        %4768 = vmatmul.mubr.bf16.gmra.mrb[0].mxu0 %v4248
        %v4769 = vpop.f32.mrb[0].mxu0
        %v4770 = vadd.f32 %v4657, %v4769
        %v4771 = vpop.f32.mrb[0].mxu0
        %v4772 = vadd.f32 %v4659, %v4771
        %v4773 = vpop.f32.mrb[0].mxu0
        %v4774 = vadd.f32 %v4661, %v4773
        %v4775 = vpop.f32.mrb[0].mxu0
        %v4776 = vadd.f32 %v4663, %v4775
        %4777 = vmatprep.mubr.bf16.mxu0 %v4253
        %4778 = vmatmul.mubr.bf16.gmra.mrb[0].mxu0 %v4252
        %v4779 = vpop.f32.mrb[0].mxu0
        %v4780 = vadd.f32 %v4667, %v4779
        %v4781 = vpop.f32.mrb[0].mxu0
        %v4782 = vadd.f32 %v4669, %v4781
        %v4783 = vpop.f32.mrb[0].mxu0
        %v4784 = vadd.f32 %v4671, %v4783
        %v4785 = vpop.f32.mrb[0].mxu0
        %v4786 = vadd.f32 %v4673, %v4785
        %4787 = vmatprep.mubr.bf16.mxu0 %v4257
        %4788 = vmatmul.mubr.bf16.gmra.mrb[0].mxu0 %v4256
        %v4789 = vpop.f32.mrb[0].mxu0
        %v4790 = vadd.f32 %v4677, %v4789
        %v4791 = vpop.f32.mrb[0].mxu0
        %v4792 = vadd.f32 %v4679, %v4791
        %v4793 = vpop.f32.mrb[0].mxu0
        %v4794 = vadd.f32 %v4681, %v4793
        %v4795 = vpop.f32.mrb[0].mxu0
        %v4796 = vadd.f32 %v4683, %v4795
        %4797 = vmatprep.mubr.bf16.mxu0 %v4261
        %4798 = vmatmul.mubr.bf16.gmra.mrb[0].mxu0 %v4260
        %v4799 = vpop.f32.mrb[0].mxu0
        %v4800 = vadd.f32 %v4687, %v4799
        %v4801 = vpop.f32.mrb[0].mxu0
        %v4802 = vadd.f32 %v4689, %v4801
        %v4803 = vpop.f32.mrb[0].mxu0
        %v4804 = vadd.f32 %v4691, %v4803
        %v4805 = vpop.f32.mrb[0].mxu0
        %v4806 = vadd.f32 %v4693, %v4805
        %4807 = vmatprep.mubr.bf16.mxu0 %v4265
        %4808 = vmatmul.mubr.bf16.gmra.mrb[0].mxu0 %v4264
        %v4809 = vpop.f32.mrb[0].mxu0
        %v4810 = vadd.f32 %v4697, %v4809
        %v4811 = vpop.f32.mrb[0].mxu0
        %v4812 = vadd.f32 %v4699, %v4811
        %v4813 = vpop.f32.mrb[0].mxu0
        %v4814 = vadd.f32 %v4701, %v4813
        %v4815 = vpop.f32.mrb[0].mxu0
        %v4816 = vadd.f32 %v4703, %v4815
        %4817 = vmatprep.mubr.bf16.mxu0 %v4269
        %4818 = vmatmul.mubr.bf16.gmra.mrb[0].mxu0 %v4268
        %v4819 = vpop.f32.mrb[0].mxu0
        %v4820 = vadd.f32 %v4707, %v4819
        %v4821 = vpop.f32.mrb[0].mxu0
        %v4822 = vadd.f32 %v4709, %v4821
        %v4823 = vpop.f32.mrb[0].mxu0
        %v4824 = vadd.f32 %v4711, %v4823
        %v4825 = vpop.f32.mrb[0].mxu0
        %v4826 = vadd.f32 %v4713, %v4825
        %4827 = vdwg.mxu0
        %v4828 = vadd.f32 %v3430, %v4750
        %v4829 = vadd.f32 %v3431, %v4752
        %v4830 = vadd.f32 %v3432, %v4754
        %v4831 = vadd.f32 %v3433, %v4756
        %v4832 = vadd.f32 %v3434, %v4760
        %v4833 = vadd.f32 %v3435, %v4762
        %v4834 = vadd.f32 %v3436, %v4764
        %v4835 = vadd.f32 %v3437, %v4766
        %v4836 = vadd.f32 %v3438, %v4770
        %v4837 = vadd.f32 %v3439, %v4772
        %v4838 = vadd.f32 %v3440, %v4774
        %v4839 = vadd.f32 %v3441, %v4776
        %v4840 = vadd.f32 %v3442, %v4780
        %v4841 = vadd.f32 %v3443, %v4782
        %v4842 = vadd.f32 %v3444, %v4784
        %v4843 = vadd.f32 %v3445, %v4786
        %v4844 = vadd.f32 %v3446, %v4790
        %v4845 = vadd.f32 %v3447, %v4792
        %v4846 = vadd.f32 %v3448, %v4794
        %v4847 = vadd.f32 %v3449, %v4796
        %v4848 = vadd.f32 %v3450, %v4800
        %v4849 = vadd.f32 %v3451, %v4802
        %v4850 = vadd.f32 %v3452, %v4804
        %v4851 = vadd.f32 %v3453, %v4806
        %v4852 = vadd.f32 %v3454, %v4810
        %v4853 = vadd.f32 %v3455, %v4812
        %v4854 = vadd.f32 %v3456, %v4814
        %v4855 = vadd.f32 %v3457, %v4816
        %v4856 = vadd.f32 %v3458, %v4820
        %v4857 = vadd.f32 %v3459, %v4822
        %v4858 = vadd.f32 %v3460, %v4824
        %v4859 = vadd.f32 %v3461, %v4826
        %v4860 = vld [vmem:[%s815] sm:$0x3]
        %v4861 = vld [vmem:[%s819] sm:$0x3]
        %v4862 = vadd.f32 %v4828, %v4829
        %4863 = vadd.xlane.f32.xlu0 %v4862
        %v4864 = vpop.xlane.xlu0 %4863
        %v4865 = vadd.f32 %v4830, %v4831
        %4866 = vadd.xlane.f32.xlu0 %v4865
        %v4867 = vpop.xlane.xlu0 %4866
        %v4868 = vadd.f32 %v4832, %v4833
        %4869 = vadd.xlane.f32.xlu0 %v4868
        %v4870 = vpop.xlane.xlu0 %4869
        %v4871 = vadd.f32 %v4834, %v4835
        %4872 = vadd.xlane.f32.xlu0 %v4871
        %v4873 = vpop.xlane.xlu0 %4872
        %v4874 = vadd.f32 %v4836, %v4837
        %4875 = vadd.xlane.f32.xlu0 %v4874
        %v4876 = vpop.xlane.xlu0 %4875
        %v4877 = vadd.f32 %v4838, %v4839
        %4878 = vadd.xlane.f32.xlu0 %v4877
        %v4879 = vpop.xlane.xlu0 %4878
        %v4880 = vadd.f32 %v4840, %v4841
        %4881 = vadd.xlane.f32.xlu0 %v4880
        %v4882 = vpop.xlane.xlu0 %4881
        %v4883 = vadd.f32 %v4842, %v4843
        %4884 = vadd.xlane.f32.xlu0 %v4883
        %v4885 = vpop.xlane.xlu0 %4884
        %v4886 = vadd.f32 %v4844, %v4845
        %4887 = vadd.xlane.f32.xlu0 %v4886
        %v4888 = vpop.xlane.xlu0 %4887
        %v4889 = vadd.f32 %v4846, %v4847
        %4890 = vadd.xlane.f32.xlu0 %v4889
        %v4891 = vpop.xlane.xlu0 %4890
        %v4892 = vadd.f32 %v4848, %v4849
        %4893 = vadd.xlane.f32.xlu0 %v4892
        %v4894 = vpop.xlane.xlu0 %4893
        %v4895 = vadd.f32 %v4850, %v4851
        %4896 = vadd.xlane.f32.xlu0 %v4895
        %v4897 = vpop.xlane.xlu0 %4896
        %v4898 = vadd.f32 %v4852, %v4853
        %4899 = vadd.xlane.f32.xlu0 %v4898
        %v4900 = vpop.xlane.xlu0 %4899
        %v4901 = vadd.f32 %v4854, %v4855
        %4902 = vadd.xlane.f32.xlu0 %v4901
        %v4903 = vpop.xlane.xlu0 %4902
        %v4904 = vadd.f32 %v4856, %v4857
        %4905 = vadd.xlane.f32.xlu0 %v4904
        %v4906 = vpop.xlane.xlu0 %4905
        %v4907 = vadd.f32 %v4858, %v4859
        %4908 = vadd.xlane.f32.xlu0 %v4907
        %v4909 = vpop.xlane.xlu0 %4908
        %v4910 = vmul.f32 %v4864, %v3167
        %v4911 = vmul.f32 %v4867, %v3167
        %v4912 = vmul.f32 %v4870, %v3167
        %v4913 = vmul.f32 %v4873, %v3167
        %v4914 = vmul.f32 %v4876, %v3167
        %v4915 = vmul.f32 %v4879, %v3167
        %v4916 = vmul.f32 %v4882, %v3167
        %v4917 = vmul.f32 %v4885, %v3167
        %v4918 = vmul.f32 %v4888, %v3167
        %v4919 = vmul.f32 %v4891, %v3167
        %v4920 = vmul.f32 %v4894, %v3167
        %v4921 = vmul.f32 %v4897, %v3167
        %v4922 = vmul.f32 %v4900, %v3167
        %v4923 = vmul.f32 %v4903, %v3167
        %v4924 = vmul.f32 %v4906, %v3167
        %v4925 = vmul.f32 %v4909, %v3167
        %v4926 = vsub.f32 %v4828, %v4910
        %v4927 = vsub.f32 %v4829, %v4910
        %v4928 = vsub.f32 %v4830, %v4911
        %v4929 = vsub.f32 %v4831, %v4911
        %v4930 = vsub.f32 %v4832, %v4912
        %v4931 = vsub.f32 %v4833, %v4912
        %v4932 = vsub.f32 %v4834, %v4913
        %v4933 = vsub.f32 %v4835, %v4913
        %v4934 = vsub.f32 %v4836, %v4914
        %v4935 = vsub.f32 %v4837, %v4914
        %v4936 = vsub.f32 %v4838, %v4915
        %v4937 = vsub.f32 %v4839, %v4915
        %v4938 = vsub.f32 %v4840, %v4916
        %v4939 = vsub.f32 %v4841, %v4916
        %v4940 = vsub.f32 %v4842, %v4917
        %v4941 = vsub.f32 %v4843, %v4917
        %v4942 = vsub.f32 %v4844, %v4918
        %v4943 = vsub.f32 %v4845, %v4918
        %v4944 = vsub.f32 %v4846, %v4919
        %v4945 = vsub.f32 %v4847, %v4919
        %v4946 = vsub.f32 %v4848, %v4920
        %v4947 = vsub.f32 %v4849, %v4920
        %v4948 = vsub.f32 %v4850, %v4921
        %v4949 = vsub.f32 %v4851, %v4921
        %v4950 = vsub.f32 %v4852, %v4922
        %v4951 = vsub.f32 %v4853, %v4922
        %v4952 = vsub.f32 %v4854, %v4923
        %v4953 = vsub.f32 %v4855, %v4923
        %v4954 = vsub.f32 %v4856, %v4924
        %v4955 = vsub.f32 %v4857, %v4924
        %v4956 = vsub.f32 %v4858, %v4925
        %v4957 = vsub.f32 %v4859, %v4925
        %v4958 = vmul.f32 %v4926, %v4926
        %v4959 = vmul.f32 %v4927, %v4927
        %v4960 = vmul.f32 %v4928, %v4928
        %v4961 = vmul.f32 %v4929, %v4929
        %v4962 = vmul.f32 %v4930, %v4930
        %v4963 = vmul.f32 %v4931, %v4931
        %v4964 = vmul.f32 %v4932, %v4932
        %v4965 = vmul.f32 %v4933, %v4933
        %v4966 = vmul.f32 %v4934, %v4934
        %v4967 = vmul.f32 %v4935, %v4935
        %v4968 = vmul.f32 %v4936, %v4936
        %v4969 = vmul.f32 %v4937, %v4937
        %v4970 = vmul.f32 %v4938, %v4938
        %v4971 = vmul.f32 %v4939, %v4939
        %v4972 = vmul.f32 %v4940, %v4940
        %v4973 = vmul.f32 %v4941, %v4941
        %v4974 = vmul.f32 %v4942, %v4942
        %v4975 = vmul.f32 %v4943, %v4943
        %v4976 = vmul.f32 %v4944, %v4944
        %v4977 = vmul.f32 %v4945, %v4945
        %v4978 = vmul.f32 %v4946, %v4946
        %v4979 = vmul.f32 %v4947, %v4947
        %v4980 = vmul.f32 %v4948, %v4948
        %v4981 = vmul.f32 %v4949, %v4949
        %v4982 = vmul.f32 %v4950, %v4950
        %v4983 = vmul.f32 %v4951, %v4951
        %v4984 = vmul.f32 %v4952, %v4952
        %v4985 = vmul.f32 %v4953, %v4953
        %v4986 = vmul.f32 %v4954, %v4954
        %v4987 = vmul.f32 %v4955, %v4955
        %v4988 = vmul.f32 %v4956, %v4956
        %v4989 = vmul.f32 %v4957, %v4957
        %v4990 = vadd.f32 %v4958, %v4959
        %4991 = vadd.xlane.f32.xlu0 %v4990
        %v4992 = vpop.xlane.xlu0 %4991
        %v4993 = vadd.f32 %v4960, %v4961
        %4994 = vadd.xlane.f32.xlu0 %v4993
        %v4995 = vpop.xlane.xlu0 %4994
        %v4996 = vadd.f32 %v4962, %v4963
        %4997 = vadd.xlane.f32.xlu0 %v4996
        %v4998 = vpop.xlane.xlu0 %4997
        %v4999 = vadd.f32 %v4964, %v4965
        %5000 = vadd.xlane.f32.xlu0 %v4999
        %v5001 = vpop.xlane.xlu0 %5000
        %v5002 = vadd.f32 %v4966, %v4967
        %5003 = vadd.xlane.f32.xlu0 %v5002
        %v5004 = vpop.xlane.xlu0 %5003
        %v5005 = vadd.f32 %v4968, %v4969
        %5006 = vadd.xlane.f32.xlu0 %v5005
        %v5007 = vpop.xlane.xlu0 %5006
        %v5008 = vadd.f32 %v4970, %v4971
        %5009 = vadd.xlane.f32.xlu0 %v5008
        %v5010 = vpop.xlane.xlu0 %5009
        %v5011 = vadd.f32 %v4972, %v4973
        %5012 = vadd.xlane.f32.xlu0 %v5011
        %v5013 = vpop.xlane.xlu0 %5012
        %v5014 = vadd.f32 %v4974, %v4975
        %5015 = vadd.xlane.f32.xlu0 %v5014
        %v5016 = vpop.xlane.xlu0 %5015
        %v5017 = vadd.f32 %v4976, %v4977
        %5018 = vadd.xlane.f32.xlu0 %v5017
        %v5019 = vpop.xlane.xlu0 %5018
        %v5020 = vadd.f32 %v4978, %v4979
        %5021 = vadd.xlane.f32.xlu0 %v5020
        %v5022 = vpop.xlane.xlu0 %5021
        %v5023 = vadd.f32 %v4980, %v4981
        %5024 = vadd.xlane.f32.xlu0 %v5023
        %v5025 = vpop.xlane.xlu0 %5024
        %v5026 = vadd.f32 %v4982, %v4983
        %5027 = vadd.xlane.f32.xlu0 %v5026
        %v5028 = vpop.xlane.xlu0 %5027
        %v5029 = vadd.f32 %v4984, %v4985
        %5030 = vadd.xlane.f32.xlu0 %v5029
        %v5031 = vpop.xlane.xlu0 %5030
        %v5032 = vadd.f32 %v4986, %v4987
        %5033 = vadd.xlane.f32.xlu0 %v5032
        %v5034 = vpop.xlane.xlu0 %5033
        %v5035 = vadd.f32 %v4988, %v4989
        %5036 = vadd.xlane.f32.xlu0 %v5035
        %v5037 = vpop.xlane.xlu0 %5036
        %v5038 = vmul.f32 %v4992, %v3167
        %v5039 = vmul.f32 %v4995, %v3167
        %v5040 = vmul.f32 %v4998, %v3167
        %v5041 = vmul.f32 %v5001, %v3167
        %v5042 = vmul.f32 %v5004, %v3167
        %v5043 = vmul.f32 %v5007, %v3167
        %v5044 = vmul.f32 %v5010, %v3167
        %v5045 = vmul.f32 %v5013, %v3167
        %v5046 = vmul.f32 %v5016, %v3167
        %v5047 = vmul.f32 %v5019, %v3167
        %v5048 = vmul.f32 %v5022, %v3167
        %v5049 = vmul.f32 %v5025, %v3167
        %v5050 = vmul.f32 %v5028, %v3167
        %v5051 = vmul.f32 %v5031, %v3167
        %v5052 = vmul.f32 %v5034, %v3167
        %v5053 = vmul.f32 %v5037, %v3167
        %v5054 = vadd.f32 %v5038, 1e-05
        %v5055 = vadd.f32 %v5039, 1e-05
        %v5056 = vadd.f32 %v5040, 1e-05
        %v5057 = vadd.f32 %v5041, 1e-05
        %v5058 = vadd.f32 %v5042, 1e-05
        %v5059 = vadd.f32 %v5043, 1e-05
        %v5060 = vadd.f32 %v5044, 1e-05
        %v5061 = vadd.f32 %v5045, 1e-05
        %v5062 = vadd.f32 %v5046, 1e-05
        %v5063 = vadd.f32 %v5047, 1e-05
        %v5064 = vadd.f32 %v5048, 1e-05
        %v5065 = vadd.f32 %v5049, 1e-05
        %v5066 = vadd.f32 %v5050, 1e-05
        %v5067 = vadd.f32 %v5051, 1e-05
        %v5068 = vadd.f32 %v5052, 1e-05
        %v5069 = vadd.f32 %v5053, 1e-05
        %v5070 = vrsqrt.pop %v5054
        %v5071 = vrsqrt.pop %v5055
        %v5072 = vrsqrt.pop %v5056
        %v5073 = vrsqrt.pop %v5057
        %v5074 = vrsqrt.pop %v5058
        %v5075 = vrsqrt.pop %v5059
        %v5076 = vrsqrt.pop %v5060
        %v5077 = vrsqrt.pop %v5061
        %v5078 = vrsqrt.pop %v5062
        %v5079 = vrsqrt.pop %v5063
        %v5080 = vrsqrt.pop %v5064
        %v5081 = vrsqrt.pop %v5065
        %v5082 = vrsqrt.pop %v5066
        %v5083 = vrsqrt.pop %v5067
        %v5084 = vrsqrt.pop %v5068
        %v5085 = vrsqrt.pop %v5069
        %v5086 = vmul.f32 %v4926, %v5070
        %v5087 = vmul.f32 %v4927, %v5070
        %v5088 = vmul.f32 %v4928, %v5071
        %v5089 = vmul.f32 %v4929, %v5071
        %v5090 = vmul.f32 %v4930, %v5072
        %v5091 = vmul.f32 %v4931, %v5072
        %v5092 = vmul.f32 %v4932, %v5073
        %v5093 = vmul.f32 %v4933, %v5073
        %v5094 = vmul.f32 %v4934, %v5074
        %v5095 = vmul.f32 %v4935, %v5074
        %v5096 = vmul.f32 %v4936, %v5075
        %v5097 = vmul.f32 %v4937, %v5075
        %v5098 = vmul.f32 %v4938, %v5076
        %v5099 = vmul.f32 %v4939, %v5076
        %v5100 = vmul.f32 %v4940, %v5077
        %v5101 = vmul.f32 %v4941, %v5077
        %v5102 = vmul.f32 %v4942, %v5078
        %v5103 = vmul.f32 %v4943, %v5078
        %v5104 = vmul.f32 %v4944, %v5079
        %v5105 = vmul.f32 %v4945, %v5079
        %v5106 = vmul.f32 %v4946, %v5080
        %v5107 = vmul.f32 %v4947, %v5080
        %v5108 = vmul.f32 %v4948, %v5081
        %v5109 = vmul.f32 %v4949, %v5081
        %v5110 = vmul.f32 %v4950, %v5082
        %v5111 = vmul.f32 %v4951, %v5082
        %v5112 = vmul.f32 %v4952, %v5083
        %v5113 = vmul.f32 %v4953, %v5083
        %v5114 = vmul.f32 %v4954, %v5084
        %v5115 = vmul.f32 %v4955, %v5084
        %v5116 = vmul.f32 %v4956, %v5085
        %v5117 = vmul.f32 %v4957, %v5085
        %v5119 = vlaneseq
        %v5120 = vshrl.u32 %v5119, 7
        %v5121 = vsub.s32 0, %v5120
        %v5122 = vrot.slane %v4860, %v5121
        %v5123 = vlaneseq
        %v5124 = vshrl.u32 %v5123, 7
        %v5125 = vsub.s32 1, %v5124
        %v5126 = vrot.slane %v4860, %v5125
        %v5129 = vmul.f32 %v5086, %v5122
        %v5130 = vmul.f32 %v5087, %v5126
        %v5131 = vmul.f32 %v5088, %v5122
        %v5132 = vmul.f32 %v5089, %v5126
        %v5133 = vmul.f32 %v5090, %v5122
        %v5134 = vmul.f32 %v5091, %v5126
        %v5135 = vmul.f32 %v5092, %v5122
        %v5136 = vmul.f32 %v5093, %v5126
        %v5137 = vmul.f32 %v5094, %v5122
        %v5138 = vmul.f32 %v5095, %v5126
        %v5139 = vmul.f32 %v5096, %v5122
        %v5140 = vmul.f32 %v5097, %v5126
        %v5141 = vmul.f32 %v5098, %v5122
        %v5142 = vmul.f32 %v5099, %v5126
        %v5143 = vmul.f32 %v5100, %v5122
        %v5144 = vmul.f32 %v5101, %v5126
        %v5145 = vmul.f32 %v5102, %v5122
        %v5146 = vmul.f32 %v5103, %v5126
        %v5147 = vmul.f32 %v5104, %v5122
        %v5148 = vmul.f32 %v5105, %v5126
        %v5149 = vmul.f32 %v5106, %v5122
        %v5150 = vmul.f32 %v5107, %v5126
        %v5151 = vmul.f32 %v5108, %v5122
        %v5152 = vmul.f32 %v5109, %v5126
        %v5153 = vmul.f32 %v5110, %v5122
        %v5154 = vmul.f32 %v5111, %v5126
        %v5155 = vmul.f32 %v5112, %v5122
        %v5156 = vmul.f32 %v5113, %v5126
        %v5157 = vmul.f32 %v5114, %v5122
        %v5158 = vmul.f32 %v5115, %v5126
        %v5159 = vmul.f32 %v5116, %v5122
        %v5160 = vmul.f32 %v5117, %v5126
        %v5162 = vlaneseq
        %v5163 = vshrl.u32 %v5162, 7
        %v5164 = vsub.s32 0, %v5163
        %v5165 = vrot.slane %v4861, %v5164
        %v5166 = vlaneseq
        %v5167 = vshrl.u32 %v5166, 7
        %v5168 = vsub.s32 1, %v5167
        %v5169 = vrot.slane %v4861, %v5168
        %v5172 = vadd.f32 %v5129, %v5165
        %v5173 = vadd.f32 %v5130, %v5169
        %v5174 = vadd.f32 %v5131, %v5165
        %v5175 = vadd.f32 %v5132, %v5169
        %v5176 = vadd.f32 %v5133, %v5165
        %v5177 = vadd.f32 %v5134, %v5169
        %v5178 = vadd.f32 %v5135, %v5165
        %v5179 = vadd.f32 %v5136, %v5169
        %v5180 = vadd.f32 %v5137, %v5165
        %v5181 = vadd.f32 %v5138, %v5169
        %v5182 = vadd.f32 %v5139, %v5165
        %v5183 = vadd.f32 %v5140, %v5169
        %v5184 = vadd.f32 %v5141, %v5165
        %v5185 = vadd.f32 %v5142, %v5169
        %v5186 = vadd.f32 %v5143, %v5165
        %v5187 = vadd.f32 %v5144, %v5169
        %v5188 = vadd.f32 %v5145, %v5165
        %v5189 = vadd.f32 %v5146, %v5169
        %v5190 = vadd.f32 %v5147, %v5165
        %v5191 = vadd.f32 %v5148, %v5169
        %v5192 = vadd.f32 %v5149, %v5165
        %v5193 = vadd.f32 %v5150, %v5169
        %v5194 = vadd.f32 %v5151, %v5165
        %v5195 = vadd.f32 %v5152, %v5169
        %v5196 = vadd.f32 %v5153, %v5165
        %v5197 = vadd.f32 %v5154, %v5169
        %v5198 = vadd.f32 %v5155, %v5165
        %v5199 = vadd.f32 %v5156, %v5169
        %v5200 = vadd.f32 %v5157, %v5165
        %v5201 = vadd.f32 %v5158, %v5169
        %v5202 = vadd.f32 %v5159, %v5165
        %v5203 = vadd.f32 %v5160, %v5169
        %5204 = vst [vmem:[#allocation2] sm:$0xff] %v5172
        %5205 = vst [vmem:[#allocation2 + $0x8] sm:$0xff] %v5173
        %5206 = vst [vmem:[#allocation2 + $0x10] sm:$0xff] %v5174
        %5207 = vst [vmem:[#allocation2 + $0x18] sm:$0xff] %v5175
        %5208 = vst [vmem:[#allocation2 + $0x20] sm:$0xff] %v5176
        %5209 = vst [vmem:[#allocation2 + $0x28] sm:$0xff] %v5177
        %5210 = vst [vmem:[#allocation2 + $0x30] sm:$0xff] %v5178
        %5211 = vst [vmem:[#allocation2 + $0x38] sm:$0xff] %v5179
        %5212 = vst [vmem:[#allocation2 + $0x40] sm:$0xff] %v5180
        %5213 = vst [vmem:[#allocation2 + $0x48] sm:$0xff] %v5181
        %5214 = vst [vmem:[#allocation2 + $0x50] sm:$0xff] %v5182
        %5215 = vst [vmem:[#allocation2 + $0x58] sm:$0xff] %v5183
        %5216 = vst [vmem:[#allocation2 + $0x60] sm:$0xff] %v5184
        %5217 = vst [vmem:[#allocation2 + $0x68] sm:$0xff] %v5185
        %5218 = vst [vmem:[#allocation2 + $0x70] sm:$0xff] %v5186
        %5219 = vst [vmem:[#allocation2 + $0x78] sm:$0xff] %v5187
        %5220 = vst [vmem:[#allocation2 + $0x80] sm:$0xff] %v5188
        %5221 = vst [vmem:[#allocation2 + $0x88] sm:$0xff] %v5189
        %5222 = vst [vmem:[#allocation2 + $0x90] sm:$0xff] %v5190
        %5223 = vst [vmem:[#allocation2 + $0x98] sm:$0xff] %v5191
        %5224 = vst [vmem:[#allocation2 + $0xa0] sm:$0xff] %v5192
        %5225 = vst [vmem:[#allocation2 + $0xa8] sm:$0xff] %v5193
        %5226 = vst [vmem:[#allocation2 + $0xb0] sm:$0xff] %v5194
        %5227 = vst [vmem:[#allocation2 + $0xb8] sm:$0xff] %v5195
        %5228 = vst [vmem:[#allocation2 + $0xc0] sm:$0xff] %v5196
        %5229 = vst [vmem:[#allocation2 + $0xc8] sm:$0xff] %v5197
        %5230 = vst [vmem:[#allocation2 + $0xd0] sm:$0xff] %v5198
        %5231 = vst [vmem:[#allocation2 + $0xd8] sm:$0xff] %v5199
        %5232 = vst [vmem:[#allocation2 + $0xe0] sm:$0xff] %v5200
        %5233 = vst [vmem:[#allocation2 + $0xe8] sm:$0xff] %v5201
        %5234 = vst [vmem:[#allocation2 + $0xf0] sm:$0xff] %v5202
        %5235 = vst [vmem:[#allocation2 + $0xf8] sm:$0xff] %v5203
        %p5236 = scmp.eq.s32.totalorder %s30, 1
        // Predicated region
        $region117: #{tpu_custom_call.1} parent=83 // pred_check
          %p5237 = pneg %p5236
        $region118: #{tpu_custom_call.1} parent=83 // pred_check_branch
          %5239 = sbr.rel (%p5237) target = $region120
        $region119: #{tpu_custom_call.1} parent=83 // pred_region
          %v5240 = vld [vmem:[%s14] sm:$0x3]
          %v5241 = vld [vmem:[%s15] sm:$0x3]
          %v5242 = vadd.f32 %v5172, %v5173
          %5243 = vadd.xlane.f32.xlu0 %v5242
          %v5244 = vpop.xlane.xlu0 %5243
          %v5245 = vadd.f32 %v5174, %v5175
          %5246 = vadd.xlane.f32.xlu0 %v5245
          %v5247 = vpop.xlane.xlu0 %5246
          %v5248 = vadd.f32 %v5176, %v5177
          %5249 = vadd.xlane.f32.xlu0 %v5248
          %v5250 = vpop.xlane.xlu0 %5249
          %v5251 = vadd.f32 %v5178, %v5179
          %5252 = vadd.xlane.f32.xlu0 %v5251
          %v5253 = vpop.xlane.xlu0 %5252
          %v5254 = vadd.f32 %v5180, %v5181
          %5255 = vadd.xlane.f32.xlu0 %v5254
          %v5256 = vpop.xlane.xlu0 %5255
          %v5257 = vadd.f32 %v5182, %v5183
          %5258 = vadd.xlane.f32.xlu0 %v5257
          %v5259 = vpop.xlane.xlu0 %5258
          %v5260 = vadd.f32 %v5184, %v5185
          %5261 = vadd.xlane.f32.xlu0 %v5260
          %v5262 = vpop.xlane.xlu0 %5261
          %v5263 = vadd.f32 %v5186, %v5187
          %5264 = vadd.xlane.f32.xlu0 %v5263
          %v5265 = vpop.xlane.xlu0 %5264
          %v5266 = vadd.f32 %v5188, %v5189
          %5267 = vadd.xlane.f32.xlu0 %v5266
          %v5268 = vpop.xlane.xlu0 %5267
          %v5269 = vadd.f32 %v5190, %v5191
          %5270 = vadd.xlane.f32.xlu0 %v5269
          %v5271 = vpop.xlane.xlu0 %5270
          %v5272 = vadd.f32 %v5192, %v5193
          %5273 = vadd.xlane.f32.xlu0 %v5272
          %v5274 = vpop.xlane.xlu0 %5273
          %v5275 = vadd.f32 %v5194, %v5195
          %5276 = vadd.xlane.f32.xlu0 %v5275
          %v5277 = vpop.xlane.xlu0 %5276
          %v5278 = vadd.f32 %v5196, %v5197
          %5279 = vadd.xlane.f32.xlu0 %v5278
          %v5280 = vpop.xlane.xlu0 %5279
          %v5281 = vadd.f32 %v5198, %v5199
          %5282 = vadd.xlane.f32.xlu0 %v5281
          %v5283 = vpop.xlane.xlu0 %5282
          %v5284 = vadd.f32 %v5200, %v5201
          %5285 = vadd.xlane.f32.xlu0 %v5284
          %v5286 = vpop.xlane.xlu0 %5285
          %v5287 = vadd.f32 %v5202, %v5203
          %5288 = vadd.xlane.f32.xlu0 %v5287
          %v5289 = vpop.xlane.xlu0 %5288
          %v5290 = vmul.f32 %v5244, %v3167
          %v5291 = vmul.f32 %v5247, %v3167
          %v5292 = vmul.f32 %v5250, %v3167
          %v5293 = vmul.f32 %v5253, %v3167
          %v5294 = vmul.f32 %v5256, %v3167
          %v5295 = vmul.f32 %v5259, %v3167
          %v5296 = vmul.f32 %v5262, %v3167
          %v5297 = vmul.f32 %v5265, %v3167
          %v5298 = vmul.f32 %v5268, %v3167
          %v5299 = vmul.f32 %v5271, %v3167
          %v5300 = vmul.f32 %v5274, %v3167
          %v5301 = vmul.f32 %v5277, %v3167
          %v5302 = vmul.f32 %v5280, %v3167
          %v5303 = vmul.f32 %v5283, %v3167
          %v5304 = vmul.f32 %v5286, %v3167
          %v5305 = vmul.f32 %v5289, %v3167
          %v5306 = vsub.f32 %v5172, %v5290
          %v5307 = vsub.f32 %v5173, %v5290
          %v5308 = vsub.f32 %v5174, %v5291
          %v5309 = vsub.f32 %v5175, %v5291
          %v5310 = vsub.f32 %v5176, %v5292
          %v5311 = vsub.f32 %v5177, %v5292
          %v5312 = vsub.f32 %v5178, %v5293
          %v5313 = vsub.f32 %v5179, %v5293
          %v5314 = vsub.f32 %v5180, %v5294
          %v5315 = vsub.f32 %v5181, %v5294
          %v5316 = vsub.f32 %v5182, %v5295
          %v5317 = vsub.f32 %v5183, %v5295
          %v5318 = vsub.f32 %v5184, %v5296
          %v5319 = vsub.f32 %v5185, %v5296
          %v5320 = vsub.f32 %v5186, %v5297
          %v5321 = vsub.f32 %v5187, %v5297
          %v5322 = vsub.f32 %v5188, %v5298
          %v5323 = vsub.f32 %v5189, %v5298
          %v5324 = vsub.f32 %v5190, %v5299
          %v5325 = vsub.f32 %v5191, %v5299
          %v5326 = vsub.f32 %v5192, %v5300
          %v5327 = vsub.f32 %v5193, %v5300
          %v5328 = vsub.f32 %v5194, %v5301
          %v5329 = vsub.f32 %v5195, %v5301
          %v5330 = vsub.f32 %v5196, %v5302
          %v5331 = vsub.f32 %v5197, %v5302
          %v5332 = vsub.f32 %v5198, %v5303
          %v5333 = vsub.f32 %v5199, %v5303
          %v5334 = vsub.f32 %v5200, %v5304
          %v5335 = vsub.f32 %v5201, %v5304
          %v5336 = vsub.f32 %v5202, %v5305
          %v5337 = vsub.f32 %v5203, %v5305
          %v5338 = vmul.f32 %v5306, %v5306
          %v5339 = vmul.f32 %v5307, %v5307
          %v5340 = vmul.f32 %v5308, %v5308
          %v5341 = vmul.f32 %v5309, %v5309
          %v5342 = vmul.f32 %v5310, %v5310
          %v5343 = vmul.f32 %v5311, %v5311
          %v5344 = vmul.f32 %v5312, %v5312
          %v5345 = vmul.f32 %v5313, %v5313
          %v5346 = vmul.f32 %v5314, %v5314
          %v5347 = vmul.f32 %v5315, %v5315
          %v5348 = vmul.f32 %v5316, %v5316
          %v5349 = vmul.f32 %v5317, %v5317
          %v5350 = vmul.f32 %v5318, %v5318
          %v5351 = vmul.f32 %v5319, %v5319
          %v5352 = vmul.f32 %v5320, %v5320
          %v5353 = vmul.f32 %v5321, %v5321
          %v5354 = vmul.f32 %v5322, %v5322
          %v5355 = vmul.f32 %v5323, %v5323
          %v5356 = vmul.f32 %v5324, %v5324
          %v5357 = vmul.f32 %v5325, %v5325
          %v5358 = vmul.f32 %v5326, %v5326
          %v5359 = vmul.f32 %v5327, %v5327
          %v5360 = vmul.f32 %v5328, %v5328
          %v5361 = vmul.f32 %v5329, %v5329
          %v5362 = vmul.f32 %v5330, %v5330
          %v5363 = vmul.f32 %v5331, %v5331
          %v5364 = vmul.f32 %v5332, %v5332
          %v5365 = vmul.f32 %v5333, %v5333
          %v5366 = vmul.f32 %v5334, %v5334
          %v5367 = vmul.f32 %v5335, %v5335
          %v5368 = vmul.f32 %v5336, %v5336
          %v5369 = vmul.f32 %v5337, %v5337
          %v5370 = vadd.f32 %v5338, %v5339
          %5371 = vadd.xlane.f32.xlu0 %v5370
          %v5372 = vpop.xlane.xlu0 %5371
          %v5373 = vadd.f32 %v5340, %v5341
          %5374 = vadd.xlane.f32.xlu0 %v5373
          %v5375 = vpop.xlane.xlu0 %5374
          %v5376 = vadd.f32 %v5342, %v5343
          %5377 = vadd.xlane.f32.xlu0 %v5376
          %v5378 = vpop.xlane.xlu0 %5377
          %v5379 = vadd.f32 %v5344, %v5345
          %5380 = vadd.xlane.f32.xlu0 %v5379
          %v5381 = vpop.xlane.xlu0 %5380
          %v5382 = vadd.f32 %v5346, %v5347
          %5383 = vadd.xlane.f32.xlu0 %v5382
          %v5384 = vpop.xlane.xlu0 %5383
          %v5385 = vadd.f32 %v5348, %v5349
          %5386 = vadd.xlane.f32.xlu0 %v5385
          %v5387 = vpop.xlane.xlu0 %5386
          %v5388 = vadd.f32 %v5350, %v5351
          %5389 = vadd.xlane.f32.xlu0 %v5388
          %v5390 = vpop.xlane.xlu0 %5389
          %v5391 = vadd.f32 %v5352, %v5353
          %5392 = vadd.xlane.f32.xlu0 %v5391
          %v5393 = vpop.xlane.xlu0 %5392
          %v5394 = vadd.f32 %v5354, %v5355
          %5395 = vadd.xlane.f32.xlu0 %v5394
          %v5396 = vpop.xlane.xlu0 %5395
          %v5397 = vadd.f32 %v5356, %v5357
          %5398 = vadd.xlane.f32.xlu0 %v5397
          %v5399 = vpop.xlane.xlu0 %5398
          %v5400 = vadd.f32 %v5358, %v5359
          %5401 = vadd.xlane.f32.xlu0 %v5400
          %v5402 = vpop.xlane.xlu0 %5401
          %v5403 = vadd.f32 %v5360, %v5361
          %5404 = vadd.xlane.f32.xlu0 %v5403
          %v5405 = vpop.xlane.xlu0 %5404
          %v5406 = vadd.f32 %v5362, %v5363
          %5407 = vadd.xlane.f32.xlu0 %v5406
          %v5408 = vpop.xlane.xlu0 %5407
          %v5409 = vadd.f32 %v5364, %v5365
          %5410 = vadd.xlane.f32.xlu0 %v5409
          %v5411 = vpop.xlane.xlu0 %5410
          %v5412 = vadd.f32 %v5366, %v5367
          %5413 = vadd.xlane.f32.xlu0 %v5412
          %v5414 = vpop.xlane.xlu0 %5413
          %v5415 = vadd.f32 %v5368, %v5369
          %5416 = vadd.xlane.f32.xlu0 %v5415
          %v5417 = vpop.xlane.xlu0 %5416
          %v5418 = vmul.f32 %v5372, %v3167
          %v5419 = vmul.f32 %v5375, %v3167
          %v5420 = vmul.f32 %v5378, %v3167
          %v5421 = vmul.f32 %v5381, %v3167
          %v5422 = vmul.f32 %v5384, %v3167
          %v5423 = vmul.f32 %v5387, %v3167
          %v5424 = vmul.f32 %v5390, %v3167
          %v5425 = vmul.f32 %v5393, %v3167
          %v5426 = vmul.f32 %v5396, %v3167
          %v5427 = vmul.f32 %v5399, %v3167
          %v5428 = vmul.f32 %v5402, %v3167
          %v5429 = vmul.f32 %v5405, %v3167
          %v5430 = vmul.f32 %v5408, %v3167
          %v5431 = vmul.f32 %v5411, %v3167
          %v5432 = vmul.f32 %v5414, %v3167
          %v5433 = vmul.f32 %v5417, %v3167
          %v5434 = vadd.f32 %v5418, 1e-05
          %v5435 = vadd.f32 %v5419, 1e-05
          %v5436 = vadd.f32 %v5420, 1e-05
          %v5437 = vadd.f32 %v5421, 1e-05
          %v5438 = vadd.f32 %v5422, 1e-05
          %v5439 = vadd.f32 %v5423, 1e-05
          %v5440 = vadd.f32 %v5424, 1e-05
          %v5441 = vadd.f32 %v5425, 1e-05
          %v5442 = vadd.f32 %v5426, 1e-05
          %v5443 = vadd.f32 %v5427, 1e-05
          %v5444 = vadd.f32 %v5428, 1e-05
          %v5445 = vadd.f32 %v5429, 1e-05
          %v5446 = vadd.f32 %v5430, 1e-05
          %v5447 = vadd.f32 %v5431, 1e-05
          %v5448 = vadd.f32 %v5432, 1e-05
          %v5449 = vadd.f32 %v5433, 1e-05
          %v5450 = vrsqrt.pop %v5434
          %v5451 = vrsqrt.pop %v5435
          %v5452 = vrsqrt.pop %v5436
          %v5453 = vrsqrt.pop %v5437
          %v5454 = vrsqrt.pop %v5438
          %v5455 = vrsqrt.pop %v5439
          %v5456 = vrsqrt.pop %v5440
          %v5457 = vrsqrt.pop %v5441
          %v5458 = vrsqrt.pop %v5442
          %v5459 = vrsqrt.pop %v5443
          %v5460 = vrsqrt.pop %v5444
          %v5461 = vrsqrt.pop %v5445
          %v5462 = vrsqrt.pop %v5446
          %v5463 = vrsqrt.pop %v5447
          %v5464 = vrsqrt.pop %v5448
          %v5465 = vrsqrt.pop %v5449
          %v5466 = vmul.f32 %v5306, %v5450
          %v5467 = vmul.f32 %v5307, %v5450
          %v5468 = vmul.f32 %v5308, %v5451
          %v5469 = vmul.f32 %v5309, %v5451
          %v5470 = vmul.f32 %v5310, %v5452
          %v5471 = vmul.f32 %v5311, %v5452
          %v5472 = vmul.f32 %v5312, %v5453
          %v5473 = vmul.f32 %v5313, %v5453
          %v5474 = vmul.f32 %v5314, %v5454
          %v5475 = vmul.f32 %v5315, %v5454
          %v5476 = vmul.f32 %v5316, %v5455
          %v5477 = vmul.f32 %v5317, %v5455
          %v5478 = vmul.f32 %v5318, %v5456
          %v5479 = vmul.f32 %v5319, %v5456
          %v5480 = vmul.f32 %v5320, %v5457
          %v5481 = vmul.f32 %v5321, %v5457
          %v5482 = vmul.f32 %v5322, %v5458
          %v5483 = vmul.f32 %v5323, %v5458
          %v5484 = vmul.f32 %v5324, %v5459
          %v5485 = vmul.f32 %v5325, %v5459
          %v5486 = vmul.f32 %v5326, %v5460
          %v5487 = vmul.f32 %v5327, %v5460
          %v5488 = vmul.f32 %v5328, %v5461
          %v5489 = vmul.f32 %v5329, %v5461
          %v5490 = vmul.f32 %v5330, %v5462
          %v5491 = vmul.f32 %v5331, %v5462
          %v5492 = vmul.f32 %v5332, %v5463
          %v5493 = vmul.f32 %v5333, %v5463
          %v5494 = vmul.f32 %v5334, %v5464
          %v5495 = vmul.f32 %v5335, %v5464
          %v5496 = vmul.f32 %v5336, %v5465
          %v5497 = vmul.f32 %v5337, %v5465
          %v5499 = vlaneseq
          %v5500 = vshrl.u32 %v5499, 7
          %v5501 = vsub.s32 0, %v5500
          %v5502 = vrot.slane %v5240, %v5501
          %v5503 = vlaneseq
          %v5504 = vshrl.u32 %v5503, 7
          %v5505 = vsub.s32 1, %v5504
          %v5506 = vrot.slane %v5240, %v5505
          %v5509 = vmul.f32 %v5466, %v5502
          %v5510 = vmul.f32 %v5467, %v5506
          %v5511 = vmul.f32 %v5468, %v5502
          %v5512 = vmul.f32 %v5469, %v5506
          %v5513 = vmul.f32 %v5470, %v5502
          %v5514 = vmul.f32 %v5471, %v5506
          %v5515 = vmul.f32 %v5472, %v5502
          %v5516 = vmul.f32 %v5473, %v5506
          %v5517 = vmul.f32 %v5474, %v5502
          %v5518 = vmul.f32 %v5475, %v5506
          %v5519 = vmul.f32 %v5476, %v5502
          %v5520 = vmul.f32 %v5477, %v5506
          %v5521 = vmul.f32 %v5478, %v5502
          %v5522 = vmul.f32 %v5479, %v5506
          %v5523 = vmul.f32 %v5480, %v5502
          %v5524 = vmul.f32 %v5481, %v5506
          %v5525 = vmul.f32 %v5482, %v5502
          %v5526 = vmul.f32 %v5483, %v5506
          %v5527 = vmul.f32 %v5484, %v5502
          %v5528 = vmul.f32 %v5485, %v5506
          %v5529 = vmul.f32 %v5486, %v5502
          %v5530 = vmul.f32 %v5487, %v5506
          %v5531 = vmul.f32 %v5488, %v5502
          %v5532 = vmul.f32 %v5489, %v5506
          %v5533 = vmul.f32 %v5490, %v5502
          %v5534 = vmul.f32 %v5491, %v5506
          %v5535 = vmul.f32 %v5492, %v5502
          %v5536 = vmul.f32 %v5493, %v5506
          %v5537 = vmul.f32 %v5494, %v5502
          %v5538 = vmul.f32 %v5495, %v5506
          %v5539 = vmul.f32 %v5496, %v5502
          %v5540 = vmul.f32 %v5497, %v5506
          %v5542 = vlaneseq
          %v5543 = vshrl.u32 %v5542, 7
          %v5544 = vsub.s32 0, %v5543
          %v5545 = vrot.slane %v5241, %v5544
          %v5546 = vlaneseq
          %v5547 = vshrl.u32 %v5546, 7
          %v5548 = vsub.s32 1, %v5547
          %v5549 = vrot.slane %v5241, %v5548
          %v5552 = vadd.f32 %v5509, %v5545
          %v5553 = vadd.f32 %v5510, %v5549
          %v5554 = vadd.f32 %v5511, %v5545
          %v5555 = vadd.f32 %v5512, %v5549
          %v5556 = vadd.f32 %v5513, %v5545
          %v5557 = vadd.f32 %v5514, %v5549
          %v5558 = vadd.f32 %v5515, %v5545
          %v5559 = vadd.f32 %v5516, %v5549
          %v5560 = vadd.f32 %v5517, %v5545
          %v5561 = vadd.f32 %v5518, %v5549
          %v5562 = vadd.f32 %v5519, %v5545
          %v5563 = vadd.f32 %v5520, %v5549
          %v5564 = vadd.f32 %v5521, %v5545
          %v5565 = vadd.f32 %v5522, %v5549
          %v5566 = vadd.f32 %v5523, %v5545
          %v5567 = vadd.f32 %v5524, %v5549
          %v5568 = vadd.f32 %v5525, %v5545
          %v5569 = vadd.f32 %v5526, %v5549
          %v5570 = vadd.f32 %v5527, %v5545
          %v5571 = vadd.f32 %v5528, %v5549
          %v5572 = vadd.f32 %v5529, %v5545
          %v5573 = vadd.f32 %v5530, %v5549
          %v5574 = vadd.f32 %v5531, %v5545
          %v5575 = vadd.f32 %v5532, %v5549
          %v5576 = vadd.f32 %v5533, %v5545
          %v5577 = vadd.f32 %v5534, %v5549
          %v5578 = vadd.f32 %v5535, %v5545
          %v5579 = vadd.f32 %v5536, %v5549
          %v5580 = vadd.f32 %v5537, %v5545
          %v5581 = vadd.f32 %v5538, %v5549
          %v5582 = vadd.f32 %v5539, %v5545
          %v5583 = vadd.f32 %v5540, %v5549
          %v5584 = vpack.c.bf16 %v5554, %v5552
          %v5585 = vpack.c.bf16 %v5555, %v5553
          %v5586 = vpack.c.bf16 %v5558, %v5556
          %v5587 = vpack.c.bf16 %v5559, %v5557
          %v5588 = vpack.c.bf16 %v5562, %v5560
          %v5589 = vpack.c.bf16 %v5563, %v5561
          %v5590 = vpack.c.bf16 %v5566, %v5564
          %v5591 = vpack.c.bf16 %v5567, %v5565
          %v5592 = vpack.c.bf16 %v5570, %v5568
          %v5593 = vpack.c.bf16 %v5571, %v5569
          %v5594 = vpack.c.bf16 %v5574, %v5572
          %v5595 = vpack.c.bf16 %v5575, %v5573
          %v5596 = vpack.c.bf16 %v5578, %v5576
          %v5597 = vpack.c.bf16 %v5579, %v5577
          %v5598 = vpack.c.bf16 %v5582, %v5580
          %v5599 = vpack.c.bf16 %v5583, %v5581
          %v5616 = vunpack.c.l.b16 %v5584
          %v5617 = vunpack.c.l.b16 %v5585
          %v5618 = vunpack.c.h.b16 %v5584
          %v5619 = vunpack.c.h.b16 %v5585
          %v5620 = vunpack.c.l.b16 %v5586
          %v5621 = vunpack.c.l.b16 %v5587
          %v5622 = vunpack.c.h.b16 %v5586
          %v5623 = vunpack.c.h.b16 %v5587
          %v5624 = vunpack.c.l.b16 %v5588
          %v5625 = vunpack.c.l.b16 %v5589
          %v5626 = vunpack.c.h.b16 %v5588
          %v5627 = vunpack.c.h.b16 %v5589
          %v5628 = vunpack.c.l.b16 %v5590
          %v5629 = vunpack.c.l.b16 %v5591
          %v5630 = vunpack.c.h.b16 %v5590
          %v5631 = vunpack.c.h.b16 %v5591
          %v5632 = vunpack.c.l.b16 %v5592
          %v5633 = vunpack.c.l.b16 %v5593
          %v5634 = vunpack.c.h.b16 %v5592
          %v5635 = vunpack.c.h.b16 %v5593
          %v5636 = vunpack.c.l.b16 %v5594
          %v5637 = vunpack.c.l.b16 %v5595
          %v5638 = vunpack.c.h.b16 %v5594
          %v5639 = vunpack.c.h.b16 %v5595
          %v5640 = vunpack.c.l.b16 %v5596
          %v5641 = vunpack.c.l.b16 %v5597
          %v5642 = vunpack.c.h.b16 %v5596
          %v5643 = vunpack.c.h.b16 %v5597
          %v5644 = vunpack.c.l.b16 %v5598
          %v5645 = vunpack.c.l.b16 %v5599
          %v5646 = vunpack.c.h.b16 %v5598
          %v5647 = vunpack.c.h.b16 %v5599
          %v5648 = vpack.c.b16 %v5617, %v5616
          %v5649 = vpack.c.b16 %v5619, %v5618
          %v5650 = vpack.c.b16 %v5621, %v5620
          %v5651 = vpack.c.b16 %v5623, %v5622
          %v5652 = vpack.c.b16 %v5625, %v5624
          %v5653 = vpack.c.b16 %v5627, %v5626
          %v5654 = vpack.c.b16 %v5629, %v5628
          %v5655 = vpack.c.b16 %v5631, %v5630
          %v5656 = vpack.c.b16 %v5633, %v5632
          %v5657 = vpack.c.b16 %v5635, %v5634
          %v5658 = vpack.c.b16 %v5637, %v5636
          %v5659 = vpack.c.b16 %v5639, %v5638
          %v5660 = vpack.c.b16 %v5641, %v5640
          %v5661 = vpack.c.b16 %v5643, %v5642
          %v5662 = vpack.c.b16 %v5645, %v5644
          %v5663 = vpack.c.b16 %v5647, %v5646
          %5680 = vst [vmem:[#allocation13] sm:$0xff] %v5648
          %5681 = vst [vmem:[#allocation13 + $0x8] sm:$0xff] %v5649
          %5682 = vst [vmem:[#allocation13 + $0x10] sm:$0xff] %v5650
          %5683 = vst [vmem:[#allocation13 + $0x18] sm:$0xff] %v5651
          %5684 = vst [vmem:[#allocation13 + $0x20] sm:$0xff] %v5652
          %5685 = vst [vmem:[#allocation13 + $0x28] sm:$0xff] %v5653
          %5686 = vst [vmem:[#allocation13 + $0x30] sm:$0xff] %v5654
          %5687 = vst [vmem:[#allocation13 + $0x38] sm:$0xff] %v5655
          %5688 = vst [vmem:[#allocation13 + $0x40] sm:$0xff] %v5656
          %5689 = vst [vmem:[#allocation13 + $0x48] sm:$0xff] %v5657
          %5690 = vst [vmem:[#allocation13 + $0x50] sm:$0xff] %v5658
          %5691 = vst [vmem:[#allocation13 + $0x58] sm:$0xff] %v5659
          %5692 = vst [vmem:[#allocation13 + $0x60] sm:$0xff] %v5660
          %5693 = vst [vmem:[#allocation13 + $0x68] sm:$0xff] %v5661
          %5694 = vst [vmem:[#allocation13 + $0x70] sm:$0xff] %v5662
          %5695 = vst [vmem:[#allocation13 + $0x78] sm:$0xff] %v5663
        $region120: #{tpu_custom_call.1} parent=83 // pred_fallthru
          _
        // Predicated region
        $region121: #{tpu_custom_call.1} parent=83 // pred_check
          %p5696 = pneg %p439
        $region122: #{tpu_custom_call.1} parent=83 // pred_check_branch
          %5698 = sbr.rel (%p5696) target = $region124
        $region123: #{tpu_custom_call.1} parent=83 // pred_region
          %s5700 = ssub.s32 2048, 2048
          %5701 = vsyncadd [#allocation5], %s5700
          %s5702 = sshll.u32 [#allocation13], 4
          %s5703 = int_to_ptr.vmem [resolvable:$true] %s5702
          %5708 = dma.vmem_to_hbm [thread:$0]  %s5703, 2048, %s16, [#allocation5], 128, 128, 8
        $region124: #{tpu_custom_call.1} parent=83 // pred_fallthru
          _
        // Predicated region
        $region125: #{tpu_custom_call.1} parent=83 // pred_check
          %p5709 = pneg %p439
        $region126: #{tpu_custom_call.1} parent=83 // pred_check_branch
          %5711 = sbr.rel (%p5709) target = $region128
        $region127: #{tpu_custom_call.1} parent=83 // pred_region
          %5712 = dma.done [#allocation5], 2048
        $region128: #{tpu_custom_call.1} parent=83 // pred_fallthru
          _
      $region84: #{tpu_custom_call.1} parent=5 // pred_fallthru
        _
      %p5713 = scmp.le.s32.totalorder 2, %s25
      // Predicated region
      $region129: #{tpu_custom_call.1} parent=5 // pred_check
        %p5714 = pneg %p5713
      $region130: #{tpu_custom_call.1} parent=5 // pred_check_branch
        %5716 = sbr.rel (%p5714) target = $region132
      $region131: #{tpu_custom_call.1} parent=5 // pred_region
        %s5717 = ssub.s32 %s25, 2
      $region132: #{tpu_custom_call.1} parent=5 // pred_fallthru
        _
    $region6: #{tpu_custom_call.1} parent=1 // loop_footer
      %s29 = sadd.s32 1, %s25
    $region7: #{tpu_custom_call.1} parent=1 // loop_footer_branch
      %24 = sbr.rel target = $region3
    $region8: #{tpu_custom_call.1} parent=1 // loop_exit
      _
    %5718 = vsyncpa [#allocation4], 1
    %s5719 = scalar_lea.sflag [#allocation4], 1
    %5720 = vsyncpa %s5719, 1
    %5721 = vsyncpa [#allocation7], 1
    %5722 = vsyncpa [#allocation5], 1
    %s5723 = scalar_lea.sflag [#allocation5], 1
    %5724 = vsyncpa %s5723, 1

</llo_original>
